<compile_context>
chip_gen: v6e
topology: v6e:2x2x1
jax: 0.10.0
libtpu: 0.0.40
codegen_flags: <defaults>
</compile_context>

<pallas_src>
import functools

import jax
import jax.numpy as jnp
from jax.experimental import pallas as pl
from jax.experimental.pallas import tpu as pltpu

DILATIONS = (1, 2, 4, 8)


# ---------------------------------------------------------------------------
# Stage 1: 3x3 conv (pad=1, no bias) + folded BN + ReLU for all three stems,
# fused into one pallas_call (grid over batch).
# ---------------------------------------------------------------------------
def _conv3x3_block(x_ref, w_ref, s_ref, b_ref, o_ref, xcat_ref, acc_ref):
    """One 3x3 conv + BN + ReLU stem for a single batch element."""
    H, W, Cin = x_ref.shape[1], x_ref.shape[2], x_ref.shape[3]
    Cout = o_ref.shape[3]
    x = x_ref[0].astype(jnp.float32)

    # Build an im2col-along-W slab in VMEM: xcat[h, w, kw*Cin + c] equals the
    # zero-padded input at (h, w + kw, c).  This (a) handles the halo in-kernel
    # (no wrapper jnp.pad / extra HBM copy) and (b) widens the MXU contraction
    # to K = 3*Cin, so there is one dot per kh instead of 9 tiny dots.
    xcat_ref[...] = jnp.zeros_like(xcat_ref)
    xcat_ref[1:H + 1, 1:W, 0:Cin] = x[:, 0:W - 1, :]          # kw = 0 tap
    xcat_ref[1:H + 1, :, Cin:2 * Cin] = x                     # kw = 1 tap
    xcat_ref[1:H + 1, 0:W - 1, 2 * Cin:3 * Cin] = x[:, 1:W, :]  # kw = 2 tap

    # Accumulate in VMEM scratch (not SSA values) to cap vreg pressure.
    acc_ref[...] = jnp.zeros_like(acc_ref)
    for kh in range(3):
        patch = xcat_ref[kh:kh + H, :, :].reshape(H * W, 3 * Cin)
        acc_ref[...] += jnp.dot(patch, w_ref[kh],
                                preferred_element_type=jnp.float32)

    y = jnp.maximum(acc_ref[...] * s_ref[...] + b_ref[...], 0.0)
    o_ref[0] = y.reshape(H, W, Cout).astype(o_ref.dtype)


def _stage1_kernel(*refs):
    # refs = [x_i, w_i, s_i, b_i]*3  ++  [o_0, o_1, o_2]  ++  [xcat_i, acc_i]*3
    for i in range(3):
        x_ref, w_ref, s_ref, b_ref = refs[4 * i:4 * i + 4]
        o_ref = refs[12 + i]
        xcat_ref, acc_ref = refs[15 + 2 * i:15 + 2 * i + 2]
        _conv3x3_block(x_ref, w_ref, s_ref, b_ref, o_ref, xcat_ref, acc_ref)


def stage1_convs(xs_nhwc, params):
    """Fused conv0/conv1/conv2 stems: one pallas_call, grid over batch."""
    N = xs_nhwc[0].shape[0]
    oc = params["conv0"][0].shape[-1]
    args, in_specs, out_shape, out_specs, scratch = [], [], [], [], []
    for i, x in enumerate(xs_nhwc):
        w, s, b = params[f"conv{i}"]
        H, W, Cin = x.shape[1], x.shape[2], x.shape[3]
        # HWIO (3,3,Cin,oc) -> (3, 3*Cin, oc): per-kh slab, (kw, cin)-ordered
        # to match the xcat channel layout built in-kernel.
        args += [x, w.reshape(3, 3 * Cin, oc),
                 s.reshape(1, oc), b.reshape(1, oc)]
        in_specs += [
            pl.BlockSpec((1, H, W, Cin), lambda n: (n, 0, 0, 0)),
            pl.BlockSpec((3, 3 * Cin, oc), lambda n: (0, 0, 0)),
            pl.BlockSpec((1, oc), lambda n: (0, 0)),
            pl.BlockSpec((1, oc), lambda n: (0, 0)),
        ]
        out_shape.append(jax.ShapeDtypeStruct((N, H, W, oc), x.dtype))
        out_specs.append(pl.BlockSpec((1, H, W, oc), lambda n: (n, 0, 0, 0)))
        scratch += [pltpu.VMEM((H + 2, W, 3 * Cin), jnp.float32),
                    pltpu.VMEM((H * W, oc), jnp.float32)]
    return pl.pallas_call(
        _stage1_kernel,
        out_shape=tuple(out_shape),
        grid=(N,),
        in_specs=in_specs,
        out_specs=tuple(out_specs),
        scratch_shapes=scratch,
        compiler_params=pltpu.CompilerParams(
            dimension_semantics=("parallel",)),
    )(*args)


# ---------------------------------------------------------------------------
# Stage 2: cat([f0, f1, f2]) + all four dilated separable branches, fused.
# Output is NCHW-flat (N, 4*oc, Ht*Wt) -> lane-dense stores, no out transpose.
# ---------------------------------------------------------------------------
def _fused_branches_kernel(f0_ref, f1_ref, f2_ref, wdw_ref, s1_ref, b1_ref,
                           wpw_ref, s2_ref, b2_ref, o_ref, ypad_ref, acc_ref,
                           *, dilations, dmax):
    H, W, oc = f2_ref.shape[1], f2_ref.shape[2], f2_ref.shape[3]
    C3 = 3 * oc

    # Assemble the concatenated feature map once in VMEM, zero-padded by dmax:
    # fuses torch.cat and the per-branch paddings; y touches HBM exactly once.
    ypad_ref[...] = jnp.zeros_like(ypad_ref)
    ypad_ref[dmax:dmax + H, dmax:dmax + W, 0:oc] = f0_ref[0].astype(jnp.float32)
    ypad_ref[dmax:dmax + H, dmax:dmax + W, oc:2 * oc] = (
        f1_ref[0].astype(jnp.float32))
    ypad_ref[dmax:dmax + H, dmax:dmax + W, 2 * oc:] = (
        f2_ref[0].astype(jnp.float32))

    for br, d in enumerate(dilations):
        base = dmax - d
        # Depthwise dilated 3x3, accumulated in VMEM scratch.
        acc_ref[...] = jnp.zeros_like(acc_ref)
        for kh in range(3):
            for kw in range(3):
                win = ypad_ref[base + kh * d:base + kh * d + H,
                               base + kw * d:base + kw * d + W, :]
                acc_ref[...] += win * wdw_ref[br, kh * 3 + kw, :]
        z = acc_ref[...] * s1_ref[br] + b1_ref[br]              # inner BN
        out = jnp.dot(z.reshape(H * W, C3), wpw_ref[br],
                      preferred_element_type=jnp.float32)       # 1x1 pointwise
        out = jnp.maximum(out * s2_ref[br] + b2_ref[br], 0.0)   # outer BN+ReLU
        # Lane-dense NCHW-flat store: the branch channel slab is (oc, H*W).
        o_ref[0, br * oc:(br + 1) * oc, :] = out.T.astype(o_ref.dtype)


def fused_dilation_branches(f0, f1, f2, params):
    N, Ht, Wt, oc = f2.shape
    C3 = 3 * oc
    dmax = max(DILATIONS)
    wdw = jnp.stack([params[f"dil{i}"][0].reshape(9, C3) for i in range(4)])
    s1 = jnp.stack([params[f"dil{i}"][1].reshape(1, C3) for i in range(4)])
    b1 = jnp.stack([params[f"dil{i}"][2].reshape(1, C3) for i in range(4)])
    wpw = jnp.stack([params[f"dil{i}"][3] for i in range(4)])
    s2 = jnp.stack([params[f"dil{i}"][4].reshape(1, oc) for i in range(4)])
    b2 = jnp.stack([params[f"dil{i}"][5].reshape(1, oc) for i in range(4)])
    kernel = functools.partial(_fused_branches_kernel,
                               dilations=DILATIONS, dmax=dmax)
    feat_spec = pl.BlockSpec((1, Ht, Wt, oc), lambda n: (n, 0, 0, 0))
    return pl.pallas_call(
        kernel,
        out_shape=jax.ShapeDtypeStruct((N, 4 * oc, Ht * Wt), f2.dtype),
        grid=(N,),
        in_specs=[
            feat_spec, feat_spec, feat_spec,
            pl.BlockSpec((4, 9, C3), lambda n: (0, 0, 0)),
            pl.BlockSpec((4, 1, C3), lambda n: (0, 0, 0)),
            pl.BlockSpec((4, 1, C3), lambda n: (0, 0, 0)),
            pl.BlockSpec((4, C3, oc), lambda n: (0, 0, 0)),
            pl.BlockSpec((4, 1, oc), lambda n: (0, 0, 0)),
            pl.BlockSpec((4, 1, oc), lambda n: (0, 0, 0)),
        ],
        out_specs=pl.BlockSpec((1, 4 * oc, Ht * Wt), lambda n: (n, 0, 0)),
        scratch_shapes=[
            pltpu.VMEM((Ht + 2 * dmax, Wt + 2 * dmax, C3), jnp.float32),
            pltpu.VMEM((Ht, Wt, C3), jnp.float32),
        ],
        compiler_params=pltpu.CompilerParams(
            dimension_semantics=("parallel",)),
    )(f0, f1, f2, wdw, s1, b1, wpw, s2, b2)


# ---------------------------------------------------------------------------
# Glue: nearest-neighbor resize (PyTorch F.interpolate mode='nearest')
# ---------------------------------------------------------------------------
def nearest_resize_nhwc(x, h_out, w_out):
    N, H, W, C = x.shape
    if (H, W) == (h_out, w_out):
        return x
    hi = (jnp.arange(h_out) * H) // h_out
    wi = (jnp.arange(w_out) * W) // w_out
    return x[:, hi][:, :, wi]


# ---------------------------------------------------------------------------
# Parameter construction (deterministic, synthetic)
# ---------------------------------------------------------------------------
def fold_bn(gamma, beta, mean, var, eps=1e-5):
    scale = gamma / jnp.sqrt(var + eps)
    bias = beta - mean * scale
    return scale.astype(jnp.float32), bias.astype(jnp.float32)


def make_bn_params(key, c):
    k1, k2, k3, k4 = jax.random.split(key, 4)
    gamma = 1.0 + 0.1 * jax.random.normal(k1, (c,), jnp.float32)
    beta = 0.1 * jax.random.normal(k2, (c,), jnp.float32)
    mean = 0.1 * jax.random.normal(k3, (c,), jnp.float32)
    var = 1.0 + 0.1 * jnp.abs(jax.random.normal(k4, (c,), jnp.float32))
    return fold_bn(gamma, beta, mean, var)


def init_jpu_params(key, in_channel, out_channel):
    oc = out_channel
    c3 = 3 * oc
    p = {}
    keys = jax.random.split(key, 32)
    ki = iter(keys)
    # conv0/1/2: 3x3 conv (HWIO) + BN
    for i, cin in enumerate(in_channel):
        w = 0.1 * jax.random.normal(next(ki), (3, 3, cin, oc), jnp.float32)
        s, b = make_bn_params(next(ki), oc)
        p[f"conv{i}"] = (w, s, b)
    # dilation branches: depthwise (3,3,c3), BN(c3), pointwise (c3,oc), BN(oc)
    for i, d in enumerate(DILATIONS):
        w_dw = 0.1 * jax.random.normal(next(ki), (3, 3, c3), jnp.float32)
        s1, b1 = make_bn_params(next(ki), c3)
        w_pw = 0.1 * jax.random.normal(next(ki), (c3, oc), jnp.float32)
        s2, b2 = make_bn_params(next(ki), oc)
        p[f"dil{i}"] = (w_dw, s1, b1, w_pw, s2, b2, d)
    return p


# ---------------------------------------------------------------------------
# Full JPU forward (NCHW in / NCHW out, like the PyTorch module)
# ---------------------------------------------------------------------------
def jpu_forward(x_list_nchw, params):
    # NCHW -> NHWC at the input boundary (small tensors).
    xs = [jnp.transpose(x, (0, 2, 3, 1)) for x in x_list_nchw]

    f0, f1, f2 = stage1_convs(xs, params)
    Ht, Wt = f2.shape[1], f2.shape[2]
    f0 = nearest_resize_nhwc(f0, Ht, Wt)
    f1 = nearest_resize_nhwc(f1, Ht, Wt)

    out_flat = fused_dilation_branches(f0, f1, f2, params)  # (N, 4*oc, Ht*Wt)
    N, oc = f2.shape[0], f2.shape[3]
    # Already channel-first: only a free reshape, no output transpose.
    return out_flat.reshape(N, 4 * oc, Ht, Wt)


# ---------------------------------------------------------------------------
# Pure-JAX (XLA) reference, used only for a sanity check in __main__.
# ---------------------------------------------------------------------------
def jpu_reference(x_list_nchw, params):
    xs = [jnp.transpose(x, (0, 2, 3, 1)) for x in x_list_nchw]
    feats = []
    for i, x in enumerate(xs):
        w, s, b = params[f"conv{i}"]
        H, W = x.shape[1], x.shape[2]
        xp = jnp.pad(x, ((0, 0), (1, 1), (1, 1), (0, 0)))
        acc = 0.0
        for kh in range(3):
            for kw in range(3):
                acc = acc + jnp.einsum("nhwc,co->nhwo",
                                       xp[:, kh:kh + H, kw:kw + W, :],
                                       w[kh, kw])
        feats.append(jnp.maximum(acc * s + b, 0.0))
    Ht, Wt = feats[2].shape[1], feats[2].shape[2]
    f0 = nearest_resize_nhwc(feats[0], Ht, Wt)
    f1 = nearest_resize_nhwc(feats[1], Ht, Wt)
    y = jnp.concatenate([f0, f1, feats[2]], axis=-1)
    outs = []
    for i, d in enumerate(DILATIONS):
        w_dw, s1, b1, w_pw, s2, b2, _ = params[f"dil{i}"]
        yp = jnp.pad(y, ((0, 0), (d, d), (d, d), (0, 0)))
        acc = 0.0
        for kh in range(3):
            for kw in range(3):
                acc = acc + yp[:, kh * d:kh * d + Ht,
                               kw * d:kw * d + Wt, :] * w_dw[kh, kw]
        z = acc * s1 + b1
        o = jnp.einsum("nhwc,co->nhwo", z, w_pw)
        outs.append(jnp.maximum(o * s2 + b2, 0.0))
    out = jnp.concatenate(outs, axis=-1)
    return jnp.transpose(out, (0, 3, 1, 2))


if __name__ == "__main__":
    key = jax.random.PRNGKey(0)
    k_p, k0, k1, k2 = jax.random.split(key, 4)

    in_channel = [8, 6, 4]
    out_channel = 8

    # NCHW inputs (x[2] has the largest spatial size -> resize target)
    x0 = jax.random.normal(k0, (2, in_channel[0], 4, 4), jnp.float32)
    x1 = jax.random.normal(k1, (2, in_channel[1], 8, 8), jnp.float32)
    x2 = jax.random.normal(k2, (2, in_channel[2], 16, 16), jnp.float32)

    params = init_jpu_params(k_p, in_channel, out_channel)

    out = jpu_forward([x0, x1, x2], params)
    out = jax.block_until_ready(out)

    assert out.shape == (2, 4 * out_channel, 16, 16), out.shape
    assert bool(jnp.all(jnp.isfinite(out)))

    # Sanity check vs a plain-XLA reference (loose tol: MXU default-precision
    # matmuls differ slightly from XLA einsum; real bugs would be O(1) off).
    ref = jax.block_until_ready(jpu_reference([x0, x1, x2], params))
    err = float(jnp.max(jnp.abs(out - ref)))
    assert err < 5e-2, f"max abs error vs reference: {err}"

    print("KERNEL_OK")
</pallas_src>

<mosaic_0001>
module attributes {stable_mosaic.version = 11 : i64} {
  func.func @_stage1_kernel(%arg0: i32, %arg1: memref<1x4x4x8xf32, #tpu.memory_space<vmem>>, %arg2: memref<3x24x8xf32, #tpu.memory_space<vmem>>, %arg3: memref<1x8xf32, #tpu.memory_space<vmem>>, %arg4: memref<1x8xf32, #tpu.memory_space<vmem>>, %arg5: memref<1x8x8x6xf32, #tpu.memory_space<vmem>>, %arg6: memref<3x18x8xf32, #tpu.memory_space<vmem>>, %arg7: memref<1x8xf32, #tpu.memory_space<vmem>>, %arg8: memref<1x8xf32, #tpu.memory_space<vmem>>, %arg9: memref<1x16x16x4xf32, #tpu.memory_space<vmem>>, %arg10: memref<3x12x8xf32, #tpu.memory_space<vmem>>, %arg11: memref<1x8xf32, #tpu.memory_space<vmem>>, %arg12: memref<1x8xf32, #tpu.memory_space<vmem>>, %arg13: memref<1x4x4x8xf32, #tpu.memory_space<vmem>>, %arg14: memref<1x8x8x8xf32, #tpu.memory_space<vmem>>, %arg15: memref<1x16x16x8xf32, #tpu.memory_space<vmem>>, %arg16: memref<6x4x24xf32, #tpu.memory_space<vmem>>, %arg17: memref<16x8xf32, #tpu.memory_space<vmem>>, %arg18: memref<10x8x18xf32, #tpu.memory_space<vmem>>, %arg19: memref<64x8xf32, #tpu.memory_space<vmem>>, %arg20: memref<18x16x12xf32, #tpu.memory_space<vmem>>, %arg21: memref<256x8xf32, #tpu.memory_space<vmem>>) attributes {dimension_semantics = [#tpu.dimension_semantics<parallel>], iteration_bounds = array<i64: 2>, scalar_prefetch = 0 : i64, scratch_operands = 6 : i64, tpu.core_type = #tpu.core_type<tc>, window_params = [{transform_indices = @transform_0, window_bounds = array<i64: 1, 4, 4, 8>}, {pipeline_mode = #tpu.pipeline_mode<synchronous>, transform_indices = @transform_1, window_bounds = array<i64: 3, 24, 8>}, {pipeline_mode = #tpu.pipeline_mode<synchronous>, transform_indices = @transform_2, window_bounds = array<i64: 1, 8>}, {pipeline_mode = #tpu.pipeline_mode<synchronous>, transform_indices = @transform_3, window_bounds = array<i64: 1, 8>}, {transform_indices = @transform_4, window_bounds = array<i64: 1, 8, 8, 6>}, {pipeline_mode = #tpu.pipeline_mode<synchronous>, transform_indices = @transform_5, window_bounds = array<i64: 3, 18, 8>}, {pipeline_mode = #tpu.pipeline_mode<synchronous>, transform_indices = @transform_6, window_bounds = array<i64: 1, 8>}, {pipeline_mode = #tpu.pipeline_mode<synchronous>, transform_indices = @transform_7, window_bounds = array<i64: 1, 8>}, {transform_indices = @transform_8, window_bounds = array<i64: 1, 16, 16, 4>}, {pipeline_mode = #tpu.pipeline_mode<synchronous>, transform_indices = @transform_9, window_bounds = array<i64: 3, 12, 8>}, {pipeline_mode = #tpu.pipeline_mode<synchronous>, transform_indices = @transform_10, window_bounds = array<i64: 1, 8>}, {pipeline_mode = #tpu.pipeline_mode<synchronous>, transform_indices = @transform_11, window_bounds = array<i64: 1, 8>}, {transform_indices = @transform_12, window_bounds = array<i64: 1, 4, 4, 8>}, {transform_indices = @transform_13, window_bounds = array<i64: 1, 8, 8, 8>}, {transform_indices = @transform_14, window_bounds = array<i64: 1, 16, 16, 8>}]} {
    %c0 = arith.constant 0 : index
    %c0_0 = arith.constant 0 : index
    %c0_1 = arith.constant 0 : index
    %c0_2 = arith.constant 0 : index
    %0 = vector.load %arg1[%c0, %c0_0, %c0_1, %c0_2] : memref<1x4x4x8xf32, #tpu.memory_space<vmem>>, vector<1x4x4x8xf32>
    %1 = vector.shape_cast %0 : vector<1x4x4x8xf32> to vector<4x4x8xf32>
    %cst = arith.constant 0.000000e+00 : f32
    %2 = vector.broadcast %cst : f32 to vector<6x4x24xf32>
    %c0_3 = arith.constant 0 : index
    %c0_4 = arith.constant 0 : index
    %c0_5 = arith.constant 0 : index
    %3 = vector.load %arg16[%c0_3, %c0_4, %c0_5] : memref<6x4x24xf32, #tpu.memory_space<vmem>>, vector<6x4x24xf32>
    tpu.vector_store %arg16[%c0_3, %c0_4, %c0_5], %2 {strides = array<i32>} : memref<6x4x24xf32, #tpu.memory_space<vmem>>, vector<6x4x24xf32>,
    %4 = vector.extract_strided_slice %1 {offsets = [0, 0, 0], sizes = [4, 3, 8], strides = [1, 1, 1]} : vector<4x4x8xf32> to vector<4x3x8xf32>
    %c1 = arith.constant 1 : index
    %c1_6 = arith.constant 1 : index
    %c0_7 = arith.constant 0 : index
    %5 = vector.load %arg16[%c1, %c1_6, %c0_7] : memref<6x4x24xf32, #tpu.memory_space<vmem>>, vector<4x3x8xf32>
    tpu.vector_store %arg16[%c1, %c1_6, %c0_7], %4 {strides = array<i32>} : memref<6x4x24xf32, #tpu.memory_space<vmem>>, vector<4x3x8xf32>,
    %c1_8 = arith.constant 1 : index
    %c0_9 = arith.constant 0 : index
    %c8 = arith.constant 8 : index
    %6 = vector.load %arg16[%c1_8, %c0_9, %c8] : memref<6x4x24xf32, #tpu.memory_space<vmem>>, vector<4x4x8xf32>
    tpu.vector_store %arg16[%c1_8, %c0_9, %c8], %1 {strides = array<i32>} : memref<6x4x24xf32, #tpu.memory_space<vmem>>, vector<4x4x8xf32>,
    %7 = vector.extract_strided_slice %1 {offsets = [0, 1, 0], sizes = [4, 3, 8], strides = [1, 1, 1]} : vector<4x4x8xf32> to vector<4x3x8xf32>
    %c1_10 = arith.constant 1 : index
    %c0_11 = arith.constant 0 : index
    %c16 = arith.constant 16 : index
    %8 = vector.load %arg16[%c1_10, %c0_11, %c16] : memref<6x4x24xf32, #tpu.memory_space<vmem>>, vector<4x3x8xf32>
    tpu.vector_store %arg16[%c1_10, %c0_11, %c16], %7 {strides = array<i32>} : memref<6x4x24xf32, #tpu.memory_space<vmem>>, vector<4x3x8xf32>,
    %cst_12 = arith.constant 0.000000e+00 : f32
    %9 = vector.broadcast %cst_12 : f32 to vector<16x8xf32>
    %c0_13 = arith.constant 0 : index
    %c0_14 = arith.constant 0 : index
    %10 = vector.load %arg17[%c0_13, %c0_14] : memref<16x8xf32, #tpu.memory_space<vmem>>, vector<16x8xf32>
    tpu.vector_store %arg17[%c0_13, %c0_14], %9 {strides = array<i32>} : memref<16x8xf32, #tpu.memory_space<vmem>>, vector<16x8xf32>,
    %c0_15 = arith.constant 0 : index
    %c0_16 = arith.constant 0 : index
    %c0_17 = arith.constant 0 : index
    %11 = vector.load %arg16[%c0_15, %c0_16, %c0_17] : memref<6x4x24xf32, #tpu.memory_space<vmem>>, vector<4x4x24xf32>
    %12 = vector.shape_cast %11 : vector<4x4x24xf32> to vector<16x24xf32>
    %c0_18 = arith.constant 0 : index
    %c0_19 = arith.constant 0 : index
    %13 = vector.load %arg17[%c0_18, %c0_19] : memref<16x8xf32, #tpu.memory_space<vmem>>, vector<16x8xf32>
    %c0_20 = arith.constant 0 : index
    %c0_21 = arith.constant 0 : index
    %c0_22 = arith.constant 0 : index
    %14 = vector.load %arg2[%c0_20, %c0_21, %c0_22] : memref<3x24x8xf32, #tpu.memory_space<vmem>>, vector<1x24x8xf32>
    %15 = vector.shape_cast %14 : vector<1x24x8xf32> to vector<24x8xf32>
    %cst_23 = arith.constant dense<0.000000e+00> : vector<16x8xf32>
    %16 = tpu.matmul %12, %15, %cst_23 {dimension_numbers = #tpu.dot_dimension_numbers<[1], [0], [0], [1], [0, 0, 1, 1], [], []>} : vector<16x24xf32>, vector<24x8xf32>, vector<16x8xf32> -> vector<16x8xf32>
    %17 = arith.addf %13, %16 : vector<16x8xf32>
    %c0_24 = arith.constant 0 : index
    %c0_25 = arith.constant 0 : index
    %18 = vector.load %arg17[%c0_24, %c0_25] : memref<16x8xf32, #tpu.memory_space<vmem>>, vector<16x8xf32>
    tpu.vector_store %arg17[%c0_24, %c0_25], %17 {strides = array<i32>} : memref<16x8xf32, #tpu.memory_space<vmem>>, vector<16x8xf32>,
    %c1_26 = arith.constant 1 : index
    %c0_27 = arith.constant 0 : index
    %c0_28 = arith.constant 0 : index
    %19 = vector.load %arg16[%c1_26, %c0_27, %c0_28] : memref<6x4x24xf32, #tpu.memory_space<vmem>>, vector<4x4x24xf32>
    %20 = vector.shape_cast %19 : vector<4x4x24xf32> to vector<16x24xf32>
    %c0_29 = arith.constant 0 : index
    %c0_30 = arith.constant 0 : index
    %21 = vector.load %arg17[%c0_29, %c0_30] : memref<16x8xf32, #tpu.memory_space<vmem>>, vector<16x8xf32>
    %c1_31 = arith.constant 1 : index
    %c0_32 = arith.constant 0 : index
    %c0_33 = arith.constant 0 : index
    %22 = vector.load %arg2[%c1_31, %c0_32, %c0_33] : memref<3x24x8xf32, #tpu.memory_space<vmem>>, vector<1x24x8xf32>
    %23 = vector.shape_cast %22 : vector<1x24x8xf32> to vector<24x8xf32>
    %cst_34 = arith.constant dense<0.000000e+00> : vector<16x8xf32>
    %24 = tpu.matmul %20, %23, %cst_34 {dimension_numbers = #tpu.dot_dimension_numbers<[1], [0], [0], [1], [0, 0, 1, 1], [], []>} : vector<16x24xf32>, vector<24x8xf32>, vector<16x8xf32> -> vector<16x8xf32>
    %25 = arith.addf %21, %24 : vector<16x8xf32>
    %c0_35 = arith.constant 0 : index
    %c0_36 = arith.constant 0 : index
    %26 = vector.load %arg17[%c0_35, %c0_36] : memref<16x8xf32, #tpu.memory_space<vmem>>, vector<16x8xf32>
    tpu.vector_store %arg17[%c0_35, %c0_36], %25 {strides = array<i32>} : memref<16x8xf32, #tpu.memory_space<vmem>>, vector<16x8xf32>,
    %c2 = arith.constant 2 : index
    %c0_37 = arith.constant 0 : index
    %c0_38 = arith.constant 0 : index
    %27 = vector.load %arg16[%c2, %c0_37, %c0_38] : memref<6x4x24xf32, #tpu.memory_space<vmem>>, vector<4x4x24xf32>
    %28 = vector.shape_cast %27 : vector<4x4x24xf32> to vector<16x24xf32>
    %c0_39 = arith.constant 0 : index
    %c0_40 = arith.constant 0 : index
    %29 = vector.load %arg17[%c0_39, %c0_40] : memref<16x8xf32, #tpu.memory_space<vmem>>, vector<16x8xf32>
    %c2_41 = arith.constant 2 : index
    %c0_42 = arith.constant 0 : index
    %c0_43 = arith.constant 0 : index
    %30 = vector.load %arg2[%c2_41, %c0_42, %c0_43] : memref<3x24x8xf32, #tpu.memory_space<vmem>>, vector<1x24x8xf32>
    %31 = vector.shape_cast %30 : vector<1x24x8xf32> to vector<24x8xf32>
    %cst_44 = arith.constant dense<0.000000e+00> : vector<16x8xf32>
    %32 = tpu.matmul %28, %31, %cst_44 {dimension_numbers = #tpu.dot_dimension_numbers<[1], [0], [0], [1], [0, 0, 1, 1], [], []>} : vector<16x24xf32>, vector<24x8xf32>, vector<16x8xf32> -> vector<16x8xf32>
    %33 = arith.addf %29, %32 : vector<16x8xf32>
    %c0_45 = arith.constant 0 : index
    %c0_46 = arith.constant 0 : index
    %34 = vector.load %arg17[%c0_45, %c0_46] : memref<16x8xf32, #tpu.memory_space<vmem>>, vector<16x8xf32>
    tpu.vector_store %arg17[%c0_45, %c0_46], %33 {strides = array<i32>} : memref<16x8xf32, #tpu.memory_space<vmem>>, vector<16x8xf32>,
    %c0_47 = arith.constant 0 : index
    %c0_48 = arith.constant 0 : index
    %35 = vector.load %arg17[%c0_47, %c0_48] : memref<16x8xf32, #tpu.memory_space<vmem>>, vector<16x8xf32>
    %c0_49 = arith.constant 0 : index
    %c0_50 = arith.constant 0 : index
    %36 = vector.load %arg3[%c0_49, %c0_50] : memref<1x8xf32, #tpu.memory_space<vmem>>, vector<1x8xf32>
    %37 = vector.broadcast %36 : vector<1x8xf32> to vector<16x8xf32>
    %38 = arith.mulf %35, %37 : vector<16x8xf32>
    %c0_51 = arith.constant 0 : index
    %c0_52 = arith.constant 0 : index
    %39 = vector.load %arg4[%c0_51, %c0_52] : memref<1x8xf32, #tpu.memory_space<vmem>>, vector<1x8xf32>
    %40 = vector.broadcast %39 : vector<1x8xf32> to vector<16x8xf32>
    %41 = arith.addf %38, %40 : vector<16x8xf32>
    %cst_53 = arith.constant 0.000000e+00 : f32
    %42 = vector.broadcast %cst_53 : f32 to vector<16x8xf32>
    %43 = arith.maximumf %41, %42 : vector<16x8xf32>
    %44 = vector.shape_cast %43 : vector<16x8xf32> to vector<4x4x8xf32>
    %c0_54 = arith.constant 0 : index
    %c0_55 = arith.constant 0 : index
    %c0_56 = arith.constant 0 : index
    %c0_57 = arith.constant 0 : index
    %45 = vector.load %arg13[%c0_54, %c0_55, %c0_56, %c0_57] : memref<1x4x4x8xf32, #tpu.memory_space<vmem>>, vector<1x4x4x8xf32>
    %46 = vector.shape_cast %45 : vector<1x4x4x8xf32> to vector<4x4x8xf32>
    %47 = vector.shape_cast %44 : vector<4x4x8xf32> to vector<1x4x4x8xf32>
    tpu.vector_store %arg13[%c0_54, %c0_55, %c0_56, %c0_57], %47 {strides = array<i32>} : memref<1x4x4x8xf32, #tpu.memory_space<vmem>>, vector<1x4x4x8xf32>,
    %c0_58 = arith.constant 0 : index
    %c0_59 = arith.constant 0 : index
    %c0_60 = arith.constant 0 : index
    %c0_61 = arith.constant 0 : index
    %48 = vector.load %arg5[%c0_58, %c0_59, %c0_60, %c0_61] : memref<1x8x8x6xf32, #tpu.memory_space<vmem>>, vector<1x8x8x6xf32>
    %49 = vector.shape_cast %48 : vector<1x8x8x6xf32> to vector<8x8x6xf32>
    %cst_62 = arith.constant 0.000000e+00 : f32
    %50 = vector.broadcast %cst_62 : f32 to vector<10x8x18xf32>
    %c0_63 = arith.constant 0 : index
    %c0_64 = arith.constant 0 : index
    %c0_65 = arith.constant 0 : index
    %51 = vector.load %arg18[%c0_63, %c0_64, %c0_65] : memref<10x8x18xf32, #tpu.memory_space<vmem>>, vector<10x8x18xf32>
    tpu.vector_store %arg18[%c0_63, %c0_64, %c0_65], %50 {strides = array<i32>} : memref<10x8x18xf32, #tpu.memory_space<vmem>>, vector<10x8x18xf32>,
    %52 = vector.extract_strided_slice %49 {offsets = [0, 0, 0], sizes = [8, 7, 6], strides = [1, 1, 1]} : vector<8x8x6xf32> to vector<8x7x6xf32>
    %c1_66 = arith.constant 1 : index
    %c1_67 = arith.constant 1 : index
    %c0_68 = arith.constant 0 : index
    %53 = vector.load %arg18[%c1_66, %c1_67, %c0_68] : memref<10x8x18xf32, #tpu.memory_space<vmem>>, vector<8x7x6xf32>
    tpu.vector_store %arg18[%c1_66, %c1_67, %c0_68], %52 {strides = array<i32>} : memref<10x8x18xf32, #tpu.memory_space<vmem>>, vector<8x7x6xf32>,
    %c1_69 = arith.constant 1 : index
    %c0_70 = arith.constant 0 : index
    %c6 = arith.constant 6 : index
    %54 = vector.load %arg18[%c1_69, %c0_70, %c6] : memref<10x8x18xf32, #tpu.memory_space<vmem>>, vector<8x8x6xf32>
    tpu.vector_store %arg18[%c1_69, %c0_70, %c6], %49 {strides = array<i32>} : memref<10x8x18xf32, #tpu.memory_space<vmem>>, vector<8x8x6xf32>,
    %55 = vector.extract_strided_slice %49 {offsets = [0, 1, 0], sizes = [8, 7, 6], strides = [1, 1, 1]} : vector<8x8x6xf32> to vector<8x7x6xf32>
    %c1_71 = arith.constant 1 : index
    %c0_72 = arith.constant 0 : index
    %c12 = arith.constant 12 : index
    %56 = vector.load %arg18[%c1_71, %c0_72, %c12] : memref<10x8x18xf32, #tpu.memory_space<vmem>>, vector<8x7x6xf32>
    tpu.vector_store %arg18[%c1_71, %c0_72, %c12], %55 {strides = array<i32>} : memref<10x8x18xf32, #tpu.memory_space<vmem>>, vector<8x7x6xf32>,
    %cst_73 = arith.constant 0.000000e+00 : f32
    %57 = vector.broadcast %cst_73 : f32 to vector<64x8xf32>
    %c0_74 = arith.constant 0 : index
    %c0_75 = arith.constant 0 : index
    %58 = vector.load %arg19[%c0_74, %c0_75] : memref<64x8xf32, #tpu.memory_space<vmem>>, vector<64x8xf32>
    tpu.vector_store %arg19[%c0_74, %c0_75], %57 {strides = array<i32>} : memref<64x8xf32, #tpu.memory_space<vmem>>, vector<64x8xf32>,
    %c0_76 = arith.constant 0 : index
    %c0_77 = arith.constant 0 : index
    %c0_78 = arith.constant 0 : index
    %59 = vector.load %arg18[%c0_76, %c0_77, %c0_78] : memref<10x8x18xf32, #tpu.memory_space<vmem>>, vector<8x8x18xf32>
    %60 = vector.shape_cast %59 : vector<8x8x18xf32> to vector<64x18xf32>
    %c0_79 = arith.constant 0 : index
    %c0_80 = arith.constant 0 : index
    %61 = vector.load %arg19[%c0_79, %c0_80] : memref<64x8xf32, #tpu.memory_space<vmem>>, vector<64x8xf32>
    %c0_81 = arith.constant 0 : index
    %c0_82 = arith.constant 0 : index
    %c0_83 = arith.constant 0 : index
    %62 = vector.load %arg6[%c0_81, %c0_82, %c0_83] : memref<3x18x8xf32, #tpu.memory_space<vmem>>, vector<1x18x8xf32>
    %63 = vector.shape_cast %62 : vector<1x18x8xf32> to vector<18x8xf32>
    %cst_84 = arith.constant dense<0.000000e+00> : vector<64x8xf32>
    %64 = tpu.matmul %60, %63, %cst_84 {dimension_numbers = #tpu.dot_dimension_numbers<[1], [0], [0], [1], [0, 0, 1, 1], [], []>} : vector<64x18xf32>, vector<18x8xf32>, vector<64x8xf32> -> vector<64x8xf32>
    %65 = arith.addf %61, %64 : vector<64x8xf32>
    %c0_85 = arith.constant 0 : index
    %c0_86 = arith.constant 0 : index
    %66 = vector.load %arg19[%c0_85, %c0_86] : memref<64x8xf32, #tpu.memory_space<vmem>>, vector<64x8xf32>
    tpu.vector_store %arg19[%c0_85, %c0_86], %65 {strides = array<i32>} : memref<64x8xf32, #tpu.memory_space<vmem>>, vector<64x8xf32>,
    %c1_87 = arith.constant 1 : index
    %c0_88 = arith.constant 0 : index
    %c0_89 = arith.constant 0 : index
    %67 = vector.load %arg18[%c1_87, %c0_88, %c0_89] : memref<10x8x18xf32, #tpu.memory_space<vmem>>, vector<8x8x18xf32>
    %68 = vector.shape_cast %67 : vector<8x8x18xf32> to vector<64x18xf32>
    %c0_90 = arith.constant 0 : index
    %c0_91 = arith.constant 0 : index
    %69 = vector.load %arg19[%c0_90, %c0_91] : memref<64x8xf32, #tpu.memory_space<vmem>>, vector<64x8xf32>
    %c1_92 = arith.constant 1 : index
    %c0_93 = arith.constant 0 : index
    %c0_94 = arith.constant 0 : index
    %70 = vector.load %arg6[%c1_92, %c0_93, %c0_94] : memref<3x18x8xf32, #tpu.memory_space<vmem>>, vector<1x18x8xf32>
    %71 = vector.shape_cast %70 : vector<1x18x8xf32> to vector<18x8xf32>
    %cst_95 = arith.constant dense<0.000000e+00> : vector<64x8xf32>
    %72 = tpu.matmul %68, %71, %cst_95 {dimension_numbers = #tpu.dot_dimension_numbers<[1], [0], [0], [1], [0, 0, 1, 1], [], []>} : vector<64x18xf32>, vector<18x8xf32>, vector<64x8xf32> -> vector<64x8xf32>
    %73 = arith.addf %69, %72 : vector<64x8xf32>
    %c0_96 = arith.constant 0 : index
    %c0_97 = arith.constant 0 : index
    %74 = vector.load %arg19[%c0_96, %c0_97] : memref<64x8xf32, #tpu.memory_space<vmem>>, vector<64x8xf32>
    tpu.vector_store %arg19[%c0_96, %c0_97], %73 {strides = array<i32>} : memref<64x8xf32, #tpu.memory_space<vmem>>, vector<64x8xf32>,
    %c2_98 = arith.constant 2 : index
    %c0_99 = arith.constant 0 : index
    %c0_100 = arith.constant 0 : index
    %75 = vector.load %arg18[%c2_98, %c0_99, %c0_100] : memref<10x8x18xf32, #tpu.memory_space<vmem>>, vector<8x8x18xf32>
    %76 = vector.shape_cast %75 : vector<8x8x18xf32> to vector<64x18xf32>
    %c0_101 = arith.constant 0 : index
    %c0_102 = arith.constant 0 : index
    %77 = vector.load %arg19[%c0_101, %c0_102] : memref<64x8xf32, #tpu.memory_space<vmem>>, vector<64x8xf32>
    %c2_103 = arith.constant 2 : index
    %c0_104 = arith.constant 0 : index
    %c0_105 = arith.constant 0 : index
    %78 = vector.load %arg6[%c2_103, %c0_104, %c0_105] : memref<3x18x8xf32, #tpu.memory_space<vmem>>, vector<1x18x8xf32>
    %79 = vector.shape_cast %78 : vector<1x18x8xf32> to vector<18x8xf32>
    %cst_106 = arith.constant dense<0.000000e+00> : vector<64x8xf32>
    %80 = tpu.matmul %76, %79, %cst_106 {dimension_numbers = #tpu.dot_dimension_numbers<[1], [0], [0], [1], [0, 0, 1, 1], [], []>} : vector<64x18xf32>, vector<18x8xf32>, vector<64x8xf32> -> vector<64x8xf32>
    %81 = arith.addf %77, %80 : vector<64x8xf32>
    %c0_107 = arith.constant 0 : index
    %c0_108 = arith.constant 0 : index
    %82 = vector.load %arg19[%c0_107, %c0_108] : memref<64x8xf32, #tpu.memory_space<vmem>>, vector<64x8xf32>
    tpu.vector_store %arg19[%c0_107, %c0_108], %81 {strides = array<i32>} : memref<64x8xf32, #tpu.memory_space<vmem>>, vector<64x8xf32>,
    %c0_109 = arith.constant 0 : index
    %c0_110 = arith.constant 0 : index
    %83 = vector.load %arg19[%c0_109, %c0_110] : memref<64x8xf32, #tpu.memory_space<vmem>>, vector<64x8xf32>
    %c0_111 = arith.constant 0 : index
    %c0_112 = arith.constant 0 : index
    %84 = vector.load %arg7[%c0_111, %c0_112] : memref<1x8xf32, #tpu.memory_space<vmem>>, vector<1x8xf32>
    %85 = vector.broadcast %84 : vector<1x8xf32> to vector<64x8xf32>
    %86 = arith.mulf %83, %85 : vector<64x8xf32>
    %c0_113 = arith.constant 0 : index
    %c0_114 = arith.constant 0 : index
    %87 = vector.load %arg8[%c0_113, %c0_114] : memref<1x8xf32, #tpu.memory_space<vmem>>, vector<1x8xf32>
    %88 = vector.broadcast %87 : vector<1x8xf32> to vector<64x8xf32>
    %89 = arith.addf %86, %88 : vector<64x8xf32>
    %cst_115 = arith.constant 0.000000e+00 : f32
    %90 = vector.broadcast %cst_115 : f32 to vector<64x8xf32>
    %91 = arith.maximumf %89, %90 : vector<64x8xf32>
    %92 = vector.shape_cast %91 : vector<64x8xf32> to vector<8x8x8xf32>
    %c0_116 = arith.constant 0 : index
    %c0_117 = arith.constant 0 : index
    %c0_118 = arith.constant 0 : index
    %c0_119 = arith.constant 0 : index
    %93 = vector.load %arg14[%c0_116, %c0_117, %c0_118, %c0_119] : memref<1x8x8x8xf32, #tpu.memory_space<vmem>>, vector<1x8x8x8xf32>
    %94 = vector.shape_cast %93 : vector<1x8x8x8xf32> to vector<8x8x8xf32>
    %95 = vector.shape_cast %92 : vector<8x8x8xf32> to vector<1x8x8x8xf32>
    tpu.vector_store %arg14[%c0_116, %c0_117, %c0_118, %c0_119], %95 {strides = array<i32>} : memref<1x8x8x8xf32, #tpu.memory_space<vmem>>, vector<1x8x8x8xf32>,
    %c0_120 = arith.constant 0 : index
    %c0_121 = arith.constant 0 : index
    %c0_122 = arith.constant 0 : index
    %c0_123 = arith.constant 0 : index
    %96 = vector.load %arg9[%c0_120, %c0_121, %c0_122, %c0_123] : memref<1x16x16x4xf32, #tpu.memory_space<vmem>>, vector<1x16x16x4xf32>
    %97 = vector.shape_cast %96 : vector<1x16x16x4xf32> to vector<16x16x4xf32>
    %cst_124 = arith.constant 0.000000e+00 : f32
    %98 = vector.broadcast %cst_124 : f32 to vector<18x16x12xf32>
    %c0_125 = arith.constant 0 : index
    %c0_126 = arith.constant 0 : index
    %c0_127 = arith.constant 0 : index
    %99 = vector.load %arg20[%c0_125, %c0_126, %c0_127] : memref<18x16x12xf32, #tpu.memory_space<vmem>>, vector<18x16x12xf32>
    tpu.vector_store %arg20[%c0_125, %c0_126, %c0_127], %98 {strides = array<i32>} : memref<18x16x12xf32, #tpu.memory_space<vmem>>, vector<18x16x12xf32>,
    %100 = vector.extract_strided_slice %97 {offsets = [0, 0, 0], sizes = [16, 15, 4], strides = [1, 1, 1]} : vector<16x16x4xf32> to vector<16x15x4xf32>
    %c1_128 = arith.constant 1 : index
    %c1_129 = arith.constant 1 : index
    %c0_130 = arith.constant 0 : index
    %101 = vector.load %arg20[%c1_128, %c1_129, %c0_130] : memref<18x16x12xf32, #tpu.memory_space<vmem>>, vector<16x15x4xf32>
    tpu.vector_store %arg20[%c1_128, %c1_129, %c0_130], %100 {strides = array<i32>} : memref<18x16x12xf32, #tpu.memory_space<vmem>>, vector<16x15x4xf32>,
    %c1_131 = arith.constant 1 : index
    %c0_132 = arith.constant 0 : index
    %c4 = arith.constant 4 : index
    %102 = vector.load %arg20[%c1_131, %c0_132, %c4] : memref<18x16x12xf32, #tpu.memory_space<vmem>>, vector<16x16x4xf32>
    tpu.vector_store %arg20[%c1_131, %c0_132, %c4], %97 {strides = array<i32>} : memref<18x16x12xf32, #tpu.memory_space<vmem>>, vector<16x16x4xf32>,
    %103 = vector.extract_strided_slice %97 {offsets = [0, 1, 0], sizes = [16, 15, 4], strides = [1, 1, 1]} : vector<16x16x4xf32> to vector<16x15x4xf32>
    %c1_133 = arith.constant 1 : index
    %c0_134 = arith.constant 0 : index
    %c8_135 = arith.constant 8 : index
    %104 = vector.load %arg20[%c1_133, %c0_134, %c8_135] : memref<18x16x12xf32, #tpu.memory_space<vmem>>, vector<16x15x4xf32>
    tpu.vector_store %arg20[%c1_133, %c0_134, %c8_135], %103 {strides = array<i32>} : memref<18x16x12xf32, #tpu.memory_space<vmem>>, vector<16x15x4xf32>,
    %cst_136 = arith.constant 0.000000e+00 : f32
    %105 = vector.broadcast %cst_136 : f32 to vector<256x8xf32>
    %c0_137 = arith.constant 0 : index
    %c0_138 = arith.constant 0 : index
    %106 = vector.load %arg21[%c0_137, %c0_138] : memref<256x8xf32, #tpu.memory_space<vmem>>, vector<256x8xf32>
    tpu.vector_store %arg21[%c0_137, %c0_138], %105 {strides = array<i32>} : memref<256x8xf32, #tpu.memory_space<vmem>>, vector<256x8xf32>,
    %c0_139 = arith.constant 0 : index
    %c0_140 = arith.constant 0 : index
    %c0_141 = arith.constant 0 : index
    %107 = vector.load %arg20[%c0_139, %c0_140, %c0_141] : memref<18x16x12xf32, #tpu.memory_space<vmem>>, vector<16x16x12xf32>
    %108 = vector.shape_cast %107 : vector<16x16x12xf32> to vector<256x12xf32>
    %c0_142 = arith.constant 0 : index
    %c0_143 = arith.constant 0 : index
    %109 = vector.load %arg21[%c0_142, %c0_143] : memref<256x8xf32, #tpu.memory_space<vmem>>, vector<256x8xf32>
    %c0_144 = arith.constant 0 : index
    %c0_145 = arith.constant 0 : index
    %c0_146 = arith.constant 0 : index
    %110 = vector.load %arg10[%c0_144, %c0_145, %c0_146] : memref<3x12x8xf32, #tpu.memory_space<vmem>>, vector<1x12x8xf32>
    %111 = vector.shape_cast %110 : vector<1x12x8xf32> to vector<12x8xf32>
    %cst_147 = arith.constant dense<0.000000e+00> : vector<256x8xf32>
    %112 = tpu.matmul %108, %111, %cst_147 {dimension_numbers = #tpu.dot_dimension_numbers<[1], [0], [0], [1], [0, 0, 1, 1], [], []>} : vector<256x12xf32>, vector<12x8xf32>, vector<256x8xf32> -> vector<256x8xf32>
    %113 = arith.addf %109, %112 : vector<256x8xf32>
    %c0_148 = arith.constant 0 : index
    %c0_149 = arith.constant 0 : index
    %114 = vector.load %arg21[%c0_148, %c0_149] : memref<256x8xf32, #tpu.memory_space<vmem>>, vector<256x8xf32>
    tpu.vector_store %arg21[%c0_148, %c0_149], %113 {strides = array<i32>} : memref<256x8xf32, #tpu.memory_space<vmem>>, vector<256x8xf32>,
    %c1_150 = arith.constant 1 : index
    %c0_151 = arith.constant 0 : index
    %c0_152 = arith.constant 0 : index
    %115 = vector.load %arg20[%c1_150, %c0_151, %c0_152] : memref<18x16x12xf32, #tpu.memory_space<vmem>>, vector<16x16x12xf32>
    %116 = vector.shape_cast %115 : vector<16x16x12xf32> to vector<256x12xf32>
    %c0_153 = arith.constant 0 : index
    %c0_154 = arith.constant 0 : index
    %117 = vector.load %arg21[%c0_153, %c0_154] : memref<256x8xf32, #tpu.memory_space<vmem>>, vector<256x8xf32>
    %c1_155 = arith.constant 1 : index
    %c0_156 = arith.constant 0 : index
    %c0_157 = arith.constant 0 : index
    %118 = vector.load %arg10[%c1_155, %c0_156, %c0_157] : memref<3x12x8xf32, #tpu.memory_space<vmem>>, vector<1x12x8xf32>
    %119 = vector.shape_cast %118 : vector<1x12x8xf32> to vector<12x8xf32>
    %cst_158 = arith.constant dense<0.000000e+00> : vector<256x8xf32>
    %120 = tpu.matmul %116, %119, %cst_158 {dimension_numbers = #tpu.dot_dimension_numbers<[1], [0], [0], [1], [0, 0, 1, 1], [], []>} : vector<256x12xf32>, vector<12x8xf32>, vector<256x8xf32> -> vector<256x8xf32>
    %121 = arith.addf %117, %120 : vector<256x8xf32>
    %c0_159 = arith.constant 0 : index
    %c0_160 = arith.constant 0 : index
    %122 = vector.load %arg21[%c0_159, %c0_160] : memref<256x8xf32, #tpu.memory_space<vmem>>, vector<256x8xf32>
    tpu.vector_store %arg21[%c0_159, %c0_160], %121 {strides = array<i32>} : memref<256x8xf32, #tpu.memory_space<vmem>>, vector<256x8xf32>,
    %c2_161 = arith.constant 2 : index
    %c0_162 = arith.constant 0 : index
    %c0_163 = arith.constant 0 : index
    %123 = vector.load %arg20[%c2_161, %c0_162, %c0_163] : memref<18x16x12xf32, #tpu.memory_space<vmem>>, vector<16x16x12xf32>
    %124 = vector.shape_cast %123 : vector<16x16x12xf32> to vector<256x12xf32>
    %c0_164 = arith.constant 0 : index
    %c0_165 = arith.constant 0 : index
    %125 = vector.load %arg21[%c0_164, %c0_165] : memref<256x8xf32, #tpu.memory_space<vmem>>, vector<256x8xf32>
    %c2_166 = arith.constant 2 : index
    %c0_167 = arith.constant 0 : index
    %c0_168 = arith.constant 0 : index
    %126 = vector.load %arg10[%c2_166, %c0_167, %c0_168] : memref<3x12x8xf32, #tpu.memory_space<vmem>>, vector<1x12x8xf32>
    %127 = vector.shape_cast %126 : vector<1x12x8xf32> to vector<12x8xf32>
    %cst_169 = arith.constant dense<0.000000e+00> : vector<256x8xf32>
    %128 = tpu.matmul %124, %127, %cst_169 {dimension_numbers = #tpu.dot_dimension_numbers<[1], [0], [0], [1], [0, 0, 1, 1], [], []>} : vector<256x12xf32>, vector<12x8xf32>, vector<256x8xf32> -> vector<256x8xf32>
    %129 = arith.addf %125, %128 : vector<256x8xf32>
    %c0_170 = arith.constant 0 : index
    %c0_171 = arith.constant 0 : index
    %130 = vector.load %arg21[%c0_170, %c0_171] : memref<256x8xf32, #tpu.memory_space<vmem>>, vector<256x8xf32>
    tpu.vector_store %arg21[%c0_170, %c0_171], %129 {strides = array<i32>} : memref<256x8xf32, #tpu.memory_space<vmem>>, vector<256x8xf32>,
    %c0_172 = arith.constant 0 : index
    %c0_173 = arith.constant 0 : index
    %131 = vector.load %arg21[%c0_172, %c0_173] : memref<256x8xf32, #tpu.memory_space<vmem>>, vector<256x8xf32>
    %c0_174 = arith.constant 0 : index
    %c0_175 = arith.constant 0 : index
    %132 = vector.load %arg11[%c0_174, %c0_175] : memref<1x8xf32, #tpu.memory_space<vmem>>, vector<1x8xf32>
    %133 = vector.broadcast %132 : vector<1x8xf32> to vector<256x8xf32>
    %134 = arith.mulf %131, %133 : vector<256x8xf32>
    %c0_176 = arith.constant 0 : index
    %c0_177 = arith.constant 0 : index
    %135 = vector.load %arg12[%c0_176, %c0_177] : memref<1x8xf32, #tpu.memory_space<vmem>>, vector<1x8xf32>
    %136 = vector.broadcast %135 : vector<1x8xf32> to vector<256x8xf32>
    %137 = arith.addf %134, %136 : vector<256x8xf32>
    %cst_178 = arith.constant 0.000000e+00 : f32
    %138 = vector.broadcast %cst_178 : f32 to vector<256x8xf32>
    %139 = arith.maximumf %137, %138 : vector<256x8xf32>
    %140 = vector.shape_cast %139 : vector<256x8xf32> to vector<16x16x8xf32>
    %c0_179 = arith.constant 0 : index
    %c0_180 = arith.constant 0 : index
    %c0_181 = arith.constant 0 : index
    %c0_182 = arith.constant 0 : index
    %141 = vector.load %arg15[%c0_179, %c0_180, %c0_181, %c0_182] : memref<1x16x16x8xf32, #tpu.memory_space<vmem>>, vector<1x16x16x8xf32>
    %142 = vector.shape_cast %141 : vector<1x16x16x8xf32> to vector<16x16x8xf32>
    %143 = vector.shape_cast %140 : vector<16x16x8xf32> to vector<1x16x16x8xf32>
    tpu.vector_store %arg15[%c0_179, %c0_180, %c0_181, %c0_182], %143 {strides = array<i32>} : memref<1x16x16x8xf32, #tpu.memory_space<vmem>>, vector<1x16x16x8xf32>,
    return
  }
  func.func @transform_0(%arg0: i32) -> (i32, i32, i32, i32) {
    %c0_i32 = arith.constant 0 : i32
    %c0_i32_0 = arith.constant 0 : i32
    %c0_i32_1 = arith.constant 0 : i32
    %c0_i32_2 = arith.constant 0 : i32
    return %arg0, %c0_i32, %c0_i32_0, %c0_i32_1 : i32, i32, i32, i32
  }
  func.func @transform_1(%arg0: i32) -> (i32, i32, i32) {
    %c0_i32 = arith.constant 0 : i32
    %c0_i32_0 = arith.constant 0 : i32
    %c0_i32_1 = arith.constant 0 : i32
    %c0_i32_2 = arith.constant 0 : i32
    return %c0_i32, %c0_i32_0, %c0_i32_1 : i32, i32, i32
  }
  func.func @transform_2(%arg0: i32) -> (i32, i32) {
    %c0_i32 = arith.constant 0 : i32
    %c0_i32_0 = arith.constant 0 : i32
    %c0_i32_1 = arith.constant 0 : i32
    return %c0_i32, %c0_i32_0 : i32, i32
  }
  func.func @transform_3(%arg0: i32) -> (i32, i32) {
    %c0_i32 = arith.constant 0 : i32
    %c0_i32_0 = arith.constant 0 : i32
    %c0_i32_1 = arith.constant 0 : i32
    return %c0_i32, %c0_i32_0 : i32, i32
  }
  func.func @transform_4(%arg0: i32) -> (i32, i32, i32, i32) {
    %c0_i32 = arith.constant 0 : i32
    %c0_i32_0 = arith.constant 0 : i32
    %c0_i32_1 = arith.constant 0 : i32
    %c0_i32_2 = arith.constant 0 : i32
    return %arg0, %c0_i32, %c0_i32_0, %c0_i32_1 : i32, i32, i32, i32
  }
  func.func @transform_5(%arg0: i32) -> (i32, i32, i32) {
    %c0_i32 = arith.constant 0 : i32
    %c0_i32_0 = arith.constant 0 : i32
    %c0_i32_1 = arith.constant 0 : i32
    %c0_i32_2 = arith.constant 0 : i32
    return %c0_i32, %c0_i32_0, %c0_i32_1 : i32, i32, i32
  }
  func.func @transform_6(%arg0: i32) -> (i32, i32) {
    %c0_i32 = arith.constant 0 : i32
    %c0_i32_0 = arith.constant 0 : i32
    %c0_i32_1 = arith.constant 0 : i32
    return %c0_i32, %c0_i32_0 : i32, i32
  }
  func.func @transform_7(%arg0: i32) -> (i32, i32) {
    %c0_i32 = arith.constant 0 : i32
    %c0_i32_0 = arith.constant 0 : i32
    %c0_i32_1 = arith.constant 0 : i32
    return %c0_i32, %c0_i32_0 : i32, i32
  }
  func.func @transform_8(%arg0: i32) -> (i32, i32, i32, i32) {
    %c0_i32 = arith.constant 0 : i32
    %c0_i32_0 = arith.constant 0 : i32
    %c0_i32_1 = arith.constant 0 : i32
    %c0_i32_2 = arith.constant 0 : i32
    return %arg0, %c0_i32, %c0_i32_0, %c0_i32_1 : i32, i32, i32, i32
  }
  func.func @transform_9(%arg0: i32) -> (i32, i32, i32) {
    %c0_i32 = arith.constant 0 : i32
    %c0_i32_0 = arith.constant 0 : i32
    %c0_i32_1 = arith.constant 0 : i32
    %c0_i32_2 = arith.constant 0 : i32
    return %c0_i32, %c0_i32_0, %c0_i32_1 : i32, i32, i32
  }
  func.func @transform_10(%arg0: i32) -> (i32, i32) {
    %c0_i32 = arith.constant 0 : i32
    %c0_i32_0 = arith.constant 0 : i32
    %c0_i32_1 = arith.constant 0 : i32
    return %c0_i32, %c0_i32_0 : i32, i32
  }
  func.func @transform_11(%arg0: i32) -> (i32, i32) {
    %c0_i32 = arith.constant 0 : i32
    %c0_i32_0 = arith.constant 0 : i32
    %c0_i32_1 = arith.constant 0 : i32
    return %c0_i32, %c0_i32_0 : i32, i32
  }
  func.func @transform_12(%arg0: i32) -> (i32, i32, i32, i32) {
    %c0_i32 = arith.constant 0 : i32
    %c0_i32_0 = arith.constant 0 : i32
    %c0_i32_1 = arith.constant 0 : i32
    %c0_i32_2 = arith.constant 0 : i32
    return %arg0, %c0_i32, %c0_i32_0, %c0_i32_1 : i32, i32, i32, i32
  }
  func.func @transform_13(%arg0: i32) -> (i32, i32, i32, i32) {
    %c0_i32 = arith.constant 0 : i32
    %c0_i32_0 = arith.constant 0 : i32
    %c0_i32_1 = arith.constant 0 : i32
    %c0_i32_2 = arith.constant 0 : i32
    return %arg0, %c0_i32, %c0_i32_0, %c0_i32_1 : i32, i32, i32, i32
  }
  func.func @transform_14(%arg0: i32) -> (i32, i32, i32, i32) {
    %c0_i32 = arith.constant 0 : i32
    %c0_i32_0 = arith.constant 0 : i32
    %c0_i32_1 = arith.constant 0 : i32
    %c0_i32_2 = arith.constant 0 : i32
    return %arg0, %c0_i32, %c0_i32_0, %c0_i32_1 : i32, i32, i32, i32
  }
}

</mosaic_0001>

<llo_original>
// kernel: tpu_custom_call.1
$region0: #{tpu_custom_call.1}
  #allocation0 [shape = 'u32[]', space=smem, size = 0x4, offset = 0x4, fixed_abs, tag = 'smem constant byte address 0x4 - core index']
  #allocation1 [shape = 'u32[144,128]{1,0:T(1,128)}', space=vmem, size = 0x12000, scoped, tag = 'internal scratch']
  #allocation2 [shape = 'f32[6,4,24]{2,1,0:T(4,128)}', space=vmem, size = 0x3000, scoped, tag = 'scratch operand']
  #allocation3 [shape = 'f32[16,8]{1,0:T(8,128)}', space=vmem, size = 0x2000, scoped, tag = 'scratch operand']
  #allocation4 [shape = 'f32[10,8,18]{2,1,0:T(8,128)}', space=vmem, size = 0xa000, scoped, tag = 'scratch operand']
  #allocation5 [shape = 'f32[64,8]{1,0:T(8,128)}', space=vmem, size = 0x8000, scoped, tag = 'scratch operand']
  #allocation6 [shape = 'f32[18,16,12]{2,1,0:T(8,128)}', space=vmem, size = 0x24000, scoped, tag = 'scratch operand']
  #allocation7 [shape = 'f32[256,8]{1,0:T(8,128)}', space=vmem, size = 0x20000, scoped, tag = 'scratch operand']
  %s0 = inlined_call_operand.vmem [shape: f32[2,4,4,8], index: 0, kind: input, shape index: {}]
  %s1 = inlined_call_operand.vmem [shape: f32[3,24,8], index: 1, kind: input, shape index: {}]
  %s2 = inlined_call_operand.vmem [shape: f32[1,8], index: 2, kind: input, shape index: {}]
  %s3 = inlined_call_operand.vmem [shape: f32[1,8], index: 3, kind: input, shape index: {}]
  %s4 = inlined_call_operand.vmem [shape: f32[2,8,8,6], index: 4, kind: input, shape index: {}]
  %s5 = inlined_call_operand.vmem [shape: f32[3,18,8], index: 5, kind: input, shape index: {}]
  %s6 = inlined_call_operand.vmem [shape: f32[1,8], index: 6, kind: input, shape index: {}]
  %s7 = inlined_call_operand.vmem [shape: f32[1,8], index: 7, kind: input, shape index: {}]
  %s8 = inlined_call_operand.vmem [shape: f32[2,16,16,4], index: 8, kind: input, shape index: {}]
  %s9 = inlined_call_operand.vmem [shape: f32[3,12,8], index: 9, kind: input, shape index: {}]
  %s10 = inlined_call_operand.vmem [shape: f32[1,8], index: 10, kind: input, shape index: {}]
  %s11 = inlined_call_operand.vmem [shape: f32[1,8], index: 11, kind: input, shape index: {}]
  %s12 = inlined_call_operand.hbm [shape: f32[2,4,4,8], index: 12, kind: output, shape index: {0}]
  %s13 = inlined_call_operand.hbm [shape: f32[2,8,8,8], index: 13, kind: output, shape index: {1}]
  %s14 = inlined_call_operand.vmem [shape: f32[2,16,16,8], index: 14, kind: output, shape index: {2}]
  %15 = xla_tuple %s12, %s13, %s14
  %s16 = sld [smem:[#allocation0]]
  $region97: #{tpu_custom_call.1} parent=0
    _
  %s18 = ssub.s32 1, %s16
  %s19 = scalar_select 0, %s18, %s16
  $region1: #{tpu_custom_call.1} parent=0
    #allocation8 [shape = 'u8[16384]{0}', space=vmem, size = 0x4000, scoped, tag = 'output window, operand 0']
    #allocation9 [shape = 's32[2]{0}', space=sflag, size = 0x8, scoped, tag = 'scoped memory for tpu_custom_call.1']
    #allocation10 [shape = 'u8[65536]{0}', space=vmem, size = 0x10000, scoped, tag = 'output window, operand 1']
    #allocation11 [shape = 's32[2]{0}', space=sflag, size = 0x8, scoped, tag = 'scoped memory for tpu_custom_call.1']
    %20 = vsyncpa [#allocation9], 0
    %s21 = scalar_lea.sflag [#allocation9], 1
    %22 = vsyncpa %s21, 0
    %23 = vsyncpa [#allocation11], 0
    %s24 = scalar_lea.sflag [#allocation11], 1
    %25 = vsyncpa %s24, 0
    loop: start=0, step=1, limit=4
    $region2: #{tpu_custom_call.1} parent=1 // loop_pre_header
      _
    $region3: #{tpu_custom_call.1} parent=1 // loop_header
      %s27 = sphi 0, %s31
      %p28 = scmp.ge.s32.totalorder %s27, 4
      %s37 = sphi 0, %s39
      %s40 = sphi 0, %s37
      %s41 = sphi 0, %s40
      %s57 = sphi 0, %s41
      %s61 = sphi 0, %s61
      %s63 = sphi 0, %s61
      %s64 = sphi 0, %s63
      %s78 = sphi 0, %s64
      %s82 = sphi 0, %s82
      %s84 = sphi 0, %s82
      %s85 = sphi 0, %s84
      %s99 = sphi 0, %s85
      %s103 = sphi 0, %s103
      %s105 = sphi 0, %s103
      %s106 = sphi 0, %s105
      %s120 = sphi 0, %s106
      %s126 = sphi 0, %s128
      %s129 = sphi 0, %s126
      %s130 = sphi 0, %s129
      %s146 = sphi 0, %s130
      %s150 = sphi 0, %s150
      %s152 = sphi 0, %s150
      %s153 = sphi 0, %s152
      %s167 = sphi 0, %s153
      %s171 = sphi 0, %s171
      %s173 = sphi 0, %s171
      %s174 = sphi 0, %s173
      %s188 = sphi 0, %s174
      %s192 = sphi 0, %s192
      %s194 = sphi 0, %s192
      %s195 = sphi 0, %s194
      %s209 = sphi 0, %s195
      %s215 = sphi 0, %s217
      %s218 = sphi 0, %s215
      %s219 = sphi 0, %s218
      %s235 = sphi 0, %s219
      %s239 = sphi 0, %s239
      %s241 = sphi 0, %s239
      %s242 = sphi 0, %s241
      %s256 = sphi 0, %s242
      %s260 = sphi 0, %s260
      %s262 = sphi 0, %s260
      %s263 = sphi 0, %s262
      %s277 = sphi 0, %s263
      %s281 = sphi 0, %s281
      %s283 = sphi 0, %s281
      %s284 = sphi 0, %s283
      %s298 = sphi 0, %s284
      %s304 = sphi 0, %s306
      %s307 = sphi 0, %s304
      %s308 = sphi 0, %s307
      %s324 = sphi 0, %s308
      %s330 = sphi 0, %s332
      %s333 = sphi 0, %s330
      %s334 = sphi 0, %s333
      %s350 = sphi 0, %s334
      %s356 = sphi 0, %s358
      %s359 = sphi 0, %s356
      %s360 = sphi 0, %s359
      %s376 = sphi 0, %s360
    $region4: #{tpu_custom_call.1} parent=1 // loop_header_branch
      %30 = sbr.rel (%p28) target = $region8
    $region5: #{tpu_custom_call.1} parent=1 // loop_body
      %s32 = ssub.s32 %s27, 1
      %s33 = ssub.s32 %s27, 2
      %s34 = sadd.s32 %s27, 1
      %s35 = ssub.s32 %s27, %s34
      %p36 = scmp.eq.s32.totalorder %s35, 0
      %s38 = sadd.s32 %s37, 1
      %s39 = scalar_select %p36, %s37, %s38
      %p42 = pneg %p36
      %p43 = scmp.eq.s32.totalorder %s27, 1
      %p44 = por %p42, %p43
      %p45 = scmp.ne.s32.totalorder %s37, %s40
      %p46 = scmp.eq.s32.totalorder %s27, 0
      %p47 = por %p45, %p46
      %p48 = scmp.ne.s32.totalorder %s37, %s40
      %p49 = scmp.eq.s32.totalorder %s32, 1
      %p50 = por %p48, %p49
      %p51 = scmp.ne.s32.totalorder %s40, %s41
      %p52 = scmp.eq.s32.totalorder %s32, 0
      %p53 = por %p51, %p52
      %p54 = scmp.ne.s32.totalorder %s40, %s41
      %p55 = scmp.eq.s32.totalorder %s33, 1
      %p56 = por %p54, %p55
      %p58 = scmp.ne.s32.totalorder %s41, %s57
      %p59 = scmp.eq.s32.totalorder %s33, 0
      %p60 = por %p58, %p59
      %s62 = sadd.s32 %s61, 1
      %p65 = scmp.eq.s32.totalorder %s27, 1
      %p66 = scmp.ne.s32.totalorder %s61, %s63
      %p67 = scmp.eq.s32.totalorder %s27, 0
      %p68 = por %p66, %p67
      %p69 = scmp.ne.s32.totalorder %s61, %s63
      %p70 = scmp.eq.s32.totalorder %s32, 1
      %p71 = por %p69, %p70
      %p72 = scmp.ne.s32.totalorder %s63, %s64
      %p73 = scmp.eq.s32.totalorder %s32, 0
      %p74 = por %p72, %p73
      %p75 = scmp.ne.s32.totalorder %s63, %s64
      %p76 = scmp.eq.s32.totalorder %s33, 1
      %p77 = por %p75, %p76
      %p79 = scmp.ne.s32.totalorder %s64, %s78
      %p80 = scmp.eq.s32.totalorder %s33, 0
      %p81 = por %p79, %p80
      %s83 = sadd.s32 %s82, 1
      %p86 = scmp.eq.s32.totalorder %s27, 1
      %p87 = scmp.ne.s32.totalorder %s82, %s84
      %p88 = scmp.eq.s32.totalorder %s27, 0
      %p89 = por %p87, %p88
      %p90 = scmp.ne.s32.totalorder %s82, %s84
      %p91 = scmp.eq.s32.totalorder %s32, 1
      %p92 = por %p90, %p91
      %p93 = scmp.ne.s32.totalorder %s84, %s85
      %p94 = scmp.eq.s32.totalorder %s32, 0
      %p95 = por %p93, %p94
      %p96 = scmp.ne.s32.totalorder %s84, %s85
      %p97 = scmp.eq.s32.totalorder %s33, 1
      %p98 = por %p96, %p97
      %p100 = scmp.ne.s32.totalorder %s85, %s99
      %p101 = scmp.eq.s32.totalorder %s33, 0
      %p102 = por %p100, %p101
      %s104 = sadd.s32 %s103, 1
      %p107 = scmp.eq.s32.totalorder %s27, 1
      %p108 = scmp.ne.s32.totalorder %s103, %s105
      %p109 = scmp.eq.s32.totalorder %s27, 0
      %p110 = por %p108, %p109
      %p111 = scmp.ne.s32.totalorder %s103, %s105
      %p112 = scmp.eq.s32.totalorder %s32, 1
      %p113 = por %p111, %p112
      %p114 = scmp.ne.s32.totalorder %s105, %s106
      %p115 = scmp.eq.s32.totalorder %s32, 0
      %p116 = por %p114, %p115
      %p117 = scmp.ne.s32.totalorder %s105, %s106
      %p118 = scmp.eq.s32.totalorder %s33, 1
      %p119 = por %p117, %p118
      %p121 = scmp.ne.s32.totalorder %s106, %s120
      %p122 = scmp.eq.s32.totalorder %s33, 0
      %p123 = por %p121, %p122
      %s124 = ssub.s32 %s27, %s34
      %p125 = scmp.eq.s32.totalorder %s124, 0
      %s127 = sadd.s32 %s126, 1
      %s128 = scalar_select %p125, %s126, %s127
      %p131 = pneg %p125
      %p132 = scmp.eq.s32.totalorder %s27, 1
      %p133 = por %p131, %p132
      %p134 = scmp.ne.s32.totalorder %s126, %s129
      %p135 = scmp.eq.s32.totalorder %s27, 0
      %p136 = por %p134, %p135
      %p137 = scmp.ne.s32.totalorder %s126, %s129
      %p138 = scmp.eq.s32.totalorder %s32, 1
      %p139 = por %p137, %p138
      %p140 = scmp.ne.s32.totalorder %s129, %s130
      %p141 = scmp.eq.s32.totalorder %s32, 0
      %p142 = por %p140, %p141
      %p143 = scmp.ne.s32.totalorder %s129, %s130
      %p144 = scmp.eq.s32.totalorder %s33, 1
      %p145 = por %p143, %p144
      %p147 = scmp.ne.s32.totalorder %s130, %s146
      %p148 = scmp.eq.s32.totalorder %s33, 0
      %p149 = por %p147, %p148
      %s151 = sadd.s32 %s150, 1
      %p154 = scmp.eq.s32.totalorder %s27, 1
      %p155 = scmp.ne.s32.totalorder %s150, %s152
      %p156 = scmp.eq.s32.totalorder %s27, 0
      %p157 = por %p155, %p156
      %p158 = scmp.ne.s32.totalorder %s150, %s152
      %p159 = scmp.eq.s32.totalorder %s32, 1
      %p160 = por %p158, %p159
      %p161 = scmp.ne.s32.totalorder %s152, %s153
      %p162 = scmp.eq.s32.totalorder %s32, 0
      %p163 = por %p161, %p162
      %p164 = scmp.ne.s32.totalorder %s152, %s153
      %p165 = scmp.eq.s32.totalorder %s33, 1
      %p166 = por %p164, %p165
      %p168 = scmp.ne.s32.totalorder %s153, %s167
      %p169 = scmp.eq.s32.totalorder %s33, 0
      %p170 = por %p168, %p169
      %s172 = sadd.s32 %s171, 1
      %p175 = scmp.eq.s32.totalorder %s27, 1
      %p176 = scmp.ne.s32.totalorder %s171, %s173
      %p177 = scmp.eq.s32.totalorder %s27, 0
      %p178 = por %p176, %p177
      %p179 = scmp.ne.s32.totalorder %s171, %s173
      %p180 = scmp.eq.s32.totalorder %s32, 1
      %p181 = por %p179, %p180
      %p182 = scmp.ne.s32.totalorder %s173, %s174
      %p183 = scmp.eq.s32.totalorder %s32, 0
      %p184 = por %p182, %p183
      %p185 = scmp.ne.s32.totalorder %s173, %s174
      %p186 = scmp.eq.s32.totalorder %s33, 1
      %p187 = por %p185, %p186
      %p189 = scmp.ne.s32.totalorder %s174, %s188
      %p190 = scmp.eq.s32.totalorder %s33, 0
      %p191 = por %p189, %p190
      %s193 = sadd.s32 %s192, 1
      %p196 = scmp.eq.s32.totalorder %s27, 1
      %p197 = scmp.ne.s32.totalorder %s192, %s194
      %p198 = scmp.eq.s32.totalorder %s27, 0
      %p199 = por %p197, %p198
      %p200 = scmp.ne.s32.totalorder %s192, %s194
      %p201 = scmp.eq.s32.totalorder %s32, 1
      %p202 = por %p200, %p201
      %p203 = scmp.ne.s32.totalorder %s194, %s195
      %p204 = scmp.eq.s32.totalorder %s32, 0
      %p205 = por %p203, %p204
      %p206 = scmp.ne.s32.totalorder %s194, %s195
      %p207 = scmp.eq.s32.totalorder %s33, 1
      %p208 = por %p206, %p207
      %p210 = scmp.ne.s32.totalorder %s195, %s209
      %p211 = scmp.eq.s32.totalorder %s33, 0
      %p212 = por %p210, %p211
      %s213 = ssub.s32 %s27, %s34
      %p214 = scmp.eq.s32.totalorder %s213, 0
      %s216 = sadd.s32 %s215, 1
      %s217 = scalar_select %p214, %s215, %s216
      %p220 = pneg %p214
      %p221 = scmp.eq.s32.totalorder %s27, 1
      %p222 = por %p220, %p221
      %p223 = scmp.ne.s32.totalorder %s215, %s218
      %p224 = scmp.eq.s32.totalorder %s27, 0
      %p225 = por %p223, %p224
      %p226 = scmp.ne.s32.totalorder %s215, %s218
      %p227 = scmp.eq.s32.totalorder %s32, 1
      %p228 = por %p226, %p227
      %p229 = scmp.ne.s32.totalorder %s218, %s219
      %p230 = scmp.eq.s32.totalorder %s32, 0
      %p231 = por %p229, %p230
      %p232 = scmp.ne.s32.totalorder %s218, %s219
      %p233 = scmp.eq.s32.totalorder %s33, 1
      %p234 = por %p232, %p233
      %p236 = scmp.ne.s32.totalorder %s219, %s235
      %p237 = scmp.eq.s32.totalorder %s33, 0
      %p238 = por %p236, %p237
      %s240 = sadd.s32 %s239, 1
      %p243 = scmp.eq.s32.totalorder %s27, 1
      %p244 = scmp.ne.s32.totalorder %s239, %s241
      %p245 = scmp.eq.s32.totalorder %s27, 0
      %p246 = por %p244, %p245
      %p247 = scmp.ne.s32.totalorder %s239, %s241
      %p248 = scmp.eq.s32.totalorder %s32, 1
      %p249 = por %p247, %p248
      %p250 = scmp.ne.s32.totalorder %s241, %s242
      %p251 = scmp.eq.s32.totalorder %s32, 0
      %p252 = por %p250, %p251
      %p253 = scmp.ne.s32.totalorder %s241, %s242
      %p254 = scmp.eq.s32.totalorder %s33, 1
      %p255 = por %p253, %p254
      %p257 = scmp.ne.s32.totalorder %s242, %s256
      %p258 = scmp.eq.s32.totalorder %s33, 0
      %p259 = por %p257, %p258
      %s261 = sadd.s32 %s260, 1
      %p264 = scmp.eq.s32.totalorder %s27, 1
      %p265 = scmp.ne.s32.totalorder %s260, %s262
      %p266 = scmp.eq.s32.totalorder %s27, 0
      %p267 = por %p265, %p266
      %p268 = scmp.ne.s32.totalorder %s260, %s262
      %p269 = scmp.eq.s32.totalorder %s32, 1
      %p270 = por %p268, %p269
      %p271 = scmp.ne.s32.totalorder %s262, %s263
      %p272 = scmp.eq.s32.totalorder %s32, 0
      %p273 = por %p271, %p272
      %p274 = scmp.ne.s32.totalorder %s262, %s263
      %p275 = scmp.eq.s32.totalorder %s33, 1
      %p276 = por %p274, %p275
      %p278 = scmp.ne.s32.totalorder %s263, %s277
      %p279 = scmp.eq.s32.totalorder %s33, 0
      %p280 = por %p278, %p279
      %s282 = sadd.s32 %s281, 1
      %p285 = scmp.eq.s32.totalorder %s27, 1
      %p286 = scmp.ne.s32.totalorder %s281, %s283
      %p287 = scmp.eq.s32.totalorder %s27, 0
      %p288 = por %p286, %p287
      %p289 = scmp.ne.s32.totalorder %s281, %s283
      %p290 = scmp.eq.s32.totalorder %s32, 1
      %p291 = por %p289, %p290
      %p292 = scmp.ne.s32.totalorder %s283, %s284
      %p293 = scmp.eq.s32.totalorder %s32, 0
      %p294 = por %p292, %p293
      %p295 = scmp.ne.s32.totalorder %s283, %s284
      %p296 = scmp.eq.s32.totalorder %s33, 1
      %p297 = por %p295, %p296
      %p299 = scmp.ne.s32.totalorder %s284, %s298
      %p300 = scmp.eq.s32.totalorder %s33, 0
      %p301 = por %p299, %p300
      %s302 = ssub.s32 %s27, %s34
      %p303 = scmp.eq.s32.totalorder %s302, 0
      %s305 = sadd.s32 %s304, 1
      %s306 = scalar_select %p303, %s304, %s305
      %p309 = pneg %p303
      %p310 = scmp.eq.s32.totalorder %s27, 1
      %p311 = por %p309, %p310
      %p312 = scmp.ne.s32.totalorder %s304, %s307
      %p313 = scmp.eq.s32.totalorder %s27, 0
      %p314 = por %p312, %p313
      %p315 = scmp.ne.s32.totalorder %s304, %s307
      %p316 = scmp.eq.s32.totalorder %s32, 1
      %p317 = por %p315, %p316
      %p318 = scmp.ne.s32.totalorder %s307, %s308
      %p319 = scmp.eq.s32.totalorder %s32, 0
      %p320 = por %p318, %p319
      %p321 = scmp.ne.s32.totalorder %s307, %s308
      %p322 = scmp.eq.s32.totalorder %s33, 1
      %p323 = por %p321, %p322
      %p325 = scmp.ne.s32.totalorder %s308, %s324
      %p326 = scmp.eq.s32.totalorder %s33, 0
      %p327 = por %p325, %p326
      %s328 = ssub.s32 %s27, %s34
      %p329 = scmp.eq.s32.totalorder %s328, 0
      %s331 = sadd.s32 %s330, 1
      %s332 = scalar_select %p329, %s330, %s331
      %p335 = pneg %p329
      %p336 = scmp.eq.s32.totalorder %s27, 1
      %p337 = por %p335, %p336
      %p338 = scmp.ne.s32.totalorder %s330, %s333
      %p339 = scmp.eq.s32.totalorder %s27, 0
      %p340 = por %p338, %p339
      %p341 = scmp.ne.s32.totalorder %s330, %s333
      %p342 = scmp.eq.s32.totalorder %s32, 1
      %p343 = por %p341, %p342
      %p344 = scmp.ne.s32.totalorder %s333, %s334
      %p345 = scmp.eq.s32.totalorder %s32, 0
      %p346 = por %p344, %p345
      %p347 = scmp.ne.s32.totalorder %s333, %s334
      %p348 = scmp.eq.s32.totalorder %s33, 1
      %p349 = por %p347, %p348
      %p351 = scmp.ne.s32.totalorder %s334, %s350
      %p352 = scmp.eq.s32.totalorder %s33, 0
      %p353 = por %p351, %p352
      %s354 = ssub.s32 %s27, %s34
      %p355 = scmp.eq.s32.totalorder %s354, 0
      %s357 = sadd.s32 %s356, 1
      %s358 = scalar_select %p355, %s356, %s357
      %p361 = pneg %p355
      %p362 = scmp.eq.s32.totalorder %s27, 1
      %p363 = por %p361, %p362
      %p364 = scmp.ne.s32.totalorder %s356, %s359
      %p365 = scmp.eq.s32.totalorder %s27, 0
      %p366 = por %p364, %p365
      %p367 = scmp.ne.s32.totalorder %s356, %s359
      %p368 = scmp.eq.s32.totalorder %s32, 1
      %p369 = por %p367, %p368
      %p370 = scmp.ne.s32.totalorder %s359, %s360
      %p371 = scmp.eq.s32.totalorder %s32, 0
      %p372 = por %p370, %p371
      %p373 = scmp.ne.s32.totalorder %s359, %s360
      %p374 = scmp.eq.s32.totalorder %s33, 1
      %p375 = por %p373, %p374
      %p377 = scmp.ne.s32.totalorder %s360, %s376
      %p378 = scmp.eq.s32.totalorder %s33, 0
      %p379 = por %p377, %p378
      %p380 = scmp.le.s32.totalorder 1, %s27
      %p381 = scmp.lt.s32.totalorder %s27, 3
      %p382 = pnand %p380, %p381
      %p383 = pneg %p382
      // Predicated region
      $region9: #{tpu_custom_call.1} parent=5 // pred_check
        _
      $region10: #{tpu_custom_call.1} parent=5 // pred_check_branch
        %385 = sbr.rel (%p382) target = $region12
      $region11: #{tpu_custom_call.1} parent=5 // pred_region
        %s386 = ssub.s32 %s27, 1
        // Predicated region
        $region13: #{tpu_custom_call.1} parent=11 // pred_check
          %p387 = pneg %p74
        $region14: #{tpu_custom_call.1} parent=11 // pred_check_branch
          %389 = sbr.rel (%p387) target = $region16
        $region15: #{tpu_custom_call.1} parent=11 // pred_region
          _
        $region16: #{tpu_custom_call.1} parent=11 // pred_fallthru
          _
        // Predicated region
        $region17: #{tpu_custom_call.1} parent=11 // pred_check
          %p390 = pneg %p95
        $region18: #{tpu_custom_call.1} parent=11 // pred_check_branch
          %392 = sbr.rel (%p390) target = $region20
        $region19: #{tpu_custom_call.1} parent=11 // pred_region
          _
        $region20: #{tpu_custom_call.1} parent=11 // pred_fallthru
          _
        // Predicated region
        $region21: #{tpu_custom_call.1} parent=11 // pred_check
          %p393 = pneg %p116
        $region22: #{tpu_custom_call.1} parent=11 // pred_check_branch
          %395 = sbr.rel (%p393) target = $region24
        $region23: #{tpu_custom_call.1} parent=11 // pred_region
          _
        $region24: #{tpu_custom_call.1} parent=11 // pred_fallthru
          _
        // Predicated region
        $region25: #{tpu_custom_call.1} parent=11 // pred_check
          %p396 = pneg %p163
        $region26: #{tpu_custom_call.1} parent=11 // pred_check_branch
          %398 = sbr.rel (%p396) target = $region28
        $region27: #{tpu_custom_call.1} parent=11 // pred_region
          _
        $region28: #{tpu_custom_call.1} parent=11 // pred_fallthru
          _
        // Predicated region
        $region29: #{tpu_custom_call.1} parent=11 // pred_check
          %p399 = pneg %p184
        $region30: #{tpu_custom_call.1} parent=11 // pred_check_branch
          %401 = sbr.rel (%p399) target = $region32
        $region31: #{tpu_custom_call.1} parent=11 // pred_region
          _
        $region32: #{tpu_custom_call.1} parent=11 // pred_fallthru
          _
        // Predicated region
        $region33: #{tpu_custom_call.1} parent=11 // pred_check
          %p402 = pneg %p205
        $region34: #{tpu_custom_call.1} parent=11 // pred_check_branch
          %404 = sbr.rel (%p402) target = $region36
        $region35: #{tpu_custom_call.1} parent=11 // pred_region
          _
        $region36: #{tpu_custom_call.1} parent=11 // pred_fallthru
          _
        // Predicated region
        $region37: #{tpu_custom_call.1} parent=11 // pred_check
          %p405 = pneg %p252
        $region38: #{tpu_custom_call.1} parent=11 // pred_check_branch
          %407 = sbr.rel (%p405) target = $region40
        $region39: #{tpu_custom_call.1} parent=11 // pred_region
          _
        $region40: #{tpu_custom_call.1} parent=11 // pred_fallthru
          _
        // Predicated region
        $region41: #{tpu_custom_call.1} parent=11 // pred_check
          %p408 = pneg %p273
        $region42: #{tpu_custom_call.1} parent=11 // pred_check_branch
          %410 = sbr.rel (%p408) target = $region44
        $region43: #{tpu_custom_call.1} parent=11 // pred_region
          _
        $region44: #{tpu_custom_call.1} parent=11 // pred_fallthru
          _
        // Predicated region
        $region45: #{tpu_custom_call.1} parent=11 // pred_check
          %p411 = pneg %p294
        $region46: #{tpu_custom_call.1} parent=11 // pred_check_branch
          %413 = sbr.rel (%p411) target = $region48
        $region47: #{tpu_custom_call.1} parent=11 // pred_region
          _
        $region48: #{tpu_custom_call.1} parent=11 // pred_fallthru
          _
      $region12: #{tpu_custom_call.1} parent=5 // pred_fallthru
        _
      %p414 = scmp.lt.s32.totalorder %s27, 2
      // Predicated region
      $region49: #{tpu_custom_call.1} parent=5 // pred_check
        %p415 = pneg %p414
      $region50: #{tpu_custom_call.1} parent=5 // pred_check_branch
        %417 = sbr.rel (%p415) target = $region52
      $region51: #{tpu_custom_call.1} parent=5 // pred_region
        // Predicated region
        $region53: #{tpu_custom_call.1} parent=51 // pred_check
          %p418 = pneg %p47
        $region54: #{tpu_custom_call.1} parent=51 // pred_check_branch
          %420 = sbr.rel (%p418) target = $region56
        $region55: #{tpu_custom_call.1} parent=51 // pred_region
          %p421 = scmp.lt.s32.totalorder %s27, 1
          %s422 = scalar_select %p421, %s27, 1
          %s423 = smul.addr %s422, 4
          %s424 = smul.addr %s423, 4
          %s425 = scalar_lea.vmem %s0, %s424
        $region56: #{tpu_custom_call.1} parent=51 // pred_fallthru
          _
        // Predicated region
        $region57: #{tpu_custom_call.1} parent=51 // pred_check
          %p426 = pneg %p136
        $region58: #{tpu_custom_call.1} parent=51 // pred_check_branch
          %428 = sbr.rel (%p426) target = $region60
        $region59: #{tpu_custom_call.1} parent=51 // pred_region
          %p429 = scmp.lt.s32.totalorder %s27, 1
          %s430 = scalar_select %p429, %s27, 1
          %s431 = smul.addr %s430, 8
          %s432 = smul.addr %s431, 8
          %s433 = scalar_lea.vmem %s4, %s432
        $region60: #{tpu_custom_call.1} parent=51 // pred_fallthru
          _
        // Predicated region
        $region61: #{tpu_custom_call.1} parent=51 // pred_check
          %p434 = pneg %p225
        $region62: #{tpu_custom_call.1} parent=51 // pred_check_branch
          %436 = sbr.rel (%p434) target = $region64
        $region63: #{tpu_custom_call.1} parent=51 // pred_region
          %p437 = scmp.lt.s32.totalorder %s27, 1
          %s438 = scalar_select %p437, %s27, 1
          %s439 = smul.addr %s438, 32
          %s440 = smul.addr %s439, 8
          %s441 = scalar_lea.vmem %s8, %s440
        $region64: #{tpu_custom_call.1} parent=51 // pred_fallthru
          _
      $region52: #{tpu_custom_call.1} parent=5 // pred_fallthru
        _
      %p442 = scmp.le.s32.totalorder 1, %s27
      %p443 = scmp.lt.s32.totalorder %s27, 3
      %p444 = pnand %p442, %p443
      %p445 = pneg %p444
      // Predicated region
      $region65: #{tpu_custom_call.1} parent=5 // pred_check
        _
      $region66: #{tpu_custom_call.1} parent=5 // pred_check_branch
        %447 = sbr.rel (%p444) target = $region68
      $region67: #{tpu_custom_call.1} parent=5 // pred_region
        %s448 = ssub.s32 %s27, 1
        %p449 = scmp.lt.s32.totalorder %s32, 1
        %s450 = scalar_select %p449, %s32, 1
        %s451 = smul.addr %s450, 4
        %s452 = smul.addr %s451, 4
        %s453 = scalar_lea.vmem %s0, %s452
        %p454 = pneg %p53
        %p455 = pneg %p50
        %p456 = pneg %p74
        %p457 = pneg %p71
        %p458 = pneg %p95
        %p459 = pneg %p92
        %p460 = pneg %p116
        %p461 = pneg %p113
        %p462 = scmp.lt.s32.totalorder %s32, 1
        %s463 = scalar_select %p462, %s32, 1
        %s464 = smul.addr %s463, 8
        %s465 = smul.addr %s464, 8
        %s466 = scalar_lea.vmem %s4, %s465
        %p467 = pneg %p142
        %p468 = pneg %p139
        %p469 = pneg %p163
        %p470 = pneg %p160
        %p471 = pneg %p184
        %p472 = pneg %p181
        %p473 = pneg %p205
        %p474 = pneg %p202
        %p475 = scmp.lt.s32.totalorder %s32, 1
        %s476 = scalar_select %p475, %s32, 1
        %s477 = smul.addr %s476, 32
        %s478 = smul.addr %s477, 8
        %s479 = scalar_lea.vmem %s8, %s478
        %p480 = pneg %p231
        %p481 = pneg %p228
        %p482 = pneg %p252
        %p483 = pneg %p249
        %p484 = pneg %p273
        %p485 = pneg %p270
        %p486 = pneg %p294
        %p487 = pneg %p291
        %p488 = pneg %p320
        %p489 = pneg %p317
        %s490 = sand.u32 %s307, 1
        %s491 = scalar_lea.sflag [#allocation9], %s490
        %s492 = sand.u32 %s307, 1
        %s493 = smul.addr %s492, 16
        %s494 = scalar_lea.vmem [#allocation8], %s493
        %p495 = pneg %p346
        %p496 = pneg %p343
        %s497 = sand.u32 %s333, 1
        %s498 = scalar_lea.sflag [#allocation11], %s497
        %s499 = sand.u32 %s333, 1
        %s500 = smul.addr %s499, 64
        %s501 = scalar_lea.vmem [#allocation10], %s500
        %p502 = pneg %p372
        %p503 = pneg %p369
        %p504 = scmp.lt.s32.totalorder %s32, 1
        %s505 = scalar_select %p504, %s32, 1
        %s506 = smul.addr %s505, 32
        %s507 = smul.addr %s506, 8
        %s508 = scalar_lea.vmem %s14, %s507
        %p509 = scmp.lt.s32.totalorder %s32, 1
        %s510 = scalar_select %p509, %s32, 1
        %s511 = smul.addr %s510, 4
        %s512 = smul.addr %s511, 4
        %s513 = scalar_lea.vmem %s0, %s512
        %p514 = scmp.lt.s32.totalorder %s32, 1
        %s515 = scalar_select %p514, %s32, 1
        %s516 = smul.addr %s515, 8
        %s517 = smul.addr %s516, 8
        %s518 = scalar_lea.vmem %s4, %s517
        %p519 = scmp.lt.s32.totalorder %s32, 1
        %s520 = scalar_select %p519, %s32, 1
        %s521 = smul.addr %s520, 32
        %s522 = smul.addr %s521, 8
        %s523 = scalar_lea.vmem %s8, %s522
        %p524 = scmp.lt.s32.totalorder %s32, 1
        %s525 = scalar_select %p524, %s32, 1
        %s526 = smul.addr %s525, 32
        %s527 = smul.addr %s526, 8
        %s528 = scalar_lea.vmem %s14, %s527
        %v529 = vld [vmem:[%s513] sm:$0xf]
        %v530 = vld [vmem:[%s513 + $0x4] sm:$0xf]
        %v531 = vld [vmem:[%s513 + $0x8] sm:$0xf]
        %v532 = vld [vmem:[%s513 + $0xc] sm:$0xf]
        %vm533 = vcmask 191488
        %534 = vst.msk [vmem:[#allocation2] sm:$0xf] %vm533, 0.0
        %535 = vst.msk [vmem:[#allocation2 + $0x4] sm:$0xf] %vm533, 0.0
        %536 = vst.msk [vmem:[#allocation2 + $0x8] sm:$0xf] %vm533, 0.0
        %537 = vst.msk [vmem:[#allocation2 + $0xc] sm:$0xf] %vm533, 0.0
        %538 = vst.msk [vmem:[#allocation2 + $0x10] sm:$0xf] %vm533, 0.0
        %539 = vst.msk [vmem:[#allocation2 + $0x14] sm:$0xf] %vm533, 0.0
        %s540 = scalar_lea.vmem [#allocation2], 4
        %vm541 = vcmask 59392
        %542 = vst.msk [vmem:[%s540 + $0x1] sm:$0x7] %vm541, %v529
        %543 = vst.msk [vmem:[%s540 + $0x5] sm:$0x7] %vm541, %v530
        %544 = vst.msk [vmem:[%s540 + $0x9] sm:$0x7] %vm541, %v531
        %545 = vst.msk [vmem:[%s540 + $0xd] sm:$0x7] %vm541, %v532
        %550 = vrot.lane.b32.xlu0 %v529, 8
        %v551 = vpop.permute.xlu0 %550
        %552 = vrot.lane.b32.xlu0 %v530, 8
        %v553 = vpop.permute.xlu0 %552
        %554 = vrot.lane.b32.xlu0 %v531, 8
        %v555 = vpop.permute.xlu0 %554
        %556 = vrot.lane.b32.xlu0 %v532, 8
        %v557 = vpop.permute.xlu0 %556
        %vm562 = vcmask 126016
        %563 = vst.msk [vmem:[%s540] sm:$0xf] %vm562, %v551
        %564 = vst.msk [vmem:[%s540 + $0x4] sm:$0xf] %vm562, %v553
        %565 = vst.msk [vmem:[%s540 + $0x8] sm:$0xf] %vm562, %v555
        %566 = vst.msk [vmem:[%s540 + $0xc] sm:$0xf] %vm562, %v557
        %567 = vrot.lane.b32.xlu0 %v529, 16
        %v568 = vpop.permute.xlu0 %567
        %569 = vrot.lane.b32.xlu0 %v530, 16
        %v570 = vpop.permute.xlu0 %569
        %571 = vrot.lane.b32.xlu0 %v531, 16
        %v572 = vpop.permute.xlu0 %571
        %573 = vrot.lane.b32.xlu0 %v532, 16
        %v574 = vpop.permute.xlu0 %573
        %vm579 = vcmask 191617
        %580 = vst.msk [vmem:[%s540 - $0x1] sm:$0xe] %vm579, %v568
        %581 = vst.msk [vmem:[%s540 + $0x3] sm:$0xe] %vm579, %v570
        %582 = vst.msk [vmem:[%s540 + $0x7] sm:$0xe] %vm579, %v572
        %583 = vst.msk [vmem:[%s540 + $0xb] sm:$0xe] %vm579, %v574
        %vm584 = vcmask 64512
        %585 = vst.msk [vmem:[#allocation3] sm:$0xff] %vm584, 0.0
        %586 = vst.msk [vmem:[#allocation3 + $0x8] sm:$0xff] %vm584, 0.0
        %v587 = vld [vmem:[#allocation2] sm:$0xf]
        %v588 = vld [vmem:[#allocation2 + $0x4] sm:$0xf]
        %v589 = vld [vmem:[#allocation2 + $0x8] sm:$0xf]
        %v590 = vld [vmem:[#allocation2 + $0xc] sm:$0xf]
        %v591 = vld [vmem:[#allocation3] sm:$0xff]
        %v592 = vld [vmem:[#allocation3 + $0x8] sm:$0xff]
        %v593 = vld [vmem:[%s1] sm:$0xff]
        %v594 = vld [vmem:[%s1 + $0x8] sm:$0xff]
        %v595 = vld [vmem:[%s1 + $0x10] sm:$0xff]
        %v600 = vcombine.low %v587, %v588
        %v601 = vcombine.low %v589, %v590
        %vm602 = vcmask 195584
        %v603 = vsel %vm602, %v600, 0
        %v605 = vsel %vm602, %v601, 0
        %607 = vmatprep.subr.mxu0 0.0
        %608 = vmatpush1.msra.mxu0 0.0
        %609 = vmatprep.subr.mxu0 0.0
        %610 = vmatpush1.msra.mxu0 0.0
        %611 = vmatprep.subr.mxu0 0.0
        %612 = vmatpush1.msra.mxu0 0.0
        %613 = vmatprep.subr.mxu0 0.0
        %614 = vmatpush1.msra.mxu0 0.0
        %615 = vmatprep.subr.mxu0 0.0
        %616 = vmatpush1.msra.mxu0 0.0
        %617 = vmatprep.subr.mxu0 0.0
        %618 = vmatpush1.msra.mxu0 0.0
        %619 = vmatprep.subr.mxu0 0.0
        %620 = vmatpush1.msra.mxu0 0.0
        %621 = vmatprep.subr.mxu0 0.0
        %622 = vmatpush1.msra.mxu0 0.0
        %623 = vmatprep.subr.mxu0 0.0
        %624 = vmatpush1.msra.mxu0 0.0
        %625 = vmatprep.subr.mxu0 0.0
        %626 = vmatpush1.msra.mxu0 0.0
        %627 = vmatprep.subr.mxu0 0.0
        %628 = vmatpush1.msra.mxu0 0.0
        %629 = vmatprep.subr.mxu0 0.0
        %630 = vmatpush1.msra.mxu0 0.0
        %631 = vmatprep.subr.mxu0 0.0
        %632 = vmatpush1.msra.mxu0 0.0
        %633 = vmatprep.subr.mxu0 0.0
        %634 = vmatpush1.msra.mxu0 %v595
        %635 = vmatprep.subr.mxu0 0.0
        %636 = vmatpush1.msra.mxu0 %v594
        %637 = vmatprep.subr.mxu0 0.0
        %638 = vmatpush1.msra.mxu0 %v593
        %639 = vmatprep.subr.mxu0 0.0
        %640 = vmatpush2.msra.mxu0 0.0
        %641 = vmatprep.subr.mxu0 0.0
        %642 = vmatpush2.msra.mxu0 0.0
        %643 = vmatprep.subr.mxu0 0.0
        %644 = vmatpush2.msra.mxu0 0.0
        %645 = vmatprep.subr.mxu0 0.0
        %646 = vmatpush2.msra.mxu0 0.0
        %647 = vmatprep.subr.mxu0 0.0
        %648 = vmatpush2.msra.mxu0 0.0
        %649 = vmatprep.subr.mxu0 0.0
        %650 = vmatpush2.msra.mxu0 0.0
        %651 = vmatprep.subr.mxu0 0.0
        %652 = vmatpush2.msra.mxu0 0.0
        %653 = vmatprep.subr.mxu0 0.0
        %654 = vmatpush2.msra.mxu0 0.0
        %655 = vmatprep.subr.mxu0 0.0
        %656 = vmatpush2.msra.mxu0 0.0
        %657 = vmatprep.subr.mxu0 0.0
        %658 = vmatpush2.msra.mxu0 0.0
        %659 = vmatprep.subr.mxu0 0.0
        %660 = vmatpush2.msra.mxu0 0.0
        %661 = vmatprep.subr.mxu0 0.0
        %662 = vmatpush2.msra.mxu0 0.0
        %663 = vmatprep.subr.mxu0 0.0
        %664 = vmatpush2.msra.mxu0 0.0
        %665 = vmatprep.subr.mxu0 0.0
        %666 = vmatpush2.msra.mxu0 0.0
        %667 = vmatprep.subr.mxu0 0.0
        %668 = vmatpush2.msra.mxu0 0.0
        %669 = vmatprep.subr.mxu0 0.0
        %670 = vmatpush2.msra.mxu0 0.0
        %671 = vmatprep.mubr.f32.mxu0 0.0
        %672 = vmatmul.mubr.f32.gmra.mxu0 %v603
        %v673 = vpop.f32.mrf.mxu0
        %v674 = vadd.f32 0.0, %v673
        %v675 = vpop.f32.mrf.mxu0
        %676 = vmatprep.mubr.f32.mxu0 0.0
        %677 = vmatmul.mubr.f32.gmra.mxu0 %v605
        %v678 = vpop.f32.mrf.mxu0
        %v679 = vadd.f32 0.0, %v678
        %v680 = vpop.f32.mrf.mxu0
        %681 = vdwg.mxu0
        %v682 = vadd.f32 %v591, %v674
        %v683 = vadd.f32 %v592, %v679
        %684 = vst.msk [vmem:[#allocation3] sm:$0xff] %vm584, %v682
        %685 = vst.msk [vmem:[#allocation3 + $0x8] sm:$0xff] %vm584, %v683
        %v686 = vld [vmem:[%s540] sm:$0xf]
        %v687 = vld [vmem:[%s540 + $0x4] sm:$0xf]
        %v688 = vld [vmem:[%s540 + $0x8] sm:$0xf]
        %v689 = vld [vmem:[%s540 + $0xc] sm:$0xf]
        %v690 = vld [vmem:[#allocation3] sm:$0xff]
        %v691 = vld [vmem:[#allocation3 + $0x8] sm:$0xff]
        %s692 = scalar_lea.vmem %s1, 24
        %v693 = vld [vmem:[%s692] sm:$0xff]
        %v694 = vld [vmem:[%s692 + $0x8] sm:$0xff]
        %v695 = vld [vmem:[%s692 + $0x10] sm:$0xff]
        %v700 = vcombine.low %v686, %v687
        %v701 = vcombine.low %v688, %v689
        %v702 = vsel %vm602, %v700, 0
        %v704 = vsel %vm602, %v701, 0
        %706 = vmatprep.subr.mxu0 0.0
        %707 = vmatpush1.msra.mxu0 0.0
        %708 = vmatprep.subr.mxu0 0.0
        %709 = vmatpush1.msra.mxu0 0.0
        %710 = vmatprep.subr.mxu0 0.0
        %711 = vmatpush1.msra.mxu0 0.0
        %712 = vmatprep.subr.mxu0 0.0
        %713 = vmatpush1.msra.mxu0 0.0
        %714 = vmatprep.subr.mxu0 0.0
        %715 = vmatpush1.msra.mxu0 0.0
        %716 = vmatprep.subr.mxu0 0.0
        %717 = vmatpush1.msra.mxu0 0.0
        %718 = vmatprep.subr.mxu0 0.0
        %719 = vmatpush1.msra.mxu0 0.0
        %720 = vmatprep.subr.mxu0 0.0
        %721 = vmatpush1.msra.mxu0 0.0
        %722 = vmatprep.subr.mxu0 0.0
        %723 = vmatpush1.msra.mxu0 0.0
        %724 = vmatprep.subr.mxu0 0.0
        %725 = vmatpush1.msra.mxu0 0.0
        %726 = vmatprep.subr.mxu0 0.0
        %727 = vmatpush1.msra.mxu0 0.0
        %728 = vmatprep.subr.mxu0 0.0
        %729 = vmatpush1.msra.mxu0 0.0
        %730 = vmatprep.subr.mxu0 0.0
        %731 = vmatpush1.msra.mxu0 0.0
        %732 = vmatprep.subr.mxu0 0.0
        %733 = vmatpush1.msra.mxu0 %v695
        %734 = vmatprep.subr.mxu0 0.0
        %735 = vmatpush1.msra.mxu0 %v694
        %736 = vmatprep.subr.mxu0 0.0
        %737 = vmatpush1.msra.mxu0 %v693
        %738 = vmatprep.subr.mxu0 0.0
        %739 = vmatpush2.msra.mxu0 0.0
        %740 = vmatprep.subr.mxu0 0.0
        %741 = vmatpush2.msra.mxu0 0.0
        %742 = vmatprep.subr.mxu0 0.0
        %743 = vmatpush2.msra.mxu0 0.0
        %744 = vmatprep.subr.mxu0 0.0
        %745 = vmatpush2.msra.mxu0 0.0
        %746 = vmatprep.subr.mxu0 0.0
        %747 = vmatpush2.msra.mxu0 0.0
        %748 = vmatprep.subr.mxu0 0.0
        %749 = vmatpush2.msra.mxu0 0.0
        %750 = vmatprep.subr.mxu0 0.0
        %751 = vmatpush2.msra.mxu0 0.0
        %752 = vmatprep.subr.mxu0 0.0
        %753 = vmatpush2.msra.mxu0 0.0
        %754 = vmatprep.subr.mxu0 0.0
        %755 = vmatpush2.msra.mxu0 0.0
        %756 = vmatprep.subr.mxu0 0.0
        %757 = vmatpush2.msra.mxu0 0.0
        %758 = vmatprep.subr.mxu0 0.0
        %759 = vmatpush2.msra.mxu0 0.0
        %760 = vmatprep.subr.mxu0 0.0
        %761 = vmatpush2.msra.mxu0 0.0
        %762 = vmatprep.subr.mxu0 0.0
        %763 = vmatpush2.msra.mxu0 0.0
        %764 = vmatprep.subr.mxu0 0.0
        %765 = vmatpush2.msra.mxu0 0.0
        %766 = vmatprep.subr.mxu0 0.0
        %767 = vmatpush2.msra.mxu0 0.0
        %768 = vmatprep.subr.mxu0 0.0
        %769 = vmatpush2.msra.mxu0 0.0
        %770 = vmatprep.mubr.f32.mxu0 0.0
        %771 = vmatmul.mubr.f32.gmra.mxu0 %v702
        %v772 = vpop.f32.mrf.mxu0
        %v773 = vadd.f32 0.0, %v772
        %v774 = vpop.f32.mrf.mxu0
        %775 = vmatprep.mubr.f32.mxu0 0.0
        %776 = vmatmul.mubr.f32.gmra.mxu0 %v704
        %v777 = vpop.f32.mrf.mxu0
        %v778 = vadd.f32 0.0, %v777
        %v779 = vpop.f32.mrf.mxu0
        %780 = vdwg.mxu0
        %v781 = vadd.f32 %v690, %v773
        %v782 = vadd.f32 %v691, %v778
        %783 = vst.msk [vmem:[#allocation3] sm:$0xff] %vm584, %v781
        %784 = vst.msk [vmem:[#allocation3 + $0x8] sm:$0xff] %vm584, %v782
        %s785 = scalar_lea.vmem [#allocation2], 8
        %v786 = vld [vmem:[%s785] sm:$0xf]
        %v787 = vld [vmem:[%s785 + $0x4] sm:$0xf]
        %v788 = vld [vmem:[%s785 + $0x8] sm:$0xf]
        %v789 = vld [vmem:[%s785 + $0xc] sm:$0xf]
        %v790 = vld [vmem:[#allocation3] sm:$0xff]
        %v791 = vld [vmem:[#allocation3 + $0x8] sm:$0xff]
        %s792 = scalar_lea.vmem %s1, 48
        %v793 = vld [vmem:[%s792] sm:$0xff]
        %v794 = vld [vmem:[%s792 + $0x8] sm:$0xff]
        %v795 = vld [vmem:[%s792 + $0x10] sm:$0xff]
        %v800 = vcombine.low %v786, %v787
        %v801 = vcombine.low %v788, %v789
        %v802 = vsel %vm602, %v800, 0
        %v804 = vsel %vm602, %v801, 0
        %806 = vmatprep.subr.mxu0 0.0
        %807 = vmatpush1.msra.mxu0 0.0
        %808 = vmatprep.subr.mxu0 0.0
        %809 = vmatpush1.msra.mxu0 0.0
        %810 = vmatprep.subr.mxu0 0.0
        %811 = vmatpush1.msra.mxu0 0.0
        %812 = vmatprep.subr.mxu0 0.0
        %813 = vmatpush1.msra.mxu0 0.0
        %814 = vmatprep.subr.mxu0 0.0
        %815 = vmatpush1.msra.mxu0 0.0
        %816 = vmatprep.subr.mxu0 0.0
        %817 = vmatpush1.msra.mxu0 0.0
        %818 = vmatprep.subr.mxu0 0.0
        %819 = vmatpush1.msra.mxu0 0.0
        %820 = vmatprep.subr.mxu0 0.0
        %821 = vmatpush1.msra.mxu0 0.0
        %822 = vmatprep.subr.mxu0 0.0
        %823 = vmatpush1.msra.mxu0 0.0
        %824 = vmatprep.subr.mxu0 0.0
        %825 = vmatpush1.msra.mxu0 0.0
        %826 = vmatprep.subr.mxu0 0.0
        %827 = vmatpush1.msra.mxu0 0.0
        %828 = vmatprep.subr.mxu0 0.0
        %829 = vmatpush1.msra.mxu0 0.0
        %830 = vmatprep.subr.mxu0 0.0
        %831 = vmatpush1.msra.mxu0 0.0
        %832 = vmatprep.subr.mxu0 0.0
        %833 = vmatpush1.msra.mxu0 %v795
        %834 = vmatprep.subr.mxu0 0.0
        %835 = vmatpush1.msra.mxu0 %v794
        %836 = vmatprep.subr.mxu0 0.0
        %837 = vmatpush1.msra.mxu0 %v793
        %838 = vmatprep.subr.mxu0 0.0
        %839 = vmatpush2.msra.mxu0 0.0
        %840 = vmatprep.subr.mxu0 0.0
        %841 = vmatpush2.msra.mxu0 0.0
        %842 = vmatprep.subr.mxu0 0.0
        %843 = vmatpush2.msra.mxu0 0.0
        %844 = vmatprep.subr.mxu0 0.0
        %845 = vmatpush2.msra.mxu0 0.0
        %846 = vmatprep.subr.mxu0 0.0
        %847 = vmatpush2.msra.mxu0 0.0
        %848 = vmatprep.subr.mxu0 0.0
        %849 = vmatpush2.msra.mxu0 0.0
        %850 = vmatprep.subr.mxu0 0.0
        %851 = vmatpush2.msra.mxu0 0.0
        %852 = vmatprep.subr.mxu0 0.0
        %853 = vmatpush2.msra.mxu0 0.0
        %854 = vmatprep.subr.mxu0 0.0
        %855 = vmatpush2.msra.mxu0 0.0
        %856 = vmatprep.subr.mxu0 0.0
        %857 = vmatpush2.msra.mxu0 0.0
        %858 = vmatprep.subr.mxu0 0.0
        %859 = vmatpush2.msra.mxu0 0.0
        %860 = vmatprep.subr.mxu0 0.0
        %861 = vmatpush2.msra.mxu0 0.0
        %862 = vmatprep.subr.mxu0 0.0
        %863 = vmatpush2.msra.mxu0 0.0
        %864 = vmatprep.subr.mxu0 0.0
        %865 = vmatpush2.msra.mxu0 0.0
        %866 = vmatprep.subr.mxu0 0.0
        %867 = vmatpush2.msra.mxu0 0.0
        %868 = vmatprep.subr.mxu0 0.0
        %869 = vmatpush2.msra.mxu0 0.0
        %870 = vmatprep.mubr.f32.mxu0 0.0
        %871 = vmatmul.mubr.f32.gmra.mxu0 %v802
        %v872 = vpop.f32.mrf.mxu0
        %v873 = vadd.f32 0.0, %v872
        %v874 = vpop.f32.mrf.mxu0
        %875 = vmatprep.mubr.f32.mxu0 0.0
        %876 = vmatmul.mubr.f32.gmra.mxu0 %v804
        %v877 = vpop.f32.mrf.mxu0
        %v878 = vadd.f32 0.0, %v877
        %v879 = vpop.f32.mrf.mxu0
        %880 = vdwg.mxu0
        %v881 = vadd.f32 %v790, %v873
        %v882 = vadd.f32 %v791, %v878
        %883 = vst.msk [vmem:[#allocation3] sm:$0xff] %vm584, %v881
        %884 = vst.msk [vmem:[#allocation3 + $0x8] sm:$0xff] %vm584, %v882
        %v885 = vld [vmem:[#allocation3] sm:$0xff]
        %v886 = vld [vmem:[#allocation3 + $0x8] sm:$0xff]
        %v887 = vld [vmem:[%s2] sm:$0x1]
        %v889 = vlaneseq
        %v890 = vshrl.u32 %v889, 7
        %v891 = vsub.s32 0, %v890
        %v892 = vrot.slane %v887, %v891
        %v894 = vmul.f32 %v885, %v892
        %v895 = vmul.f32 %v886, %v892
        %v896 = vld [vmem:[%s3] sm:$0x1]
        %v898 = vlaneseq
        %v899 = vshrl.u32 %v898, 7
        %v900 = vsub.s32 0, %v899
        %v901 = vrot.slane %v896, %v900
        %v903 = vadd.f32 %v894, %v901
        %v904 = vadd.f32 %v895, %v901
        %v905 = vmax.f32 %v903, 0.0
        %v906 = vmax.f32 %v904, 0.0
        %v909 = vcombine.high %v905, %v905
        %v910 = vcombine.high %v906, %v906
        %vm913 = vcmask 60416
        %914 = vst.msk [vmem:[%s494] sm:$0xf] %vm913, %v905
        %915 = vst.msk [vmem:[%s494 + $0x4] sm:$0xf] %vm913, %v909
        %916 = vst.msk [vmem:[%s494 + $0x8] sm:$0xf] %vm913, %v906
        %917 = vst.msk [vmem:[%s494 + $0xc] sm:$0xf] %vm913, %v910
        %v918 = vld [vmem:[%s518] sm:$0xff]
        %v919 = vld [vmem:[%s518 + $0x8] sm:$0xff]
        %v920 = vld [vmem:[%s518 + $0x10] sm:$0xff]
        %v921 = vld [vmem:[%s518 + $0x18] sm:$0xff]
        %v922 = vld [vmem:[%s518 + $0x20] sm:$0xff]
        %v923 = vld [vmem:[%s518 + $0x28] sm:$0xff]
        %v924 = vld [vmem:[%s518 + $0x30] sm:$0xff]
        %v925 = vld [vmem:[%s518 + $0x38] sm:$0xff]
        %vm926 = vcmask 146432
        %927 = vst.msk [vmem:[#allocation4] sm:$0xff] %vm926, 0.0
        %928 = vst.msk [vmem:[#allocation4 + $0x8] sm:$0xff] %vm926, 0.0
        %929 = vst.msk [vmem:[#allocation4 + $0x10] sm:$0xff] %vm926, 0.0
        %930 = vst.msk [vmem:[#allocation4 + $0x18] sm:$0xff] %vm926, 0.0
        %931 = vst.msk [vmem:[#allocation4 + $0x20] sm:$0xff] %vm926, 0.0
        %932 = vst.msk [vmem:[#allocation4 + $0x28] sm:$0xff] %vm926, 0.0
        %933 = vst.msk [vmem:[#allocation4 + $0x30] sm:$0xff] %vm926, 0.0
        %934 = vst.msk [vmem:[#allocation4 + $0x38] sm:$0xff] %vm926, 0.0
        %935 = vst.msk [vmem:[#allocation4 + $0x40] sm:$0xff] %vm926, 0.0
        %936 = vst.msk [vmem:[#allocation4 + $0x48] sm:$0xff] %vm926, 0.0
        %s937 = scalar_lea.vmem [#allocation4], 8
        %vm938 = vcmask 47104
        %939 = vst.msk [vmem:[%s937 + $0x1] sm:$0x7f] %vm938, %v918
        %940 = vst.msk [vmem:[%s937 + $0x9] sm:$0x7f] %vm938, %v919
        %941 = vst.msk [vmem:[%s937 + $0x11] sm:$0x7f] %vm938, %v920
        %942 = vst.msk [vmem:[%s937 + $0x19] sm:$0x7f] %vm938, %v921
        %943 = vst.msk [vmem:[%s937 + $0x21] sm:$0x7f] %vm938, %v922
        %944 = vst.msk [vmem:[%s937 + $0x29] sm:$0x7f] %vm938, %v923
        %945 = vst.msk [vmem:[%s937 + $0x31] sm:$0x7f] %vm938, %v924
        %946 = vst.msk [vmem:[%s937 + $0x39] sm:$0x7f] %vm938, %v925
        %955 = vrot.lane.b32.xlu0 %v918, 6
        %v956 = vpop.permute.xlu0 %955
        %957 = vrot.lane.b32.xlu0 %v919, 6
        %v958 = vpop.permute.xlu0 %957
        %959 = vrot.lane.b32.xlu0 %v920, 6
        %v960 = vpop.permute.xlu0 %959
        %961 = vrot.lane.b32.xlu0 %v921, 6
        %v962 = vpop.permute.xlu0 %961
        %963 = vrot.lane.b32.xlu0 %v922, 6
        %v964 = vpop.permute.xlu0 %963
        %965 = vrot.lane.b32.xlu0 %v923, 6
        %v966 = vpop.permute.xlu0 %965
        %967 = vrot.lane.b32.xlu0 %v924, 6
        %v968 = vpop.permute.xlu0 %967
        %969 = vrot.lane.b32.xlu0 %v925, 6
        %v970 = vpop.permute.xlu0 %969
        %vm979 = vcmask 97328
        %980 = vst.msk [vmem:[%s937] sm:$0xff] %vm979, %v956
        %981 = vst.msk [vmem:[%s937 + $0x8] sm:$0xff] %vm979, %v958
        %982 = vst.msk [vmem:[%s937 + $0x10] sm:$0xff] %vm979, %v960
        %983 = vst.msk [vmem:[%s937 + $0x18] sm:$0xff] %vm979, %v962
        %984 = vst.msk [vmem:[%s937 + $0x20] sm:$0xff] %vm979, %v964
        %985 = vst.msk [vmem:[%s937 + $0x28] sm:$0xff] %vm979, %v966
        %986 = vst.msk [vmem:[%s937 + $0x30] sm:$0xff] %vm979, %v968
        %987 = vst.msk [vmem:[%s937 + $0x38] sm:$0xff] %vm979, %v970
        %988 = vrot.lane.b32.xlu0 %v918, 12
        %v989 = vpop.permute.xlu0 %988
        %990 = vrot.lane.b32.xlu0 %v919, 12
        %v991 = vpop.permute.xlu0 %990
        %992 = vrot.lane.b32.xlu0 %v920, 12
        %v993 = vpop.permute.xlu0 %992
        %994 = vrot.lane.b32.xlu0 %v921, 12
        %v995 = vpop.permute.xlu0 %994
        %996 = vrot.lane.b32.xlu0 %v922, 12
        %v997 = vpop.permute.xlu0 %996
        %998 = vrot.lane.b32.xlu0 %v923, 12
        %v999 = vpop.permute.xlu0 %998
        %1000 = vrot.lane.b32.xlu0 %v924, 12
        %v1001 = vpop.permute.xlu0 %1000
        %1002 = vrot.lane.b32.xlu0 %v925, 12
        %v1003 = vpop.permute.xlu0 %1002
        %vm1012 = vcmask 146529
        %1013 = vst.msk [vmem:[%s937 - $0x1] sm:$0xfe] %vm1012, %v989
        %1014 = vst.msk [vmem:[%s937 + $0x7] sm:$0xfe] %vm1012, %v991
        %1015 = vst.msk [vmem:[%s937 + $0xf] sm:$0xfe] %vm1012, %v993
        %1016 = vst.msk [vmem:[%s937 + $0x17] sm:$0xfe] %vm1012, %v995
        %1017 = vst.msk [vmem:[%s937 + $0x1f] sm:$0xfe] %vm1012, %v997
        %1018 = vst.msk [vmem:[%s937 + $0x27] sm:$0xfe] %vm1012, %v999
        %1019 = vst.msk [vmem:[%s937 + $0x2f] sm:$0xfe] %vm1012, %v1001
        %1020 = vst.msk [vmem:[%s937 + $0x37] sm:$0xfe] %vm1012, %v1003
        %1021 = vst.msk [vmem:[#allocation5] sm:$0xff] %vm584, 0.0
        %1022 = vst.msk [vmem:[#allocation5 + $0x8] sm:$0xff] %vm584, 0.0
        %1023 = vst.msk [vmem:[#allocation5 + $0x10] sm:$0xff] %vm584, 0.0
        %1024 = vst.msk [vmem:[#allocation5 + $0x18] sm:$0xff] %vm584, 0.0
        %1025 = vst.msk [vmem:[#allocation5 + $0x20] sm:$0xff] %vm584, 0.0
        %1026 = vst.msk [vmem:[#allocation5 + $0x28] sm:$0xff] %vm584, 0.0
        %1027 = vst.msk [vmem:[#allocation5 + $0x30] sm:$0xff] %vm584, 0.0
        %1028 = vst.msk [vmem:[#allocation5 + $0x38] sm:$0xff] %vm584, 0.0
        %v1029 = vld [vmem:[#allocation4] sm:$0xff]
        %v1030 = vld [vmem:[#allocation4 + $0x8] sm:$0xff]
        %v1031 = vld [vmem:[#allocation4 + $0x10] sm:$0xff]
        %v1032 = vld [vmem:[#allocation4 + $0x18] sm:$0xff]
        %v1033 = vld [vmem:[#allocation4 + $0x20] sm:$0xff]
        %v1034 = vld [vmem:[#allocation4 + $0x28] sm:$0xff]
        %v1035 = vld [vmem:[#allocation4 + $0x30] sm:$0xff]
        %v1036 = vld [vmem:[#allocation4 + $0x38] sm:$0xff]
        %v1037 = vld [vmem:[#allocation5] sm:$0xff]
        %v1038 = vld [vmem:[#allocation5 + $0x8] sm:$0xff]
        %v1039 = vld [vmem:[#allocation5 + $0x10] sm:$0xff]
        %v1040 = vld [vmem:[#allocation5 + $0x18] sm:$0xff]
        %v1041 = vld [vmem:[#allocation5 + $0x20] sm:$0xff]
        %v1042 = vld [vmem:[#allocation5 + $0x28] sm:$0xff]
        %v1043 = vld [vmem:[#allocation5 + $0x30] sm:$0xff]
        %v1044 = vld [vmem:[#allocation5 + $0x38] sm:$0xff]
        %v1045 = vld [vmem:[%s5] sm:$0xff]
        %v1046 = vld [vmem:[%s5 + $0x8] sm:$0xff]
        %v1047 = vld [vmem:[%s5 + $0x10] sm:$0x3]
        %v1049 = vsel %vm926, %v1029, 0
        %v1052 = vsel %vm926, %v1030, 0
        %v1055 = vsel %vm926, %v1031, 0
        %v1058 = vsel %vm926, %v1032, 0
        %v1061 = vsel %vm926, %v1033, 0
        %v1064 = vsel %vm926, %v1034, 0
        %v1067 = vsel %vm926, %v1035, 0
        %v1070 = vsel %vm926, %v1036, 0
        %vm1072 = vcmask 1041408
        %v1074 = vsel %vm1072, %v1047, 0
        %1076 = vmatprep.subr.mxu0 0.0
        %1077 = vmatpush1.msra.mxu0 0.0
        %1078 = vmatprep.subr.mxu0 0.0
        %1079 = vmatpush1.msra.mxu0 0.0
        %1080 = vmatprep.subr.mxu0 0.0
        %1081 = vmatpush1.msra.mxu0 0.0
        %1082 = vmatprep.subr.mxu0 0.0
        %1083 = vmatpush1.msra.mxu0 0.0
        %1084 = vmatprep.subr.mxu0 0.0
        %1085 = vmatpush1.msra.mxu0 0.0
        %1086 = vmatprep.subr.mxu0 0.0
        %1087 = vmatpush1.msra.mxu0 0.0
        %1088 = vmatprep.subr.mxu0 0.0
        %1089 = vmatpush1.msra.mxu0 0.0
        %1090 = vmatprep.subr.mxu0 0.0
        %1091 = vmatpush1.msra.mxu0 0.0
        %1092 = vmatprep.subr.mxu0 0.0
        %1093 = vmatpush1.msra.mxu0 0.0
        %1094 = vmatprep.subr.mxu0 0.0
        %1095 = vmatpush1.msra.mxu0 0.0
        %1096 = vmatprep.subr.mxu0 0.0
        %1097 = vmatpush1.msra.mxu0 0.0
        %1098 = vmatprep.subr.mxu0 0.0
        %1099 = vmatpush1.msra.mxu0 0.0
        %1100 = vmatprep.subr.mxu0 0.0
        %1101 = vmatpush1.msra.mxu0 0.0
        %1102 = vmatprep.subr.mxu0 0.0
        %1103 = vmatpush1.msra.mxu0 %v1074
        %1104 = vmatprep.subr.mxu0 0.0
        %1105 = vmatpush1.msra.mxu0 %v1046
        %1106 = vmatprep.subr.mxu0 0.0
        %1107 = vmatpush1.msra.mxu0 %v1045
        %1108 = vmatprep.subr.mxu0 0.0
        %1109 = vmatpush2.msra.mxu0 0.0
        %1110 = vmatprep.subr.mxu0 0.0
        %1111 = vmatpush2.msra.mxu0 0.0
        %1112 = vmatprep.subr.mxu0 0.0
        %1113 = vmatpush2.msra.mxu0 0.0
        %1114 = vmatprep.subr.mxu0 0.0
        %1115 = vmatpush2.msra.mxu0 0.0
        %1116 = vmatprep.subr.mxu0 0.0
        %1117 = vmatpush2.msra.mxu0 0.0
        %1118 = vmatprep.subr.mxu0 0.0
        %1119 = vmatpush2.msra.mxu0 0.0
        %1120 = vmatprep.subr.mxu0 0.0
        %1121 = vmatpush2.msra.mxu0 0.0
        %1122 = vmatprep.subr.mxu0 0.0
        %1123 = vmatpush2.msra.mxu0 0.0
        %1124 = vmatprep.subr.mxu0 0.0
        %1125 = vmatpush2.msra.mxu0 0.0
        %1126 = vmatprep.subr.mxu0 0.0
        %1127 = vmatpush2.msra.mxu0 0.0
        %1128 = vmatprep.subr.mxu0 0.0
        %1129 = vmatpush2.msra.mxu0 0.0
        %1130 = vmatprep.subr.mxu0 0.0
        %1131 = vmatpush2.msra.mxu0 0.0
        %1132 = vmatprep.subr.mxu0 0.0
        %1133 = vmatpush2.msra.mxu0 0.0
        %1134 = vmatprep.subr.mxu0 0.0
        %1135 = vmatpush2.msra.mxu0 0.0
        %1136 = vmatprep.subr.mxu0 0.0
        %1137 = vmatpush2.msra.mxu0 0.0
        %1138 = vmatprep.subr.mxu0 0.0
        %1139 = vmatpush2.msra.mxu0 0.0
        %1140 = vmatprep.mubr.f32.mxu0 0.0
        %1141 = vmatmul.mubr.f32.gmra.mxu0 %v1049
        %v1142 = vpop.f32.mrf.mxu0
        %v1143 = vadd.f32 0.0, %v1142
        %v1144 = vpop.f32.mrf.mxu0
        %1145 = vmatprep.mubr.f32.mxu0 0.0
        %1146 = vmatmul.mubr.f32.gmra.mxu0 %v1052
        %v1147 = vpop.f32.mrf.mxu0
        %v1148 = vadd.f32 0.0, %v1147
        %v1149 = vpop.f32.mrf.mxu0
        %1150 = vmatprep.mubr.f32.mxu0 0.0
        %1151 = vmatmul.mubr.f32.gmra.mxu0 %v1055
        %v1152 = vpop.f32.mrf.mxu0
        %v1153 = vadd.f32 0.0, %v1152
        %v1154 = vpop.f32.mrf.mxu0
        %1155 = vmatprep.mubr.f32.mxu0 0.0
        %1156 = vmatmul.mubr.f32.gmra.mxu0 %v1058
        %v1157 = vpop.f32.mrf.mxu0
        %v1158 = vadd.f32 0.0, %v1157
        %v1159 = vpop.f32.mrf.mxu0
        %1160 = vmatprep.mubr.f32.mxu0 0.0
        %1161 = vmatmul.mubr.f32.gmra.mxu0 %v1061
        %v1162 = vpop.f32.mrf.mxu0
        %v1163 = vadd.f32 0.0, %v1162
        %v1164 = vpop.f32.mrf.mxu0
        %1165 = vmatprep.mubr.f32.mxu0 0.0
        %1166 = vmatmul.mubr.f32.gmra.mxu0 %v1064
        %v1167 = vpop.f32.mrf.mxu0
        %v1168 = vadd.f32 0.0, %v1167
        %v1169 = vpop.f32.mrf.mxu0
        %1170 = vmatprep.mubr.f32.mxu0 0.0
        %1171 = vmatmul.mubr.f32.gmra.mxu0 %v1067
        %v1172 = vpop.f32.mrf.mxu0
        %v1173 = vadd.f32 0.0, %v1172
        %v1174 = vpop.f32.mrf.mxu0
        %1175 = vmatprep.mubr.f32.mxu0 0.0
        %1176 = vmatmul.mubr.f32.gmra.mxu0 %v1070
        %v1177 = vpop.f32.mrf.mxu0
        %v1178 = vadd.f32 0.0, %v1177
        %v1179 = vpop.f32.mrf.mxu0
        %1180 = vdwg.mxu0
        %v1181 = vadd.f32 %v1037, %v1143
        %v1182 = vadd.f32 %v1038, %v1148
        %v1183 = vadd.f32 %v1039, %v1153
        %v1184 = vadd.f32 %v1040, %v1158
        %v1185 = vadd.f32 %v1041, %v1163
        %v1186 = vadd.f32 %v1042, %v1168
        %v1187 = vadd.f32 %v1043, %v1173
        %v1188 = vadd.f32 %v1044, %v1178
        %1189 = vst.msk [vmem:[#allocation5] sm:$0xff] %vm584, %v1181
        %1190 = vst.msk [vmem:[#allocation5 + $0x8] sm:$0xff] %vm584, %v1182
        %1191 = vst.msk [vmem:[#allocation5 + $0x10] sm:$0xff] %vm584, %v1183
        %1192 = vst.msk [vmem:[#allocation5 + $0x18] sm:$0xff] %vm584, %v1184
        %1193 = vst.msk [vmem:[#allocation5 + $0x20] sm:$0xff] %vm584, %v1185
        %1194 = vst.msk [vmem:[#allocation5 + $0x28] sm:$0xff] %vm584, %v1186
        %1195 = vst.msk [vmem:[#allocation5 + $0x30] sm:$0xff] %vm584, %v1187
        %1196 = vst.msk [vmem:[#allocation5 + $0x38] sm:$0xff] %vm584, %v1188
        %v1197 = vld [vmem:[%s937] sm:$0xff]
        %v1198 = vld [vmem:[%s937 + $0x8] sm:$0xff]
        %v1199 = vld [vmem:[%s937 + $0x10] sm:$0xff]
        %v1200 = vld [vmem:[%s937 + $0x18] sm:$0xff]
        %v1201 = vld [vmem:[%s937 + $0x20] sm:$0xff]
        %v1202 = vld [vmem:[%s937 + $0x28] sm:$0xff]
        %v1203 = vld [vmem:[%s937 + $0x30] sm:$0xff]
        %v1204 = vld [vmem:[%s937 + $0x38] sm:$0xff]
        %v1205 = vld [vmem:[#allocation5] sm:$0xff]
        %v1206 = vld [vmem:[#allocation5 + $0x8] sm:$0xff]
        %v1207 = vld [vmem:[#allocation5 + $0x10] sm:$0xff]
        %v1208 = vld [vmem:[#allocation5 + $0x18] sm:$0xff]
        %v1209 = vld [vmem:[#allocation5 + $0x20] sm:$0xff]
        %v1210 = vld [vmem:[#allocation5 + $0x28] sm:$0xff]
        %v1211 = vld [vmem:[#allocation5 + $0x30] sm:$0xff]
        %v1212 = vld [vmem:[#allocation5 + $0x38] sm:$0xff]
        %s1213 = scalar_lea.vmem %s5, 24
        %v1214 = vld [vmem:[%s1213] sm:$0xff]
        %v1215 = vld [vmem:[%s1213 + $0x8] sm:$0xff]
        %v1216 = vld [vmem:[%s1213 + $0x10] sm:$0x3]
        %v1218 = vsel %vm926, %v1197, 0
        %v1221 = vsel %vm926, %v1198, 0
        %v1224 = vsel %vm926, %v1199, 0
        %v1227 = vsel %vm926, %v1200, 0
        %v1230 = vsel %vm926, %v1201, 0
        %v1233 = vsel %vm926, %v1202, 0
        %v1236 = vsel %vm926, %v1203, 0
        %v1239 = vsel %vm926, %v1204, 0
        %v1242 = vsel %vm1072, %v1216, 0
        %1244 = vmatprep.subr.mxu0 0.0
        %1245 = vmatpush1.msra.mxu0 0.0
        %1246 = vmatprep.subr.mxu0 0.0
        %1247 = vmatpush1.msra.mxu0 0.0
        %1248 = vmatprep.subr.mxu0 0.0
        %1249 = vmatpush1.msra.mxu0 0.0
        %1250 = vmatprep.subr.mxu0 0.0
        %1251 = vmatpush1.msra.mxu0 0.0
        %1252 = vmatprep.subr.mxu0 0.0
        %1253 = vmatpush1.msra.mxu0 0.0
        %1254 = vmatprep.subr.mxu0 0.0
        %1255 = vmatpush1.msra.mxu0 0.0
        %1256 = vmatprep.subr.mxu0 0.0
        %1257 = vmatpush1.msra.mxu0 0.0
        %1258 = vmatprep.subr.mxu0 0.0
        %1259 = vmatpush1.msra.mxu0 0.0
        %1260 = vmatprep.subr.mxu0 0.0
        %1261 = vmatpush1.msra.mxu0 0.0
        %1262 = vmatprep.subr.mxu0 0.0
        %1263 = vmatpush1.msra.mxu0 0.0
        %1264 = vmatprep.subr.mxu0 0.0
        %1265 = vmatpush1.msra.mxu0 0.0
        %1266 = vmatprep.subr.mxu0 0.0
        %1267 = vmatpush1.msra.mxu0 0.0
        %1268 = vmatprep.subr.mxu0 0.0
        %1269 = vmatpush1.msra.mxu0 0.0
        %1270 = vmatprep.subr.mxu0 0.0
        %1271 = vmatpush1.msra.mxu0 %v1242
        %1272 = vmatprep.subr.mxu0 0.0
        %1273 = vmatpush1.msra.mxu0 %v1215
        %1274 = vmatprep.subr.mxu0 0.0
        %1275 = vmatpush1.msra.mxu0 %v1214
        %1276 = vmatprep.subr.mxu0 0.0
        %1277 = vmatpush2.msra.mxu0 0.0
        %1278 = vmatprep.subr.mxu0 0.0
        %1279 = vmatpush2.msra.mxu0 0.0
        %1280 = vmatprep.subr.mxu0 0.0
        %1281 = vmatpush2.msra.mxu0 0.0
        %1282 = vmatprep.subr.mxu0 0.0
        %1283 = vmatpush2.msra.mxu0 0.0
        %1284 = vmatprep.subr.mxu0 0.0
        %1285 = vmatpush2.msra.mxu0 0.0
        %1286 = vmatprep.subr.mxu0 0.0
        %1287 = vmatpush2.msra.mxu0 0.0
        %1288 = vmatprep.subr.mxu0 0.0
        %1289 = vmatpush2.msra.mxu0 0.0
        %1290 = vmatprep.subr.mxu0 0.0
        %1291 = vmatpush2.msra.mxu0 0.0
        %1292 = vmatprep.subr.mxu0 0.0
        %1293 = vmatpush2.msra.mxu0 0.0
        %1294 = vmatprep.subr.mxu0 0.0
        %1295 = vmatpush2.msra.mxu0 0.0
        %1296 = vmatprep.subr.mxu0 0.0
        %1297 = vmatpush2.msra.mxu0 0.0
        %1298 = vmatprep.subr.mxu0 0.0
        %1299 = vmatpush2.msra.mxu0 0.0
        %1300 = vmatprep.subr.mxu0 0.0
        %1301 = vmatpush2.msra.mxu0 0.0
        %1302 = vmatprep.subr.mxu0 0.0
        %1303 = vmatpush2.msra.mxu0 0.0
        %1304 = vmatprep.subr.mxu0 0.0
        %1305 = vmatpush2.msra.mxu0 0.0
        %1306 = vmatprep.subr.mxu0 0.0
        %1307 = vmatpush2.msra.mxu0 0.0
        %1308 = vmatprep.mubr.f32.mxu0 0.0
        %1309 = vmatmul.mubr.f32.gmra.mxu0 %v1218
        %v1310 = vpop.f32.mrf.mxu0
        %v1311 = vadd.f32 0.0, %v1310
        %v1312 = vpop.f32.mrf.mxu0
        %1313 = vmatprep.mubr.f32.mxu0 0.0
        %1314 = vmatmul.mubr.f32.gmra.mxu0 %v1221
        %v1315 = vpop.f32.mrf.mxu0
        %v1316 = vadd.f32 0.0, %v1315
        %v1317 = vpop.f32.mrf.mxu0
        %1318 = vmatprep.mubr.f32.mxu0 0.0
        %1319 = vmatmul.mubr.f32.gmra.mxu0 %v1224
        %v1320 = vpop.f32.mrf.mxu0
        %v1321 = vadd.f32 0.0, %v1320
        %v1322 = vpop.f32.mrf.mxu0
        %1323 = vmatprep.mubr.f32.mxu0 0.0
        %1324 = vmatmul.mubr.f32.gmra.mxu0 %v1227
        %v1325 = vpop.f32.mrf.mxu0
        %v1326 = vadd.f32 0.0, %v1325
        %v1327 = vpop.f32.mrf.mxu0
        %1328 = vmatprep.mubr.f32.mxu0 0.0
        %1329 = vmatmul.mubr.f32.gmra.mxu0 %v1230
        %v1330 = vpop.f32.mrf.mxu0
        %v1331 = vadd.f32 0.0, %v1330
        %v1332 = vpop.f32.mrf.mxu0
        %1333 = vmatprep.mubr.f32.mxu0 0.0
        %1334 = vmatmul.mubr.f32.gmra.mxu0 %v1233
        %v1335 = vpop.f32.mrf.mxu0
        %v1336 = vadd.f32 0.0, %v1335
        %v1337 = vpop.f32.mrf.mxu0
        %1338 = vmatprep.mubr.f32.mxu0 0.0
        %1339 = vmatmul.mubr.f32.gmra.mxu0 %v1236
        %v1340 = vpop.f32.mrf.mxu0
        %v1341 = vadd.f32 0.0, %v1340
        %v1342 = vpop.f32.mrf.mxu0
        %1343 = vmatprep.mubr.f32.mxu0 0.0
        %1344 = vmatmul.mubr.f32.gmra.mxu0 %v1239
        %v1345 = vpop.f32.mrf.mxu0
        %v1346 = vadd.f32 0.0, %v1345
        %v1347 = vpop.f32.mrf.mxu0
        %1348 = vdwg.mxu0
        %v1349 = vadd.f32 %v1205, %v1311
        %v1350 = vadd.f32 %v1206, %v1316
        %v1351 = vadd.f32 %v1207, %v1321
        %v1352 = vadd.f32 %v1208, %v1326
        %v1353 = vadd.f32 %v1209, %v1331
        %v1354 = vadd.f32 %v1210, %v1336
        %v1355 = vadd.f32 %v1211, %v1341
        %v1356 = vadd.f32 %v1212, %v1346
        %1357 = vst.msk [vmem:[#allocation5] sm:$0xff] %vm584, %v1349
        %1358 = vst.msk [vmem:[#allocation5 + $0x8] sm:$0xff] %vm584, %v1350
        %1359 = vst.msk [vmem:[#allocation5 + $0x10] sm:$0xff] %vm584, %v1351
        %1360 = vst.msk [vmem:[#allocation5 + $0x18] sm:$0xff] %vm584, %v1352
        %1361 = vst.msk [vmem:[#allocation5 + $0x20] sm:$0xff] %vm584, %v1353
        %1362 = vst.msk [vmem:[#allocation5 + $0x28] sm:$0xff] %vm584, %v1354
        %1363 = vst.msk [vmem:[#allocation5 + $0x30] sm:$0xff] %vm584, %v1355
        %1364 = vst.msk [vmem:[#allocation5 + $0x38] sm:$0xff] %vm584, %v1356
        %s1365 = scalar_lea.vmem [#allocation4], 16
        %v1366 = vld [vmem:[%s1365] sm:$0xff]
        %v1367 = vld [vmem:[%s1365 + $0x8] sm:$0xff]
        %v1368 = vld [vmem:[%s1365 + $0x10] sm:$0xff]
        %v1369 = vld [vmem:[%s1365 + $0x18] sm:$0xff]
        %v1370 = vld [vmem:[%s1365 + $0x20] sm:$0xff]
        %v1371 = vld [vmem:[%s1365 + $0x28] sm:$0xff]
        %v1372 = vld [vmem:[%s1365 + $0x30] sm:$0xff]
        %v1373 = vld [vmem:[%s1365 + $0x38] sm:$0xff]
        %v1374 = vld [vmem:[#allocation5] sm:$0xff]
        %v1375 = vld [vmem:[#allocation5 + $0x8] sm:$0xff]
        %v1376 = vld [vmem:[#allocation5 + $0x10] sm:$0xff]
        %v1377 = vld [vmem:[#allocation5 + $0x18] sm:$0xff]
        %v1378 = vld [vmem:[#allocation5 + $0x20] sm:$0xff]
        %v1379 = vld [vmem:[#allocation5 + $0x28] sm:$0xff]
        %v1380 = vld [vmem:[#allocation5 + $0x30] sm:$0xff]
        %v1381 = vld [vmem:[#allocation5 + $0x38] sm:$0xff]
        %s1382 = scalar_lea.vmem %s5, 48
        %v1383 = vld [vmem:[%s1382] sm:$0xff]
        %v1384 = vld [vmem:[%s1382 + $0x8] sm:$0xff]
        %v1385 = vld [vmem:[%s1382 + $0x10] sm:$0x3]
        %v1387 = vsel %vm926, %v1366, 0
        %v1390 = vsel %vm926, %v1367, 0
        %v1393 = vsel %vm926, %v1368, 0
        %v1396 = vsel %vm926, %v1369, 0
        %v1399 = vsel %vm926, %v1370, 0
        %v1402 = vsel %vm926, %v1371, 0
        %v1405 = vsel %vm926, %v1372, 0
        %v1408 = vsel %vm926, %v1373, 0
        %v1411 = vsel %vm1072, %v1385, 0
        %1413 = vmatprep.subr.mxu0 0.0
        %1414 = vmatpush1.msra.mxu0 0.0
        %1415 = vmatprep.subr.mxu0 0.0
        %1416 = vmatpush1.msra.mxu0 0.0
        %1417 = vmatprep.subr.mxu0 0.0
        %1418 = vmatpush1.msra.mxu0 0.0
        %1419 = vmatprep.subr.mxu0 0.0
        %1420 = vmatpush1.msra.mxu0 0.0
        %1421 = vmatprep.subr.mxu0 0.0
        %1422 = vmatpush1.msra.mxu0 0.0
        %1423 = vmatprep.subr.mxu0 0.0
        %1424 = vmatpush1.msra.mxu0 0.0
        %1425 = vmatprep.subr.mxu0 0.0
        %1426 = vmatpush1.msra.mxu0 0.0
        %1427 = vmatprep.subr.mxu0 0.0
        %1428 = vmatpush1.msra.mxu0 0.0
        %1429 = vmatprep.subr.mxu0 0.0
        %1430 = vmatpush1.msra.mxu0 0.0
        %1431 = vmatprep.subr.mxu0 0.0
        %1432 = vmatpush1.msra.mxu0 0.0
        %1433 = vmatprep.subr.mxu0 0.0
        %1434 = vmatpush1.msra.mxu0 0.0
        %1435 = vmatprep.subr.mxu0 0.0
        %1436 = vmatpush1.msra.mxu0 0.0
        %1437 = vmatprep.subr.mxu0 0.0
        %1438 = vmatpush1.msra.mxu0 0.0
        %1439 = vmatprep.subr.mxu0 0.0
        %1440 = vmatpush1.msra.mxu0 %v1411
        %1441 = vmatprep.subr.mxu0 0.0
        %1442 = vmatpush1.msra.mxu0 %v1384
        %1443 = vmatprep.subr.mxu0 0.0
        %1444 = vmatpush1.msra.mxu0 %v1383
        %1445 = vmatprep.subr.mxu0 0.0
        %1446 = vmatpush2.msra.mxu0 0.0
        %1447 = vmatprep.subr.mxu0 0.0
        %1448 = vmatpush2.msra.mxu0 0.0
        %1449 = vmatprep.subr.mxu0 0.0
        %1450 = vmatpush2.msra.mxu0 0.0
        %1451 = vmatprep.subr.mxu0 0.0
        %1452 = vmatpush2.msra.mxu0 0.0
        %1453 = vmatprep.subr.mxu0 0.0
        %1454 = vmatpush2.msra.mxu0 0.0
        %1455 = vmatprep.subr.mxu0 0.0
        %1456 = vmatpush2.msra.mxu0 0.0
        %1457 = vmatprep.subr.mxu0 0.0
        %1458 = vmatpush2.msra.mxu0 0.0
        %1459 = vmatprep.subr.mxu0 0.0
        %1460 = vmatpush2.msra.mxu0 0.0
        %1461 = vmatprep.subr.mxu0 0.0
        %1462 = vmatpush2.msra.mxu0 0.0
        %1463 = vmatprep.subr.mxu0 0.0
        %1464 = vmatpush2.msra.mxu0 0.0
        %1465 = vmatprep.subr.mxu0 0.0
        %1466 = vmatpush2.msra.mxu0 0.0
        %1467 = vmatprep.subr.mxu0 0.0
        %1468 = vmatpush2.msra.mxu0 0.0
        %1469 = vmatprep.subr.mxu0 0.0
        %1470 = vmatpush2.msra.mxu0 0.0
        %1471 = vmatprep.subr.mxu0 0.0
        %1472 = vmatpush2.msra.mxu0 0.0
        %1473 = vmatprep.subr.mxu0 0.0
        %1474 = vmatpush2.msra.mxu0 0.0
        %1475 = vmatprep.subr.mxu0 0.0
        %1476 = vmatpush2.msra.mxu0 0.0
        %1477 = vmatprep.mubr.f32.mxu0 0.0
        %1478 = vmatmul.mubr.f32.gmra.mxu0 %v1387
        %v1479 = vpop.f32.mrf.mxu0
        %v1480 = vadd.f32 0.0, %v1479
        %v1481 = vpop.f32.mrf.mxu0
        %1482 = vmatprep.mubr.f32.mxu0 0.0
        %1483 = vmatmul.mubr.f32.gmra.mxu0 %v1390
        %v1484 = vpop.f32.mrf.mxu0
        %v1485 = vadd.f32 0.0, %v1484
        %v1486 = vpop.f32.mrf.mxu0
        %1487 = vmatprep.mubr.f32.mxu0 0.0
        %1488 = vmatmul.mubr.f32.gmra.mxu0 %v1393
        %v1489 = vpop.f32.mrf.mxu0
        %v1490 = vadd.f32 0.0, %v1489
        %v1491 = vpop.f32.mrf.mxu0
        %1492 = vmatprep.mubr.f32.mxu0 0.0
        %1493 = vmatmul.mubr.f32.gmra.mxu0 %v1396
        %v1494 = vpop.f32.mrf.mxu0
        %v1495 = vadd.f32 0.0, %v1494
        %v1496 = vpop.f32.mrf.mxu0
        %1497 = vmatprep.mubr.f32.mxu0 0.0
        %1498 = vmatmul.mubr.f32.gmra.mxu0 %v1399
        %v1499 = vpop.f32.mrf.mxu0
        %v1500 = vadd.f32 0.0, %v1499
        %v1501 = vpop.f32.mrf.mxu0
        %1502 = vmatprep.mubr.f32.mxu0 0.0
        %1503 = vmatmul.mubr.f32.gmra.mxu0 %v1402
        %v1504 = vpop.f32.mrf.mxu0
        %v1505 = vadd.f32 0.0, %v1504
        %v1506 = vpop.f32.mrf.mxu0
        %1507 = vmatprep.mubr.f32.mxu0 0.0
        %1508 = vmatmul.mubr.f32.gmra.mxu0 %v1405
        %v1509 = vpop.f32.mrf.mxu0
        %v1510 = vadd.f32 0.0, %v1509
        %v1511 = vpop.f32.mrf.mxu0
        %1512 = vmatprep.mubr.f32.mxu0 0.0
        %1513 = vmatmul.mubr.f32.gmra.mxu0 %v1408
        %v1514 = vpop.f32.mrf.mxu0
        %v1515 = vadd.f32 0.0, %v1514
        %v1516 = vpop.f32.mrf.mxu0
        %1517 = vdwg.mxu0
        %v1518 = vadd.f32 %v1374, %v1480
        %v1519 = vadd.f32 %v1375, %v1485
        %v1520 = vadd.f32 %v1376, %v1490
        %v1521 = vadd.f32 %v1377, %v1495
        %v1522 = vadd.f32 %v1378, %v1500
        %v1523 = vadd.f32 %v1379, %v1505
        %v1524 = vadd.f32 %v1380, %v1510
        %v1525 = vadd.f32 %v1381, %v1515
        %1526 = vst.msk [vmem:[#allocation5] sm:$0xff] %vm584, %v1518
        %1527 = vst.msk [vmem:[#allocation5 + $0x8] sm:$0xff] %vm584, %v1519
        %1528 = vst.msk [vmem:[#allocation5 + $0x10] sm:$0xff] %vm584, %v1520
        %1529 = vst.msk [vmem:[#allocation5 + $0x18] sm:$0xff] %vm584, %v1521
        %1530 = vst.msk [vmem:[#allocation5 + $0x20] sm:$0xff] %vm584, %v1522
        %1531 = vst.msk [vmem:[#allocation5 + $0x28] sm:$0xff] %vm584, %v1523
        %1532 = vst.msk [vmem:[#allocation5 + $0x30] sm:$0xff] %vm584, %v1524
        %1533 = vst.msk [vmem:[#allocation5 + $0x38] sm:$0xff] %vm584, %v1525
        %v1534 = vld [vmem:[#allocation5] sm:$0xff]
        %v1535 = vld [vmem:[#allocation5 + $0x8] sm:$0xff]
        %v1536 = vld [vmem:[#allocation5 + $0x10] sm:$0xff]
        %v1537 = vld [vmem:[#allocation5 + $0x18] sm:$0xff]
        %v1538 = vld [vmem:[#allocation5 + $0x20] sm:$0xff]
        %v1539 = vld [vmem:[#allocation5 + $0x28] sm:$0xff]
        %v1540 = vld [vmem:[#allocation5 + $0x30] sm:$0xff]
        %v1541 = vld [vmem:[#allocation5 + $0x38] sm:$0xff]
        %v1542 = vld [vmem:[%s6] sm:$0x1]
        %v1544 = vlaneseq
        %v1545 = vshrl.u32 %v1544, 7
        %v1546 = vsub.s32 0, %v1545
        %v1547 = vrot.slane %v1542, %v1546
        %v1549 = vmul.f32 %v1534, %v1547
        %v1550 = vmul.f32 %v1535, %v1547
        %v1551 = vmul.f32 %v1536, %v1547
        %v1552 = vmul.f32 %v1537, %v1547
        %v1553 = vmul.f32 %v1538, %v1547
        %v1554 = vmul.f32 %v1539, %v1547
        %v1555 = vmul.f32 %v1540, %v1547
        %v1556 = vmul.f32 %v1541, %v1547
        %v1557 = vld [vmem:[%s7] sm:$0x1]
        %v1559 = vlaneseq
        %v1560 = vshrl.u32 %v1559, 7
        %v1561 = vsub.s32 0, %v1560
        %v1562 = vrot.slane %v1557, %v1561
        %v1564 = vadd.f32 %v1549, %v1562
        %v1565 = vadd.f32 %v1550, %v1562
        %v1566 = vadd.f32 %v1551, %v1562
        %v1567 = vadd.f32 %v1552, %v1562
        %v1568 = vadd.f32 %v1553, %v1562
        %v1569 = vadd.f32 %v1554, %v1562
        %v1570 = vadd.f32 %v1555, %v1562
        %v1571 = vadd.f32 %v1556, %v1562
        %v1572 = vmax.f32 %v1564, 0.0
        %v1573 = vmax.f32 %v1565, 0.0
        %v1574 = vmax.f32 %v1566, 0.0
        %v1575 = vmax.f32 %v1567, 0.0
        %v1576 = vmax.f32 %v1568, 0.0
        %v1577 = vmax.f32 %v1569, 0.0
        %v1578 = vmax.f32 %v1570, 0.0
        %v1579 = vmax.f32 %v1571, 0.0
        %1580 = vst.msk [vmem:[%s501] sm:$0xff] %vm584, %v1572
        %1581 = vst.msk [vmem:[%s501 + $0x8] sm:$0xff] %vm584, %v1573
        %1582 = vst.msk [vmem:[%s501 + $0x10] sm:$0xff] %vm584, %v1574
        %1583 = vst.msk [vmem:[%s501 + $0x18] sm:$0xff] %vm584, %v1575
        %1584 = vst.msk [vmem:[%s501 + $0x20] sm:$0xff] %vm584, %v1576
        %1585 = vst.msk [vmem:[%s501 + $0x28] sm:$0xff] %vm584, %v1577
        %1586 = vst.msk [vmem:[%s501 + $0x30] sm:$0xff] %vm584, %v1578
        %1587 = vst.msk [vmem:[%s501 + $0x38] sm:$0xff] %vm584, %v1579
        %v1588 = vld [vmem:[%s523] sm:$0xff]
        %v1589 = vld [vmem:[%s523 + $0x8] sm:$0xff]
        %v1590 = vld [vmem:[%s523 + $0x10] sm:$0xff]
        %v1591 = vld [vmem:[%s523 + $0x18] sm:$0xff]
        %v1592 = vld [vmem:[%s523 + $0x20] sm:$0xff]
        %v1593 = vld [vmem:[%s523 + $0x28] sm:$0xff]
        %v1594 = vld [vmem:[%s523 + $0x30] sm:$0xff]
        %v1595 = vld [vmem:[%s523 + $0x38] sm:$0xff]
        %v1596 = vld [vmem:[%s523 + $0x40] sm:$0xff]
        %v1597 = vld [vmem:[%s523 + $0x48] sm:$0xff]
        %v1598 = vld [vmem:[%s523 + $0x50] sm:$0xff]
        %v1599 = vld [vmem:[%s523 + $0x58] sm:$0xff]
        %v1600 = vld [vmem:[%s523 + $0x60] sm:$0xff]
        %v1601 = vld [vmem:[%s523 + $0x68] sm:$0xff]
        %v1602 = vld [vmem:[%s523 + $0x70] sm:$0xff]
        %v1603 = vld [vmem:[%s523 + $0x78] sm:$0xff]
        %v1604 = vld [vmem:[%s523 + $0x80] sm:$0xff]
        %v1605 = vld [vmem:[%s523 + $0x88] sm:$0xff]
        %v1606 = vld [vmem:[%s523 + $0x90] sm:$0xff]
        %v1607 = vld [vmem:[%s523 + $0x98] sm:$0xff]
        %v1608 = vld [vmem:[%s523 + $0xa0] sm:$0xff]
        %v1609 = vld [vmem:[%s523 + $0xa8] sm:$0xff]
        %v1610 = vld [vmem:[%s523 + $0xb0] sm:$0xff]
        %v1611 = vld [vmem:[%s523 + $0xb8] sm:$0xff]
        %v1612 = vld [vmem:[%s523 + $0xc0] sm:$0xff]
        %v1613 = vld [vmem:[%s523 + $0xc8] sm:$0xff]
        %v1614 = vld [vmem:[%s523 + $0xd0] sm:$0xff]
        %v1615 = vld [vmem:[%s523 + $0xd8] sm:$0xff]
        %v1616 = vld [vmem:[%s523 + $0xe0] sm:$0xff]
        %v1617 = vld [vmem:[%s523 + $0xe8] sm:$0xff]
        %v1618 = vld [vmem:[%s523 + $0xf0] sm:$0xff]
        %v1619 = vld [vmem:[%s523 + $0xf8] sm:$0xff]
        %vm1620 = vcmask 97280
        %1621 = vst.msk [vmem:[#allocation6] sm:$0xff] %vm1620, 0.0
        %1622 = vst.msk [vmem:[#allocation6 + $0x8] sm:$0xff] %vm1620, 0.0
        %1623 = vst.msk [vmem:[#allocation6 + $0x10] sm:$0xff] %vm1620, 0.0
        %1624 = vst.msk [vmem:[#allocation6 + $0x18] sm:$0xff] %vm1620, 0.0
        %1625 = vst.msk [vmem:[#allocation6 + $0x20] sm:$0xff] %vm1620, 0.0
        %1626 = vst.msk [vmem:[#allocation6 + $0x28] sm:$0xff] %vm1620, 0.0
        %1627 = vst.msk [vmem:[#allocation6 + $0x30] sm:$0xff] %vm1620, 0.0
        %1628 = vst.msk [vmem:[#allocation6 + $0x38] sm:$0xff] %vm1620, 0.0
        %1629 = vst.msk [vmem:[#allocation6 + $0x40] sm:$0xff] %vm1620, 0.0
        %1630 = vst.msk [vmem:[#allocation6 + $0x48] sm:$0xff] %vm1620, 0.0
        %1631 = vst.msk [vmem:[#allocation6 + $0x50] sm:$0xff] %vm1620, 0.0
        %1632 = vst.msk [vmem:[#allocation6 + $0x58] sm:$0xff] %vm1620, 0.0
        %1633 = vst.msk [vmem:[#allocation6 + $0x60] sm:$0xff] %vm1620, 0.0
        %1634 = vst.msk [vmem:[#allocation6 + $0x68] sm:$0xff] %vm1620, 0.0
        %1635 = vst.msk [vmem:[#allocation6 + $0x70] sm:$0xff] %vm1620, 0.0
        %1636 = vst.msk [vmem:[#allocation6 + $0x78] sm:$0xff] %vm1620, 0.0
        %1637 = vst.msk [vmem:[#allocation6 + $0x80] sm:$0xff] %vm1620, 0.0
        %1638 = vst.msk [vmem:[#allocation6 + $0x88] sm:$0xff] %vm1620, 0.0
        %1639 = vst.msk [vmem:[#allocation6 + $0x90] sm:$0xff] %vm1620, 0.0
        %1640 = vst.msk [vmem:[#allocation6 + $0x98] sm:$0xff] %vm1620, 0.0
        %1641 = vst.msk [vmem:[#allocation6 + $0xa0] sm:$0xff] %vm1620, 0.0
        %1642 = vst.msk [vmem:[#allocation6 + $0xa8] sm:$0xff] %vm1620, 0.0
        %1643 = vst.msk [vmem:[#allocation6 + $0xb0] sm:$0xff] %vm1620, 0.0
        %1644 = vst.msk [vmem:[#allocation6 + $0xb8] sm:$0xff] %vm1620, 0.0
        %1645 = vst.msk [vmem:[#allocation6 + $0xc0] sm:$0xff] %vm1620, 0.0
        %1646 = vst.msk [vmem:[#allocation6 + $0xc8] sm:$0xff] %vm1620, 0.0
        %1647 = vst.msk [vmem:[#allocation6 + $0xd0] sm:$0xff] %vm1620, 0.0
        %1648 = vst.msk [vmem:[#allocation6 + $0xd8] sm:$0xff] %vm1620, 0.0
        %1649 = vst.msk [vmem:[#allocation6 + $0xe0] sm:$0xff] %vm1620, 0.0
        %1650 = vst.msk [vmem:[#allocation6 + $0xe8] sm:$0xff] %vm1620, 0.0
        %1651 = vst.msk [vmem:[#allocation6 + $0xf0] sm:$0xff] %vm1620, 0.0
        %1652 = vst.msk [vmem:[#allocation6 + $0xf8] sm:$0xff] %vm1620, 0.0
        %1653 = vst.msk [vmem:[#allocation6 + $0x100] sm:$0xff] %vm1620, 0.0
        %1654 = vst.msk [vmem:[#allocation6 + $0x108] sm:$0xff] %vm1620, 0.0
        %1655 = vst.msk [vmem:[#allocation6 + $0x110] sm:$0xff] %vm1620, 0.0
        %1656 = vst.msk [vmem:[#allocation6 + $0x118] sm:$0xff] %vm1620, 0.0
        %s1657 = scalar_lea.vmem [#allocation6], 16
        %vm1658 = vcmask 31744
        %1659 = vst.msk [vmem:[%s1657 + $0x1] sm:$0xff] %vm1658, %v1588
        %vm1660 = vcmask 30720
        %1661 = vst.msk [vmem:[%s1657 + $0x9] sm:$0x7f] %vm1660, %v1589
        %1662 = vst.msk [vmem:[%s1657 + $0x11] sm:$0xff] %vm1658, %v1590
        %1663 = vst.msk [vmem:[%s1657 + $0x19] sm:$0x7f] %vm1660, %v1591
        %1664 = vst.msk [vmem:[%s1657 + $0x21] sm:$0xff] %vm1658, %v1592
        %1665 = vst.msk [vmem:[%s1657 + $0x29] sm:$0x7f] %vm1660, %v1593
        %1666 = vst.msk [vmem:[%s1657 + $0x31] sm:$0xff] %vm1658, %v1594
        %1667 = vst.msk [vmem:[%s1657 + $0x39] sm:$0x7f] %vm1660, %v1595
        %1668 = vst.msk [vmem:[%s1657 + $0x41] sm:$0xff] %vm1658, %v1596
        %1669 = vst.msk [vmem:[%s1657 + $0x49] sm:$0x7f] %vm1660, %v1597
        %1670 = vst.msk [vmem:[%s1657 + $0x51] sm:$0xff] %vm1658, %v1598
        %1671 = vst.msk [vmem:[%s1657 + $0x59] sm:$0x7f] %vm1660, %v1599
        %1672 = vst.msk [vmem:[%s1657 + $0x61] sm:$0xff] %vm1658, %v1600
        %1673 = vst.msk [vmem:[%s1657 + $0x69] sm:$0x7f] %vm1660, %v1601
        %1674 = vst.msk [vmem:[%s1657 + $0x71] sm:$0xff] %vm1658, %v1602
        %1675 = vst.msk [vmem:[%s1657 + $0x79] sm:$0x7f] %vm1660, %v1603
        %1676 = vst.msk [vmem:[%s1657 + $0x81] sm:$0xff] %vm1658, %v1604
        %1677 = vst.msk [vmem:[%s1657 + $0x89] sm:$0x7f] %vm1660, %v1605
        %1678 = vst.msk [vmem:[%s1657 + $0x91] sm:$0xff] %vm1658, %v1606
        %1679 = vst.msk [vmem:[%s1657 + $0x99] sm:$0x7f] %vm1660, %v1607
        %1680 = vst.msk [vmem:[%s1657 + $0xa1] sm:$0xff] %vm1658, %v1608
        %1681 = vst.msk [vmem:[%s1657 + $0xa9] sm:$0x7f] %vm1660, %v1609
        %1682 = vst.msk [vmem:[%s1657 + $0xb1] sm:$0xff] %vm1658, %v1610
        %1683 = vst.msk [vmem:[%s1657 + $0xb9] sm:$0x7f] %vm1660, %v1611
        %1684 = vst.msk [vmem:[%s1657 + $0xc1] sm:$0xff] %vm1658, %v1612
        %1685 = vst.msk [vmem:[%s1657 + $0xc9] sm:$0x7f] %vm1660, %v1613
        %1686 = vst.msk [vmem:[%s1657 + $0xd1] sm:$0xff] %vm1658, %v1614
        %1687 = vst.msk [vmem:[%s1657 + $0xd9] sm:$0x7f] %vm1660, %v1615
        %1688 = vst.msk [vmem:[%s1657 + $0xe1] sm:$0xff] %vm1658, %v1616
        %1689 = vst.msk [vmem:[%s1657 + $0xe9] sm:$0x7f] %vm1660, %v1617
        %1690 = vst.msk [vmem:[%s1657 + $0xf1] sm:$0xff] %vm1658, %v1618
        %1691 = vst.msk [vmem:[%s1657 + $0xf9] sm:$0x7f] %vm1660, %v1619
        %1724 = vrot.lane.b32.xlu0 %v1588, 4
        %v1725 = vpop.permute.xlu0 %1724
        %1726 = vrot.lane.b32.xlu0 %v1589, 4
        %v1727 = vpop.permute.xlu0 %1726
        %1728 = vrot.lane.b32.xlu0 %v1590, 4
        %v1729 = vpop.permute.xlu0 %1728
        %1730 = vrot.lane.b32.xlu0 %v1591, 4
        %v1731 = vpop.permute.xlu0 %1730
        %1732 = vrot.lane.b32.xlu0 %v1592, 4
        %v1733 = vpop.permute.xlu0 %1732
        %1734 = vrot.lane.b32.xlu0 %v1593, 4
        %v1735 = vpop.permute.xlu0 %1734
        %1736 = vrot.lane.b32.xlu0 %v1594, 4
        %v1737 = vpop.permute.xlu0 %1736
        %1738 = vrot.lane.b32.xlu0 %v1595, 4
        %v1739 = vpop.permute.xlu0 %1738
        %1740 = vrot.lane.b32.xlu0 %v1596, 4
        %v1741 = vpop.permute.xlu0 %1740
        %1742 = vrot.lane.b32.xlu0 %v1597, 4
        %v1743 = vpop.permute.xlu0 %1742
        %1744 = vrot.lane.b32.xlu0 %v1598, 4
        %v1745 = vpop.permute.xlu0 %1744
        %1746 = vrot.lane.b32.xlu0 %v1599, 4
        %v1747 = vpop.permute.xlu0 %1746
        %1748 = vrot.lane.b32.xlu0 %v1600, 4
        %v1749 = vpop.permute.xlu0 %1748
        %1750 = vrot.lane.b32.xlu0 %v1601, 4
        %v1751 = vpop.permute.xlu0 %1750
        %1752 = vrot.lane.b32.xlu0 %v1602, 4
        %v1753 = vpop.permute.xlu0 %1752
        %1754 = vrot.lane.b32.xlu0 %v1603, 4
        %v1755 = vpop.permute.xlu0 %1754
        %1756 = vrot.lane.b32.xlu0 %v1604, 4
        %v1757 = vpop.permute.xlu0 %1756
        %1758 = vrot.lane.b32.xlu0 %v1605, 4
        %v1759 = vpop.permute.xlu0 %1758
        %1760 = vrot.lane.b32.xlu0 %v1606, 4
        %v1761 = vpop.permute.xlu0 %1760
        %1762 = vrot.lane.b32.xlu0 %v1607, 4
        %v1763 = vpop.permute.xlu0 %1762
        %1764 = vrot.lane.b32.xlu0 %v1608, 4
        %v1765 = vpop.permute.xlu0 %1764
        %1766 = vrot.lane.b32.xlu0 %v1609, 4
        %v1767 = vpop.permute.xlu0 %1766
        %1768 = vrot.lane.b32.xlu0 %v1610, 4
        %v1769 = vpop.permute.xlu0 %1768
        %1770 = vrot.lane.b32.xlu0 %v1611, 4
        %v1771 = vpop.permute.xlu0 %1770
        %1772 = vrot.lane.b32.xlu0 %v1612, 4
        %v1773 = vpop.permute.xlu0 %1772
        %1774 = vrot.lane.b32.xlu0 %v1613, 4
        %v1775 = vpop.permute.xlu0 %1774
        %1776 = vrot.lane.b32.xlu0 %v1614, 4
        %v1777 = vpop.permute.xlu0 %1776
        %1778 = vrot.lane.b32.xlu0 %v1615, 4
        %v1779 = vpop.permute.xlu0 %1778
        %1780 = vrot.lane.b32.xlu0 %v1616, 4
        %v1781 = vpop.permute.xlu0 %1780
        %1782 = vrot.lane.b32.xlu0 %v1617, 4
        %v1783 = vpop.permute.xlu0 %1782
        %1784 = vrot.lane.b32.xlu0 %v1618, 4
        %v1785 = vpop.permute.xlu0 %1784
        %1786 = vrot.lane.b32.xlu0 %v1619, 4
        %v1787 = vpop.permute.xlu0 %1786
        %vm1820 = vcmask 64544
        %1821 = vst.msk [vmem:[%s1657] sm:$0xff] %vm1820, %v1725
        %1822 = vst.msk [vmem:[%s1657 + $0x8] sm:$0xff] %vm1820, %v1727
        %1823 = vst.msk [vmem:[%s1657 + $0x10] sm:$0xff] %vm1820, %v1729
        %1824 = vst.msk [vmem:[%s1657 + $0x18] sm:$0xff] %vm1820, %v1731
        %1825 = vst.msk [vmem:[%s1657 + $0x20] sm:$0xff] %vm1820, %v1733
        %1826 = vst.msk [vmem:[%s1657 + $0x28] sm:$0xff] %vm1820, %v1735
        %1827 = vst.msk [vmem:[%s1657 + $0x30] sm:$0xff] %vm1820, %v1737
        %1828 = vst.msk [vmem:[%s1657 + $0x38] sm:$0xff] %vm1820, %v1739
        %1829 = vst.msk [vmem:[%s1657 + $0x40] sm:$0xff] %vm1820, %v1741
        %1830 = vst.msk [vmem:[%s1657 + $0x48] sm:$0xff] %vm1820, %v1743
        %1831 = vst.msk [vmem:[%s1657 + $0x50] sm:$0xff] %vm1820, %v1745
        %1832 = vst.msk [vmem:[%s1657 + $0x58] sm:$0xff] %vm1820, %v1747
        %1833 = vst.msk [vmem:[%s1657 + $0x60] sm:$0xff] %vm1820, %v1749
        %1834 = vst.msk [vmem:[%s1657 + $0x68] sm:$0xff] %vm1820, %v1751
        %1835 = vst.msk [vmem:[%s1657 + $0x70] sm:$0xff] %vm1820, %v1753
        %1836 = vst.msk [vmem:[%s1657 + $0x78] sm:$0xff] %vm1820, %v1755
        %1837 = vst.msk [vmem:[%s1657 + $0x80] sm:$0xff] %vm1820, %v1757
        %1838 = vst.msk [vmem:[%s1657 + $0x88] sm:$0xff] %vm1820, %v1759
        %1839 = vst.msk [vmem:[%s1657 + $0x90] sm:$0xff] %vm1820, %v1761
        %1840 = vst.msk [vmem:[%s1657 + $0x98] sm:$0xff] %vm1820, %v1763
        %1841 = vst.msk [vmem:[%s1657 + $0xa0] sm:$0xff] %vm1820, %v1765
        %1842 = vst.msk [vmem:[%s1657 + $0xa8] sm:$0xff] %vm1820, %v1767
        %1843 = vst.msk [vmem:[%s1657 + $0xb0] sm:$0xff] %vm1820, %v1769
        %1844 = vst.msk [vmem:[%s1657 + $0xb8] sm:$0xff] %vm1820, %v1771
        %1845 = vst.msk [vmem:[%s1657 + $0xc0] sm:$0xff] %vm1820, %v1773
        %1846 = vst.msk [vmem:[%s1657 + $0xc8] sm:$0xff] %vm1820, %v1775
        %1847 = vst.msk [vmem:[%s1657 + $0xd0] sm:$0xff] %vm1820, %v1777
        %1848 = vst.msk [vmem:[%s1657 + $0xd8] sm:$0xff] %vm1820, %v1779
        %1849 = vst.msk [vmem:[%s1657 + $0xe0] sm:$0xff] %vm1820, %v1781
        %1850 = vst.msk [vmem:[%s1657 + $0xe8] sm:$0xff] %vm1820, %v1783
        %1851 = vst.msk [vmem:[%s1657 + $0xf0] sm:$0xff] %vm1820, %v1785
        %1852 = vst.msk [vmem:[%s1657 + $0xf8] sm:$0xff] %vm1820, %v1787
        %1853 = vrot.lane.b32.xlu0 %v1588, 8
        %v1854 = vpop.permute.xlu0 %1853
        %1855 = vrot.lane.b32.xlu0 %v1589, 8
        %v1856 = vpop.permute.xlu0 %1855
        %1857 = vrot.lane.b32.xlu0 %v1590, 8
        %v1858 = vpop.permute.xlu0 %1857
        %1859 = vrot.lane.b32.xlu0 %v1591, 8
        %v1860 = vpop.permute.xlu0 %1859
        %1861 = vrot.lane.b32.xlu0 %v1592, 8
        %v1862 = vpop.permute.xlu0 %1861
        %1863 = vrot.lane.b32.xlu0 %v1593, 8
        %v1864 = vpop.permute.xlu0 %1863
        %1865 = vrot.lane.b32.xlu0 %v1594, 8
        %v1866 = vpop.permute.xlu0 %1865
        %1867 = vrot.lane.b32.xlu0 %v1595, 8
        %v1868 = vpop.permute.xlu0 %1867
        %1869 = vrot.lane.b32.xlu0 %v1596, 8
        %v1870 = vpop.permute.xlu0 %1869
        %1871 = vrot.lane.b32.xlu0 %v1597, 8
        %v1872 = vpop.permute.xlu0 %1871
        %1873 = vrot.lane.b32.xlu0 %v1598, 8
        %v1874 = vpop.permute.xlu0 %1873
        %1875 = vrot.lane.b32.xlu0 %v1599, 8
        %v1876 = vpop.permute.xlu0 %1875
        %1877 = vrot.lane.b32.xlu0 %v1600, 8
        %v1878 = vpop.permute.xlu0 %1877
        %1879 = vrot.lane.b32.xlu0 %v1601, 8
        %v1880 = vpop.permute.xlu0 %1879
        %1881 = vrot.lane.b32.xlu0 %v1602, 8
        %v1882 = vpop.permute.xlu0 %1881
        %1883 = vrot.lane.b32.xlu0 %v1603, 8
        %v1884 = vpop.permute.xlu0 %1883
        %1885 = vrot.lane.b32.xlu0 %v1604, 8
        %v1886 = vpop.permute.xlu0 %1885
        %1887 = vrot.lane.b32.xlu0 %v1605, 8
        %v1888 = vpop.permute.xlu0 %1887
        %1889 = vrot.lane.b32.xlu0 %v1606, 8
        %v1890 = vpop.permute.xlu0 %1889
        %1891 = vrot.lane.b32.xlu0 %v1607, 8
        %v1892 = vpop.permute.xlu0 %1891
        %1893 = vrot.lane.b32.xlu0 %v1608, 8
        %v1894 = vpop.permute.xlu0 %1893
        %1895 = vrot.lane.b32.xlu0 %v1609, 8
        %v1896 = vpop.permute.xlu0 %1895
        %1897 = vrot.lane.b32.xlu0 %v1610, 8
        %v1898 = vpop.permute.xlu0 %1897
        %1899 = vrot.lane.b32.xlu0 %v1611, 8
        %v1900 = vpop.permute.xlu0 %1899
        %1901 = vrot.lane.b32.xlu0 %v1612, 8
        %v1902 = vpop.permute.xlu0 %1901
        %1903 = vrot.lane.b32.xlu0 %v1613, 8
        %v1904 = vpop.permute.xlu0 %1903
        %1905 = vrot.lane.b32.xlu0 %v1614, 8
        %v1906 = vpop.permute.xlu0 %1905
        %1907 = vrot.lane.b32.xlu0 %v1615, 8
        %v1908 = vpop.permute.xlu0 %1907
        %1909 = vrot.lane.b32.xlu0 %v1616, 8
        %v1910 = vpop.permute.xlu0 %1909
        %1911 = vrot.lane.b32.xlu0 %v1617, 8
        %v1912 = vpop.permute.xlu0 %1911
        %1913 = vrot.lane.b32.xlu0 %v1618, 8
        %v1914 = vpop.permute.xlu0 %1913
        %1915 = vrot.lane.b32.xlu0 %v1619, 8
        %v1916 = vpop.permute.xlu0 %1915
        %vm1949 = vcmask 97345
        %1950 = vst.msk [vmem:[%s1657 - $0x1] sm:$0xfe] %vm1949, %v1854
        %vm1951 = vcmask 97344
        %1952 = vst.msk [vmem:[%s1657 + $0x7] sm:$0xff] %vm1951, %v1856
        %1953 = vst.msk [vmem:[%s1657 + $0xf] sm:$0xfe] %vm1949, %v1858
        %1954 = vst.msk [vmem:[%s1657 + $0x17] sm:$0xff] %vm1951, %v1860
        %1955 = vst.msk [vmem:[%s1657 + $0x1f] sm:$0xfe] %vm1949, %v1862
        %1956 = vst.msk [vmem:[%s1657 + $0x27] sm:$0xff] %vm1951, %v1864
        %1957 = vst.msk [vmem:[%s1657 + $0x2f] sm:$0xfe] %vm1949, %v1866
        %1958 = vst.msk [vmem:[%s1657 + $0x37] sm:$0xff] %vm1951, %v1868
        %1959 = vst.msk [vmem:[%s1657 + $0x3f] sm:$0xfe] %vm1949, %v1870
        %1960 = vst.msk [vmem:[%s1657 + $0x47] sm:$0xff] %vm1951, %v1872
        %1961 = vst.msk [vmem:[%s1657 + $0x4f] sm:$0xfe] %vm1949, %v1874
        %1962 = vst.msk [vmem:[%s1657 + $0x57] sm:$0xff] %vm1951, %v1876
        %1963 = vst.msk [vmem:[%s1657 + $0x5f] sm:$0xfe] %vm1949, %v1878
        %1964 = vst.msk [vmem:[%s1657 + $0x67] sm:$0xff] %vm1951, %v1880
        %1965 = vst.msk [vmem:[%s1657 + $0x6f] sm:$0xfe] %vm1949, %v1882
        %1966 = vst.msk [vmem:[%s1657 + $0x77] sm:$0xff] %vm1951, %v1884
        %1967 = vst.msk [vmem:[%s1657 + $0x7f] sm:$0xfe] %vm1949, %v1886
        %1968 = vst.msk [vmem:[%s1657 + $0x87] sm:$0xff] %vm1951, %v1888
        %1969 = vst.msk [vmem:[%s1657 + $0x8f] sm:$0xfe] %vm1949, %v1890
        %1970 = vst.msk [vmem:[%s1657 + $0x97] sm:$0xff] %vm1951, %v1892
        %1971 = vst.msk [vmem:[%s1657 + $0x9f] sm:$0xfe] %vm1949, %v1894
        %1972 = vst.msk [vmem:[%s1657 + $0xa7] sm:$0xff] %vm1951, %v1896
        %1973 = vst.msk [vmem:[%s1657 + $0xaf] sm:$0xfe] %vm1949, %v1898
        %1974 = vst.msk [vmem:[%s1657 + $0xb7] sm:$0xff] %vm1951, %v1900
        %1975 = vst.msk [vmem:[%s1657 + $0xbf] sm:$0xfe] %vm1949, %v1902
        %1976 = vst.msk [vmem:[%s1657 + $0xc7] sm:$0xff] %vm1951, %v1904
        %1977 = vst.msk [vmem:[%s1657 + $0xcf] sm:$0xfe] %vm1949, %v1906
        %1978 = vst.msk [vmem:[%s1657 + $0xd7] sm:$0xff] %vm1951, %v1908
        %1979 = vst.msk [vmem:[%s1657 + $0xdf] sm:$0xfe] %vm1949, %v1910
        %1980 = vst.msk [vmem:[%s1657 + $0xe7] sm:$0xff] %vm1951, %v1912
        %1981 = vst.msk [vmem:[%s1657 + $0xef] sm:$0xfe] %vm1949, %v1914
        %1982 = vst.msk [vmem:[%s1657 + $0xf7] sm:$0xff] %vm1951, %v1916
        %1983 = vst.msk [vmem:[#allocation7] sm:$0xff] %vm584, 0.0
        %1984 = vst.msk [vmem:[#allocation7 + $0x8] sm:$0xff] %vm584, 0.0
        %1985 = vst.msk [vmem:[#allocation7 + $0x10] sm:$0xff] %vm584, 0.0
        %1986 = vst.msk [vmem:[#allocation7 + $0x18] sm:$0xff] %vm584, 0.0
        %1987 = vst.msk [vmem:[#allocation7 + $0x20] sm:$0xff] %vm584, 0.0
        %1988 = vst.msk [vmem:[#allocation7 + $0x28] sm:$0xff] %vm584, 0.0
        %1989 = vst.msk [vmem:[#allocation7 + $0x30] sm:$0xff] %vm584, 0.0
        %1990 = vst.msk [vmem:[#allocation7 + $0x38] sm:$0xff] %vm584, 0.0
        %1991 = vst.msk [vmem:[#allocation7 + $0x40] sm:$0xff] %vm584, 0.0
        %1992 = vst.msk [vmem:[#allocation7 + $0x48] sm:$0xff] %vm584, 0.0
        %1993 = vst.msk [vmem:[#allocation7 + $0x50] sm:$0xff] %vm584, 0.0
        %1994 = vst.msk [vmem:[#allocation7 + $0x58] sm:$0xff] %vm584, 0.0
        %1995 = vst.msk [vmem:[#allocation7 + $0x60] sm:$0xff] %vm584, 0.0
        %1996 = vst.msk [vmem:[#allocation7 + $0x68] sm:$0xff] %vm584, 0.0
        %1997 = vst.msk [vmem:[#allocation7 + $0x70] sm:$0xff] %vm584, 0.0
        %1998 = vst.msk [vmem:[#allocation7 + $0x78] sm:$0xff] %vm584, 0.0
        %1999 = vst.msk [vmem:[#allocation7 + $0x80] sm:$0xff] %vm584, 0.0
        %2000 = vst.msk [vmem:[#allocation7 + $0x88] sm:$0xff] %vm584, 0.0
        %2001 = vst.msk [vmem:[#allocation7 + $0x90] sm:$0xff] %vm584, 0.0
        %2002 = vst.msk [vmem:[#allocation7 + $0x98] sm:$0xff] %vm584, 0.0
        %2003 = vst.msk [vmem:[#allocation7 + $0xa0] sm:$0xff] %vm584, 0.0
        %2004 = vst.msk [vmem:[#allocation7 + $0xa8] sm:$0xff] %vm584, 0.0
        %2005 = vst.msk [vmem:[#allocation7 + $0xb0] sm:$0xff] %vm584, 0.0
        %2006 = vst.msk [vmem:[#allocation7 + $0xb8] sm:$0xff] %vm584, 0.0
        %2007 = vst.msk [vmem:[#allocation7 + $0xc0] sm:$0xff] %vm584, 0.0
        %2008 = vst.msk [vmem:[#allocation7 + $0xc8] sm:$0xff] %vm584, 0.0
        %2009 = vst.msk [vmem:[#allocation7 + $0xd0] sm:$0xff] %vm584, 0.0
        %2010 = vst.msk [vmem:[#allocation7 + $0xd8] sm:$0xff] %vm584, 0.0
        %2011 = vst.msk [vmem:[#allocation7 + $0xe0] sm:$0xff] %vm584, 0.0
        %2012 = vst.msk [vmem:[#allocation7 + $0xe8] sm:$0xff] %vm584, 0.0
        %2013 = vst.msk [vmem:[#allocation7 + $0xf0] sm:$0xff] %vm584, 0.0
        %2014 = vst.msk [vmem:[#allocation7 + $0xf8] sm:$0xff] %vm584, 0.0
        %v2015 = vld [vmem:[#allocation6] sm:$0xff]
        %v2016 = vld [vmem:[#allocation6 + $0x8] sm:$0xff]
        %v2017 = vld [vmem:[#allocation6 + $0x10] sm:$0xff]
        %v2018 = vld [vmem:[#allocation6 + $0x18] sm:$0xff]
        %v2019 = vld [vmem:[#allocation6 + $0x20] sm:$0xff]
        %v2020 = vld [vmem:[#allocation6 + $0x28] sm:$0xff]
        %v2021 = vld [vmem:[#allocation6 + $0x30] sm:$0xff]
        %v2022 = vld [vmem:[#allocation6 + $0x38] sm:$0xff]
        %v2023 = vld [vmem:[#allocation6 + $0x40] sm:$0xff]
        %v2024 = vld [vmem:[#allocation6 + $0x48] sm:$0xff]
        %v2025 = vld [vmem:[#allocation6 + $0x50] sm:$0xff]
        %v2026 = vld [vmem:[#allocation6 + $0x58] sm:$0xff]
        %v2027 = vld [vmem:[#allocation6 + $0x60] sm:$0xff]
        %v2028 = vld [vmem:[#allocation6 + $0x68] sm:$0xff]
        %v2029 = vld [vmem:[#allocation6 + $0x70] sm:$0xff]
        %v2030 = vld [vmem:[#allocation6 + $0x78] sm:$0xff]
        %v2031 = vld [vmem:[#allocation6 + $0x80] sm:$0xff]
        %v2032 = vld [vmem:[#allocation6 + $0x88] sm:$0xff]
        %v2033 = vld [vmem:[#allocation6 + $0x90] sm:$0xff]
        %v2034 = vld [vmem:[#allocation6 + $0x98] sm:$0xff]
        %v2035 = vld [vmem:[#allocation6 + $0xa0] sm:$0xff]
        %v2036 = vld [vmem:[#allocation6 + $0xa8] sm:$0xff]
        %v2037 = vld [vmem:[#allocation6 + $0xb0] sm:$0xff]
        %v2038 = vld [vmem:[#allocation6 + $0xb8] sm:$0xff]
        %v2039 = vld [vmem:[#allocation6 + $0xc0] sm:$0xff]
        %v2040 = vld [vmem:[#allocation6 + $0xc8] sm:$0xff]
        %v2041 = vld [vmem:[#allocation6 + $0xd0] sm:$0xff]
        %v2042 = vld [vmem:[#allocation6 + $0xd8] sm:$0xff]
        %v2043 = vld [vmem:[#allocation6 + $0xe0] sm:$0xff]
        %v2044 = vld [vmem:[#allocation6 + $0xe8] sm:$0xff]
        %v2045 = vld [vmem:[#allocation6 + $0xf0] sm:$0xff]
        %v2046 = vld [vmem:[#allocation6 + $0xf8] sm:$0xff]
        %v2047 = vld [vmem:[#allocation7] sm:$0xff]
        %v2048 = vld [vmem:[#allocation7 + $0x8] sm:$0xff]
        %v2049 = vld [vmem:[#allocation7 + $0x10] sm:$0xff]
        %v2050 = vld [vmem:[#allocation7 + $0x18] sm:$0xff]
        %v2051 = vld [vmem:[#allocation7 + $0x20] sm:$0xff]
        %v2052 = vld [vmem:[#allocation7 + $0x28] sm:$0xff]
        %v2053 = vld [vmem:[#allocation7 + $0x30] sm:$0xff]
        %v2054 = vld [vmem:[#allocation7 + $0x38] sm:$0xff]
        %v2055 = vld [vmem:[#allocation7 + $0x40] sm:$0xff]
        %v2056 = vld [vmem:[#allocation7 + $0x48] sm:$0xff]
        %v2057 = vld [vmem:[#allocation7 + $0x50] sm:$0xff]
        %v2058 = vld [vmem:[#allocation7 + $0x58] sm:$0xff]
        %v2059 = vld [vmem:[#allocation7 + $0x60] sm:$0xff]
        %v2060 = vld [vmem:[#allocation7 + $0x68] sm:$0xff]
        %v2061 = vld [vmem:[#allocation7 + $0x70] sm:$0xff]
        %v2062 = vld [vmem:[#allocation7 + $0x78] sm:$0xff]
        %v2063 = vld [vmem:[#allocation7 + $0x80] sm:$0xff]
        %v2064 = vld [vmem:[#allocation7 + $0x88] sm:$0xff]
        %v2065 = vld [vmem:[#allocation7 + $0x90] sm:$0xff]
        %v2066 = vld [vmem:[#allocation7 + $0x98] sm:$0xff]
        %v2067 = vld [vmem:[#allocation7 + $0xa0] sm:$0xff]
        %v2068 = vld [vmem:[#allocation7 + $0xa8] sm:$0xff]
        %v2069 = vld [vmem:[#allocation7 + $0xb0] sm:$0xff]
        %v2070 = vld [vmem:[#allocation7 + $0xb8] sm:$0xff]
        %v2071 = vld [vmem:[#allocation7 + $0xc0] sm:$0xff]
        %v2072 = vld [vmem:[#allocation7 + $0xc8] sm:$0xff]
        %v2073 = vld [vmem:[#allocation7 + $0xd0] sm:$0xff]
        %v2074 = vld [vmem:[#allocation7 + $0xd8] sm:$0xff]
        %v2075 = vld [vmem:[#allocation7 + $0xe0] sm:$0xff]
        %v2076 = vld [vmem:[#allocation7 + $0xe8] sm:$0xff]
        %v2077 = vld [vmem:[#allocation7 + $0xf0] sm:$0xff]
        %v2078 = vld [vmem:[#allocation7 + $0xf8] sm:$0xff]
        %v2079 = vld [vmem:[%s9] sm:$0xff]
        %v2080 = vld [vmem:[%s9 + $0x8] sm:$0xf]
        %v2082 = vsel %vm1620, %v2015, 0
        %v2085 = vsel %vm1620, %v2016, 0
        %v2088 = vsel %vm1620, %v2017, 0
        %v2091 = vsel %vm1620, %v2018, 0
        %v2094 = vsel %vm1620, %v2019, 0
        %v2097 = vsel %vm1620, %v2020, 0
        %v2100 = vsel %vm1620, %v2021, 0
        %v2103 = vsel %vm1620, %v2022, 0
        %v2106 = vsel %vm1620, %v2023, 0
        %v2109 = vsel %vm1620, %v2024, 0
        %v2112 = vsel %vm1620, %v2025, 0
        %v2115 = vsel %vm1620, %v2026, 0
        %v2118 = vsel %vm1620, %v2027, 0
        %v2121 = vsel %vm1620, %v2028, 0
        %v2124 = vsel %vm1620, %v2029, 0
        %v2127 = vsel %vm1620, %v2030, 0
        %v2130 = vsel %vm1620, %v2031, 0
        %v2133 = vsel %vm1620, %v2032, 0
        %v2136 = vsel %vm1620, %v2033, 0
        %v2139 = vsel %vm1620, %v2034, 0
        %v2142 = vsel %vm1620, %v2035, 0
        %v2145 = vsel %vm1620, %v2036, 0
        %v2148 = vsel %vm1620, %v2037, 0
        %v2151 = vsel %vm1620, %v2038, 0
        %v2154 = vsel %vm1620, %v2039, 0
        %v2157 = vsel %vm1620, %v2040, 0
        %v2160 = vsel %vm1620, %v2041, 0
        %v2163 = vsel %vm1620, %v2042, 0
        %v2166 = vsel %vm1620, %v2043, 0
        %v2169 = vsel %vm1620, %v2044, 0
        %v2172 = vsel %vm1620, %v2045, 0
        %v2175 = vsel %vm1620, %v2046, 0
        %vm2177 = vcmask 1043456
        %v2179 = vsel %vm2177, %v2080, 0
        %2181 = vmatprep.subr.mxu0 0.0
        %2182 = vmatpush1.msra.mxu0 0.0
        %2183 = vmatprep.subr.mxu0 0.0
        %2184 = vmatpush1.msra.mxu0 0.0
        %2185 = vmatprep.subr.mxu0 0.0
        %2186 = vmatpush1.msra.mxu0 0.0
        %2187 = vmatprep.subr.mxu0 0.0
        %2188 = vmatpush1.msra.mxu0 0.0
        %2189 = vmatprep.subr.mxu0 0.0
        %2190 = vmatpush1.msra.mxu0 0.0
        %2191 = vmatprep.subr.mxu0 0.0
        %2192 = vmatpush1.msra.mxu0 0.0
        %2193 = vmatprep.subr.mxu0 0.0
        %2194 = vmatpush1.msra.mxu0 0.0
        %2195 = vmatprep.subr.mxu0 0.0
        %2196 = vmatpush1.msra.mxu0 0.0
        %2197 = vmatprep.subr.mxu0 0.0
        %2198 = vmatpush1.msra.mxu0 0.0
        %2199 = vmatprep.subr.mxu0 0.0
        %2200 = vmatpush1.msra.mxu0 0.0
        %2201 = vmatprep.subr.mxu0 0.0
        %2202 = vmatpush1.msra.mxu0 0.0
        %2203 = vmatprep.subr.mxu0 0.0
        %2204 = vmatpush1.msra.mxu0 0.0
        %2205 = vmatprep.subr.mxu0 0.0
        %2206 = vmatpush1.msra.mxu0 0.0
        %2207 = vmatprep.subr.mxu0 0.0
        %2208 = vmatpush1.msra.mxu0 0.0
        %2209 = vmatprep.subr.mxu0 0.0
        %2210 = vmatpush1.msra.mxu0 %v2179
        %2211 = vmatprep.subr.mxu0 0.0
        %2212 = vmatpush1.msra.mxu0 %v2079
        %2213 = vmatprep.subr.mxu0 0.0
        %2214 = vmatpush2.msra.mxu0 0.0
        %2215 = vmatprep.subr.mxu0 0.0
        %2216 = vmatpush2.msra.mxu0 0.0
        %2217 = vmatprep.subr.mxu0 0.0
        %2218 = vmatpush2.msra.mxu0 0.0
        %2219 = vmatprep.subr.mxu0 0.0
        %2220 = vmatpush2.msra.mxu0 0.0
        %2221 = vmatprep.subr.mxu0 0.0
        %2222 = vmatpush2.msra.mxu0 0.0
        %2223 = vmatprep.subr.mxu0 0.0
        %2224 = vmatpush2.msra.mxu0 0.0
        %2225 = vmatprep.subr.mxu0 0.0
        %2226 = vmatpush2.msra.mxu0 0.0
        %2227 = vmatprep.subr.mxu0 0.0
        %2228 = vmatpush2.msra.mxu0 0.0
        %2229 = vmatprep.subr.mxu0 0.0
        %2230 = vmatpush2.msra.mxu0 0.0
        %2231 = vmatprep.subr.mxu0 0.0
        %2232 = vmatpush2.msra.mxu0 0.0
        %2233 = vmatprep.subr.mxu0 0.0
        %2234 = vmatpush2.msra.mxu0 0.0
        %2235 = vmatprep.subr.mxu0 0.0
        %2236 = vmatpush2.msra.mxu0 0.0
        %2237 = vmatprep.subr.mxu0 0.0
        %2238 = vmatpush2.msra.mxu0 0.0
        %2239 = vmatprep.subr.mxu0 0.0
        %2240 = vmatpush2.msra.mxu0 0.0
        %2241 = vmatprep.subr.mxu0 0.0
        %2242 = vmatpush2.msra.mxu0 0.0
        %2243 = vmatprep.subr.mxu0 0.0
        %2244 = vmatpush2.msra.mxu0 0.0
        %2245 = vmatprep.mubr.f32.mxu0 0.0
        %2246 = vmatmul.mubr.f32.gmra.mxu0 %v2082
        %v2247 = vpop.f32.mrf.mxu0
        %v2248 = vadd.f32 0.0, %v2247
        %v2249 = vpop.f32.mrf.mxu0
        %2250 = vmatprep.mubr.f32.mxu0 0.0
        %2251 = vmatmul.mubr.f32.gmra.mxu0 %v2085
        %v2252 = vpop.f32.mrf.mxu0
        %v2253 = vadd.f32 0.0, %v2252
        %v2254 = vpop.f32.mrf.mxu0
        %2255 = vmatprep.mubr.f32.mxu0 0.0
        %2256 = vmatmul.mubr.f32.gmra.mxu0 %v2088
        %v2257 = vpop.f32.mrf.mxu0
        %v2258 = vadd.f32 0.0, %v2257
        %v2259 = vpop.f32.mrf.mxu0
        %2260 = vmatprep.mubr.f32.mxu0 0.0
        %2261 = vmatmul.mubr.f32.gmra.mxu0 %v2091
        %v2262 = vpop.f32.mrf.mxu0
        %v2263 = vadd.f32 0.0, %v2262
        %v2264 = vpop.f32.mrf.mxu0
        %2265 = vmatprep.mubr.f32.mxu0 0.0
        %2266 = vmatmul.mubr.f32.gmra.mxu0 %v2094
        %v2267 = vpop.f32.mrf.mxu0
        %v2268 = vadd.f32 0.0, %v2267
        %v2269 = vpop.f32.mrf.mxu0
        %2270 = vmatprep.mubr.f32.mxu0 0.0
        %2271 = vmatmul.mubr.f32.gmra.mxu0 %v2097
        %v2272 = vpop.f32.mrf.mxu0
        %v2273 = vadd.f32 0.0, %v2272
        %v2274 = vpop.f32.mrf.mxu0
        %2275 = vmatprep.mubr.f32.mxu0 0.0
        %2276 = vmatmul.mubr.f32.gmra.mxu0 %v2100
        %v2277 = vpop.f32.mrf.mxu0
        %v2278 = vadd.f32 0.0, %v2277
        %v2279 = vpop.f32.mrf.mxu0
        %2280 = vmatprep.mubr.f32.mxu0 0.0
        %2281 = vmatmul.mubr.f32.gmra.mxu0 %v2103
        %v2282 = vpop.f32.mrf.mxu0
        %v2283 = vadd.f32 0.0, %v2282
        %v2284 = vpop.f32.mrf.mxu0
        %2285 = vmatprep.mubr.f32.mxu0 0.0
        %2286 = vmatmul.mubr.f32.gmra.mxu0 %v2106
        %v2287 = vpop.f32.mrf.mxu0
        %v2288 = vadd.f32 0.0, %v2287
        %v2289 = vpop.f32.mrf.mxu0
        %2290 = vmatprep.mubr.f32.mxu0 0.0
        %2291 = vmatmul.mubr.f32.gmra.mxu0 %v2109
        %v2292 = vpop.f32.mrf.mxu0
        %v2293 = vadd.f32 0.0, %v2292
        %v2294 = vpop.f32.mrf.mxu0
        %2295 = vmatprep.mubr.f32.mxu0 0.0
        %2296 = vmatmul.mubr.f32.gmra.mxu0 %v2112
        %v2297 = vpop.f32.mrf.mxu0
        %v2298 = vadd.f32 0.0, %v2297
        %v2299 = vpop.f32.mrf.mxu0
        %2300 = vmatprep.mubr.f32.mxu0 0.0
        %2301 = vmatmul.mubr.f32.gmra.mxu0 %v2115
        %v2302 = vpop.f32.mrf.mxu0
        %v2303 = vadd.f32 0.0, %v2302
        %v2304 = vpop.f32.mrf.mxu0
        %2305 = vmatprep.mubr.f32.mxu0 0.0
        %2306 = vmatmul.mubr.f32.gmra.mxu0 %v2118
        %v2307 = vpop.f32.mrf.mxu0
        %v2308 = vadd.f32 0.0, %v2307
        %v2309 = vpop.f32.mrf.mxu0
        %2310 = vmatprep.mubr.f32.mxu0 0.0
        %2311 = vmatmul.mubr.f32.gmra.mxu0 %v2121
        %v2312 = vpop.f32.mrf.mxu0
        %v2313 = vadd.f32 0.0, %v2312
        %v2314 = vpop.f32.mrf.mxu0
        %2315 = vmatprep.mubr.f32.mxu0 0.0
        %2316 = vmatmul.mubr.f32.gmra.mxu0 %v2124
        %v2317 = vpop.f32.mrf.mxu0
        %v2318 = vadd.f32 0.0, %v2317
        %v2319 = vpop.f32.mrf.mxu0
        %2320 = vmatprep.mubr.f32.mxu0 0.0
        %2321 = vmatmul.mubr.f32.gmra.mxu0 %v2127
        %v2322 = vpop.f32.mrf.mxu0
        %v2323 = vadd.f32 0.0, %v2322
        %v2324 = vpop.f32.mrf.mxu0
        %2325 = vmatprep.mubr.f32.mxu0 0.0
        %2326 = vmatmul.mubr.f32.gmra.mxu0 %v2130
        %v2327 = vpop.f32.mrf.mxu0
        %v2328 = vadd.f32 0.0, %v2327
        %v2329 = vpop.f32.mrf.mxu0
        %2330 = vmatprep.mubr.f32.mxu0 0.0
        %2331 = vmatmul.mubr.f32.gmra.mxu0 %v2133
        %v2332 = vpop.f32.mrf.mxu0
        %v2333 = vadd.f32 0.0, %v2332
        %v2334 = vpop.f32.mrf.mxu0
        %2335 = vmatprep.mubr.f32.mxu0 0.0
        %2336 = vmatmul.mubr.f32.gmra.mxu0 %v2136
        %v2337 = vpop.f32.mrf.mxu0
        %v2338 = vadd.f32 0.0, %v2337
        %v2339 = vpop.f32.mrf.mxu0
        %2340 = vmatprep.mubr.f32.mxu0 0.0
        %2341 = vmatmul.mubr.f32.gmra.mxu0 %v2139
        %v2342 = vpop.f32.mrf.mxu0
        %v2343 = vadd.f32 0.0, %v2342
        %v2344 = vpop.f32.mrf.mxu0
        %2345 = vmatprep.mubr.f32.mxu0 0.0
        %2346 = vmatmul.mubr.f32.gmra.mxu0 %v2142
        %v2347 = vpop.f32.mrf.mxu0
        %v2348 = vadd.f32 0.0, %v2347
        %v2349 = vpop.f32.mrf.mxu0
        %2350 = vmatprep.mubr.f32.mxu0 0.0
        %2351 = vmatmul.mubr.f32.gmra.mxu0 %v2145
        %v2352 = vpop.f32.mrf.mxu0
        %v2353 = vadd.f32 0.0, %v2352
        %v2354 = vpop.f32.mrf.mxu0
        %2355 = vmatprep.mubr.f32.mxu0 0.0
        %2356 = vmatmul.mubr.f32.gmra.mxu0 %v2148
        %v2357 = vpop.f32.mrf.mxu0
        %v2358 = vadd.f32 0.0, %v2357
        %v2359 = vpop.f32.mrf.mxu0
        %2360 = vmatprep.mubr.f32.mxu0 0.0
        %2361 = vmatmul.mubr.f32.gmra.mxu0 %v2151
        %v2362 = vpop.f32.mrf.mxu0
        %v2363 = vadd.f32 0.0, %v2362
        %v2364 = vpop.f32.mrf.mxu0
        %2365 = vmatprep.mubr.f32.mxu0 0.0
        %2366 = vmatmul.mubr.f32.gmra.mxu0 %v2154
        %v2367 = vpop.f32.mrf.mxu0
        %v2368 = vadd.f32 0.0, %v2367
        %v2369 = vpop.f32.mrf.mxu0
        %2370 = vmatprep.mubr.f32.mxu0 0.0
        %2371 = vmatmul.mubr.f32.gmra.mxu0 %v2157
        %v2372 = vpop.f32.mrf.mxu0
        %v2373 = vadd.f32 0.0, %v2372
        %v2374 = vpop.f32.mrf.mxu0
        %2375 = vmatprep.mubr.f32.mxu0 0.0
        %2376 = vmatmul.mubr.f32.gmra.mxu0 %v2160
        %v2377 = vpop.f32.mrf.mxu0
        %v2378 = vadd.f32 0.0, %v2377
        %v2379 = vpop.f32.mrf.mxu0
        %2380 = vmatprep.mubr.f32.mxu0 0.0
        %2381 = vmatmul.mubr.f32.gmra.mxu0 %v2163
        %v2382 = vpop.f32.mrf.mxu0
        %v2383 = vadd.f32 0.0, %v2382
        %v2384 = vpop.f32.mrf.mxu0
        %2385 = vmatprep.mubr.f32.mxu0 0.0
        %2386 = vmatmul.mubr.f32.gmra.mxu0 %v2166
        %v2387 = vpop.f32.mrf.mxu0
        %v2388 = vadd.f32 0.0, %v2387
        %v2389 = vpop.f32.mrf.mxu0
        %2390 = vmatprep.mubr.f32.mxu0 0.0
        %2391 = vmatmul.mubr.f32.gmra.mxu0 %v2169
        %v2392 = vpop.f32.mrf.mxu0
        %v2393 = vadd.f32 0.0, %v2392
        %v2394 = vpop.f32.mrf.mxu0
        %2395 = vmatprep.mubr.f32.mxu0 0.0
        %2396 = vmatmul.mubr.f32.gmra.mxu0 %v2172
        %v2397 = vpop.f32.mrf.mxu0
        %v2398 = vadd.f32 0.0, %v2397
        %v2399 = vpop.f32.mrf.mxu0
        %2400 = vmatprep.mubr.f32.mxu0 0.0
        %2401 = vmatmul.mubr.f32.gmra.mxu0 %v2175
        %v2402 = vpop.f32.mrf.mxu0
        %v2403 = vadd.f32 0.0, %v2402
        %v2404 = vpop.f32.mrf.mxu0
        %2405 = vdwg.mxu0
        %v2406 = vadd.f32 %v2047, %v2248
        %v2407 = vadd.f32 %v2048, %v2253
        %v2408 = vadd.f32 %v2049, %v2258
        %v2409 = vadd.f32 %v2050, %v2263
        %v2410 = vadd.f32 %v2051, %v2268
        %v2411 = vadd.f32 %v2052, %v2273
        %v2412 = vadd.f32 %v2053, %v2278
        %v2413 = vadd.f32 %v2054, %v2283
        %v2414 = vadd.f32 %v2055, %v2288
        %v2415 = vadd.f32 %v2056, %v2293
        %v2416 = vadd.f32 %v2057, %v2298
        %v2417 = vadd.f32 %v2058, %v2303
        %v2418 = vadd.f32 %v2059, %v2308
        %v2419 = vadd.f32 %v2060, %v2313
        %v2420 = vadd.f32 %v2061, %v2318
        %v2421 = vadd.f32 %v2062, %v2323
        %v2422 = vadd.f32 %v2063, %v2328
        %v2423 = vadd.f32 %v2064, %v2333
        %v2424 = vadd.f32 %v2065, %v2338
        %v2425 = vadd.f32 %v2066, %v2343
        %v2426 = vadd.f32 %v2067, %v2348
        %v2427 = vadd.f32 %v2068, %v2353
        %v2428 = vadd.f32 %v2069, %v2358
        %v2429 = vadd.f32 %v2070, %v2363
        %v2430 = vadd.f32 %v2071, %v2368
        %v2431 = vadd.f32 %v2072, %v2373
        %v2432 = vadd.f32 %v2073, %v2378
        %v2433 = vadd.f32 %v2074, %v2383
        %v2434 = vadd.f32 %v2075, %v2388
        %v2435 = vadd.f32 %v2076, %v2393
        %v2436 = vadd.f32 %v2077, %v2398
        %v2437 = vadd.f32 %v2078, %v2403
        %2438 = vst.msk [vmem:[#allocation7] sm:$0xff] %vm584, %v2406
        %2439 = vst.msk [vmem:[#allocation7 + $0x8] sm:$0xff] %vm584, %v2407
        %2440 = vst.msk [vmem:[#allocation7 + $0x10] sm:$0xff] %vm584, %v2408
        %2441 = vst.msk [vmem:[#allocation7 + $0x18] sm:$0xff] %vm584, %v2409
        %2442 = vst.msk [vmem:[#allocation7 + $0x20] sm:$0xff] %vm584, %v2410
        %2443 = vst.msk [vmem:[#allocation7 + $0x28] sm:$0xff] %vm584, %v2411
        %2444 = vst.msk [vmem:[#allocation7 + $0x30] sm:$0xff] %vm584, %v2412
        %2445 = vst.msk [vmem:[#allocation7 + $0x38] sm:$0xff] %vm584, %v2413
        %2446 = vst.msk [vmem:[#allocation7 + $0x40] sm:$0xff] %vm584, %v2414
        %2447 = vst.msk [vmem:[#allocation7 + $0x48] sm:$0xff] %vm584, %v2415
        %2448 = vst.msk [vmem:[#allocation7 + $0x50] sm:$0xff] %vm584, %v2416
        %2449 = vst.msk [vmem:[#allocation7 + $0x58] sm:$0xff] %vm584, %v2417
        %2450 = vst.msk [vmem:[#allocation7 + $0x60] sm:$0xff] %vm584, %v2418
        %2451 = vst.msk [vmem:[#allocation7 + $0x68] sm:$0xff] %vm584, %v2419
        %2452 = vst.msk [vmem:[#allocation7 + $0x70] sm:$0xff] %vm584, %v2420
        %2453 = vst.msk [vmem:[#allocation7 + $0x78] sm:$0xff] %vm584, %v2421
        %2454 = vst.msk [vmem:[#allocation7 + $0x80] sm:$0xff] %vm584, %v2422
        %2455 = vst.msk [vmem:[#allocation7 + $0x88] sm:$0xff] %vm584, %v2423
        %2456 = vst.msk [vmem:[#allocation7 + $0x90] sm:$0xff] %vm584, %v2424
        %2457 = vst.msk [vmem:[#allocation7 + $0x98] sm:$0xff] %vm584, %v2425
        %2458 = vst.msk [vmem:[#allocation7 + $0xa0] sm:$0xff] %vm584, %v2426
        %2459 = vst.msk [vmem:[#allocation7 + $0xa8] sm:$0xff] %vm584, %v2427
        %2460 = vst.msk [vmem:[#allocation7 + $0xb0] sm:$0xff] %vm584, %v2428
        %2461 = vst.msk [vmem:[#allocation7 + $0xb8] sm:$0xff] %vm584, %v2429
        %2462 = vst.msk [vmem:[#allocation7 + $0xc0] sm:$0xff] %vm584, %v2430
        %2463 = vst.msk [vmem:[#allocation7 + $0xc8] sm:$0xff] %vm584, %v2431
        %2464 = vst.msk [vmem:[#allocation7 + $0xd0] sm:$0xff] %vm584, %v2432
        %2465 = vst.msk [vmem:[#allocation7 + $0xd8] sm:$0xff] %vm584, %v2433
        %2466 = vst.msk [vmem:[#allocation7 + $0xe0] sm:$0xff] %vm584, %v2434
        %2467 = vst.msk [vmem:[#allocation7 + $0xe8] sm:$0xff] %vm584, %v2435
        %2468 = vst.msk [vmem:[#allocation7 + $0xf0] sm:$0xff] %vm584, %v2436
        %2469 = vst.msk [vmem:[#allocation7 + $0xf8] sm:$0xff] %vm584, %v2437
        %v2470 = vld [vmem:[%s1657] sm:$0xff]
        %v2471 = vld [vmem:[%s1657 + $0x8] sm:$0xff]
        %v2472 = vld [vmem:[%s1657 + $0x10] sm:$0xff]
        %v2473 = vld [vmem:[%s1657 + $0x18] sm:$0xff]
        %v2474 = vld [vmem:[%s1657 + $0x20] sm:$0xff]
        %v2475 = vld [vmem:[%s1657 + $0x28] sm:$0xff]
        %v2476 = vld [vmem:[%s1657 + $0x30] sm:$0xff]
        %v2477 = vld [vmem:[%s1657 + $0x38] sm:$0xff]
        %v2478 = vld [vmem:[%s1657 + $0x40] sm:$0xff]
        %v2479 = vld [vmem:[%s1657 + $0x48] sm:$0xff]
        %v2480 = vld [vmem:[%s1657 + $0x50] sm:$0xff]
        %v2481 = vld [vmem:[%s1657 + $0x58] sm:$0xff]
        %v2482 = vld [vmem:[%s1657 + $0x60] sm:$0xff]
        %v2483 = vld [vmem:[%s1657 + $0x68] sm:$0xff]
        %v2484 = vld [vmem:[%s1657 + $0x70] sm:$0xff]
        %v2485 = vld [vmem:[%s1657 + $0x78] sm:$0xff]
        %v2486 = vld [vmem:[%s1657 + $0x80] sm:$0xff]
        %v2487 = vld [vmem:[%s1657 + $0x88] sm:$0xff]
        %v2488 = vld [vmem:[%s1657 + $0x90] sm:$0xff]
        %v2489 = vld [vmem:[%s1657 + $0x98] sm:$0xff]
        %v2490 = vld [vmem:[%s1657 + $0xa0] sm:$0xff]
        %v2491 = vld [vmem:[%s1657 + $0xa8] sm:$0xff]
        %v2492 = vld [vmem:[%s1657 + $0xb0] sm:$0xff]
        %v2493 = vld [vmem:[%s1657 + $0xb8] sm:$0xff]
        %v2494 = vld [vmem:[%s1657 + $0xc0] sm:$0xff]
        %v2495 = vld [vmem:[%s1657 + $0xc8] sm:$0xff]
        %v2496 = vld [vmem:[%s1657 + $0xd0] sm:$0xff]
        %v2497 = vld [vmem:[%s1657 + $0xd8] sm:$0xff]
        %v2498 = vld [vmem:[%s1657 + $0xe0] sm:$0xff]
        %v2499 = vld [vmem:[%s1657 + $0xe8] sm:$0xff]
        %v2500 = vld [vmem:[%s1657 + $0xf0] sm:$0xff]
        %v2501 = vld [vmem:[%s1657 + $0xf8] sm:$0xff]
        %v2502 = vld [vmem:[#allocation7] sm:$0xff]
        %v2503 = vld [vmem:[#allocation7 + $0x8] sm:$0xff]
        %v2504 = vld [vmem:[#allocation7 + $0x10] sm:$0xff]
        %v2505 = vld [vmem:[#allocation7 + $0x18] sm:$0xff]
        %v2506 = vld [vmem:[#allocation7 + $0x20] sm:$0xff]
        %v2507 = vld [vmem:[#allocation7 + $0x28] sm:$0xff]
        %v2508 = vld [vmem:[#allocation7 + $0x30] sm:$0xff]
        %v2509 = vld [vmem:[#allocation7 + $0x38] sm:$0xff]
        %v2510 = vld [vmem:[#allocation7 + $0x40] sm:$0xff]
        %v2511 = vld [vmem:[#allocation7 + $0x48] sm:$0xff]
        %v2512 = vld [vmem:[#allocation7 + $0x50] sm:$0xff]
        %v2513 = vld [vmem:[#allocation7 + $0x58] sm:$0xff]
        %v2514 = vld [vmem:[#allocation7 + $0x60] sm:$0xff]
        %v2515 = vld [vmem:[#allocation7 + $0x68] sm:$0xff]
        %v2516 = vld [vmem:[#allocation7 + $0x70] sm:$0xff]
        %v2517 = vld [vmem:[#allocation7 + $0x78] sm:$0xff]
        %v2518 = vld [vmem:[#allocation7 + $0x80] sm:$0xff]
        %v2519 = vld [vmem:[#allocation7 + $0x88] sm:$0xff]
        %v2520 = vld [vmem:[#allocation7 + $0x90] sm:$0xff]
        %v2521 = vld [vmem:[#allocation7 + $0x98] sm:$0xff]
        %v2522 = vld [vmem:[#allocation7 + $0xa0] sm:$0xff]
        %v2523 = vld [vmem:[#allocation7 + $0xa8] sm:$0xff]
        %v2524 = vld [vmem:[#allocation7 + $0xb0] sm:$0xff]
        %v2525 = vld [vmem:[#allocation7 + $0xb8] sm:$0xff]
        %v2526 = vld [vmem:[#allocation7 + $0xc0] sm:$0xff]
        %v2527 = vld [vmem:[#allocation7 + $0xc8] sm:$0xff]
        %v2528 = vld [vmem:[#allocation7 + $0xd0] sm:$0xff]
        %v2529 = vld [vmem:[#allocation7 + $0xd8] sm:$0xff]
        %v2530 = vld [vmem:[#allocation7 + $0xe0] sm:$0xff]
        %v2531 = vld [vmem:[#allocation7 + $0xe8] sm:$0xff]
        %v2532 = vld [vmem:[#allocation7 + $0xf0] sm:$0xff]
        %v2533 = vld [vmem:[#allocation7 + $0xf8] sm:$0xff]
        %s2534 = scalar_lea.vmem %s9, 16
        %v2535 = vld [vmem:[%s2534] sm:$0xff]
        %v2536 = vld [vmem:[%s2534 + $0x8] sm:$0xf]
        %v2538 = vsel %vm1620, %v2470, 0
        %v2541 = vsel %vm1620, %v2471, 0
        %v2544 = vsel %vm1620, %v2472, 0
        %v2547 = vsel %vm1620, %v2473, 0
        %v2550 = vsel %vm1620, %v2474, 0
        %v2553 = vsel %vm1620, %v2475, 0
        %v2556 = vsel %vm1620, %v2476, 0
        %v2559 = vsel %vm1620, %v2477, 0
        %v2562 = vsel %vm1620, %v2478, 0
        %v2565 = vsel %vm1620, %v2479, 0
        %v2568 = vsel %vm1620, %v2480, 0
        %v2571 = vsel %vm1620, %v2481, 0
        %v2574 = vsel %vm1620, %v2482, 0
        %v2577 = vsel %vm1620, %v2483, 0
        %v2580 = vsel %vm1620, %v2484, 0
        %v2583 = vsel %vm1620, %v2485, 0
        %v2586 = vsel %vm1620, %v2486, 0
        %v2589 = vsel %vm1620, %v2487, 0
        %v2592 = vsel %vm1620, %v2488, 0
        %v2595 = vsel %vm1620, %v2489, 0
        %v2598 = vsel %vm1620, %v2490, 0
        %v2601 = vsel %vm1620, %v2491, 0
        %v2604 = vsel %vm1620, %v2492, 0
        %v2607 = vsel %vm1620, %v2493, 0
        %v2610 = vsel %vm1620, %v2494, 0
        %v2613 = vsel %vm1620, %v2495, 0
        %v2616 = vsel %vm1620, %v2496, 0
        %v2619 = vsel %vm1620, %v2497, 0
        %v2622 = vsel %vm1620, %v2498, 0
        %v2625 = vsel %vm1620, %v2499, 0
        %v2628 = vsel %vm1620, %v2500, 0
        %v2631 = vsel %vm1620, %v2501, 0
        %v2634 = vsel %vm2177, %v2536, 0
        %2636 = vmatprep.subr.mxu0 0.0
        %2637 = vmatpush1.msra.mxu0 0.0
        %2638 = vmatprep.subr.mxu0 0.0
        %2639 = vmatpush1.msra.mxu0 0.0
        %2640 = vmatprep.subr.mxu0 0.0
        %2641 = vmatpush1.msra.mxu0 0.0
        %2642 = vmatprep.subr.mxu0 0.0
        %2643 = vmatpush1.msra.mxu0 0.0
        %2644 = vmatprep.subr.mxu0 0.0
        %2645 = vmatpush1.msra.mxu0 0.0
        %2646 = vmatprep.subr.mxu0 0.0
        %2647 = vmatpush1.msra.mxu0 0.0
        %2648 = vmatprep.subr.mxu0 0.0
        %2649 = vmatpush1.msra.mxu0 0.0
        %2650 = vmatprep.subr.mxu0 0.0
        %2651 = vmatpush1.msra.mxu0 0.0
        %2652 = vmatprep.subr.mxu0 0.0
        %2653 = vmatpush1.msra.mxu0 0.0
        %2654 = vmatprep.subr.mxu0 0.0
        %2655 = vmatpush1.msra.mxu0 0.0
        %2656 = vmatprep.subr.mxu0 0.0
        %2657 = vmatpush1.msra.mxu0 0.0
        %2658 = vmatprep.subr.mxu0 0.0
        %2659 = vmatpush1.msra.mxu0 0.0
        %2660 = vmatprep.subr.mxu0 0.0
        %2661 = vmatpush1.msra.mxu0 0.0
        %2662 = vmatprep.subr.mxu0 0.0
        %2663 = vmatpush1.msra.mxu0 0.0
        %2664 = vmatprep.subr.mxu0 0.0
        %2665 = vmatpush1.msra.mxu0 %v2634
        %2666 = vmatprep.subr.mxu0 0.0
        %2667 = vmatpush1.msra.mxu0 %v2535
        %2668 = vmatprep.subr.mxu0 0.0
        %2669 = vmatpush2.msra.mxu0 0.0
        %2670 = vmatprep.subr.mxu0 0.0
        %2671 = vmatpush2.msra.mxu0 0.0
        %2672 = vmatprep.subr.mxu0 0.0
        %2673 = vmatpush2.msra.mxu0 0.0
        %2674 = vmatprep.subr.mxu0 0.0
        %2675 = vmatpush2.msra.mxu0 0.0
        %2676 = vmatprep.subr.mxu0 0.0
        %2677 = vmatpush2.msra.mxu0 0.0
        %2678 = vmatprep.subr.mxu0 0.0
        %2679 = vmatpush2.msra.mxu0 0.0
        %2680 = vmatprep.subr.mxu0 0.0
        %2681 = vmatpush2.msra.mxu0 0.0
        %2682 = vmatprep.subr.mxu0 0.0
        %2683 = vmatpush2.msra.mxu0 0.0
        %2684 = vmatprep.subr.mxu0 0.0
        %2685 = vmatpush2.msra.mxu0 0.0
        %2686 = vmatprep.subr.mxu0 0.0
        %2687 = vmatpush2.msra.mxu0 0.0
        %2688 = vmatprep.subr.mxu0 0.0
        %2689 = vmatpush2.msra.mxu0 0.0
        %2690 = vmatprep.subr.mxu0 0.0
        %2691 = vmatpush2.msra.mxu0 0.0
        %2692 = vmatprep.subr.mxu0 0.0
        %2693 = vmatpush2.msra.mxu0 0.0
        %2694 = vmatprep.subr.mxu0 0.0
        %2695 = vmatpush2.msra.mxu0 0.0
        %2696 = vmatprep.subr.mxu0 0.0
        %2697 = vmatpush2.msra.mxu0 0.0
        %2698 = vmatprep.subr.mxu0 0.0
        %2699 = vmatpush2.msra.mxu0 0.0
        %2700 = vmatprep.mubr.f32.mxu0 0.0
        %2701 = vmatmul.mubr.f32.gmra.mxu0 %v2538
        %v2702 = vpop.f32.mrf.mxu0
        %v2703 = vadd.f32 0.0, %v2702
        %v2704 = vpop.f32.mrf.mxu0
        %2705 = vmatprep.mubr.f32.mxu0 0.0
        %2706 = vmatmul.mubr.f32.gmra.mxu0 %v2541
        %v2707 = vpop.f32.mrf.mxu0
        %v2708 = vadd.f32 0.0, %v2707
        %v2709 = vpop.f32.mrf.mxu0
        %2710 = vmatprep.mubr.f32.mxu0 0.0
        %2711 = vmatmul.mubr.f32.gmra.mxu0 %v2544
        %v2712 = vpop.f32.mrf.mxu0
        %v2713 = vadd.f32 0.0, %v2712
        %v2714 = vpop.f32.mrf.mxu0
        %2715 = vmatprep.mubr.f32.mxu0 0.0
        %2716 = vmatmul.mubr.f32.gmra.mxu0 %v2547
        %v2717 = vpop.f32.mrf.mxu0
        %v2718 = vadd.f32 0.0, %v2717
        %v2719 = vpop.f32.mrf.mxu0
        %2720 = vmatprep.mubr.f32.mxu0 0.0
        %2721 = vmatmul.mubr.f32.gmra.mxu0 %v2550
        %v2722 = vpop.f32.mrf.mxu0
        %v2723 = vadd.f32 0.0, %v2722
        %v2724 = vpop.f32.mrf.mxu0
        %2725 = vmatprep.mubr.f32.mxu0 0.0
        %2726 = vmatmul.mubr.f32.gmra.mxu0 %v2553
        %v2727 = vpop.f32.mrf.mxu0
        %v2728 = vadd.f32 0.0, %v2727
        %v2729 = vpop.f32.mrf.mxu0
        %2730 = vmatprep.mubr.f32.mxu0 0.0
        %2731 = vmatmul.mubr.f32.gmra.mxu0 %v2556
        %v2732 = vpop.f32.mrf.mxu0
        %v2733 = vadd.f32 0.0, %v2732
        %v2734 = vpop.f32.mrf.mxu0
        %2735 = vmatprep.mubr.f32.mxu0 0.0
        %2736 = vmatmul.mubr.f32.gmra.mxu0 %v2559
        %v2737 = vpop.f32.mrf.mxu0
        %v2738 = vadd.f32 0.0, %v2737
        %v2739 = vpop.f32.mrf.mxu0
        %2740 = vmatprep.mubr.f32.mxu0 0.0
        %2741 = vmatmul.mubr.f32.gmra.mxu0 %v2562
        %v2742 = vpop.f32.mrf.mxu0
        %v2743 = vadd.f32 0.0, %v2742
        %v2744 = vpop.f32.mrf.mxu0
        %2745 = vmatprep.mubr.f32.mxu0 0.0
        %2746 = vmatmul.mubr.f32.gmra.mxu0 %v2565
        %v2747 = vpop.f32.mrf.mxu0
        %v2748 = vadd.f32 0.0, %v2747
        %v2749 = vpop.f32.mrf.mxu0
        %2750 = vmatprep.mubr.f32.mxu0 0.0
        %2751 = vmatmul.mubr.f32.gmra.mxu0 %v2568
        %v2752 = vpop.f32.mrf.mxu0
        %v2753 = vadd.f32 0.0, %v2752
        %v2754 = vpop.f32.mrf.mxu0
        %2755 = vmatprep.mubr.f32.mxu0 0.0
        %2756 = vmatmul.mubr.f32.gmra.mxu0 %v2571
        %v2757 = vpop.f32.mrf.mxu0
        %v2758 = vadd.f32 0.0, %v2757
        %v2759 = vpop.f32.mrf.mxu0
        %2760 = vmatprep.mubr.f32.mxu0 0.0
        %2761 = vmatmul.mubr.f32.gmra.mxu0 %v2574
        %v2762 = vpop.f32.mrf.mxu0
        %v2763 = vadd.f32 0.0, %v2762
        %v2764 = vpop.f32.mrf.mxu0
        %2765 = vmatprep.mubr.f32.mxu0 0.0
        %2766 = vmatmul.mubr.f32.gmra.mxu0 %v2577
        %v2767 = vpop.f32.mrf.mxu0
        %v2768 = vadd.f32 0.0, %v2767
        %v2769 = vpop.f32.mrf.mxu0
        %2770 = vmatprep.mubr.f32.mxu0 0.0
        %2771 = vmatmul.mubr.f32.gmra.mxu0 %v2580
        %v2772 = vpop.f32.mrf.mxu0
        %v2773 = vadd.f32 0.0, %v2772
        %v2774 = vpop.f32.mrf.mxu0
        %2775 = vmatprep.mubr.f32.mxu0 0.0
        %2776 = vmatmul.mubr.f32.gmra.mxu0 %v2583
        %v2777 = vpop.f32.mrf.mxu0
        %v2778 = vadd.f32 0.0, %v2777
        %v2779 = vpop.f32.mrf.mxu0
        %2780 = vmatprep.mubr.f32.mxu0 0.0
        %2781 = vmatmul.mubr.f32.gmra.mxu0 %v2586
        %v2782 = vpop.f32.mrf.mxu0
        %v2783 = vadd.f32 0.0, %v2782
        %v2784 = vpop.f32.mrf.mxu0
        %2785 = vmatprep.mubr.f32.mxu0 0.0
        %2786 = vmatmul.mubr.f32.gmra.mxu0 %v2589
        %v2787 = vpop.f32.mrf.mxu0
        %v2788 = vadd.f32 0.0, %v2787
        %v2789 = vpop.f32.mrf.mxu0
        %2790 = vmatprep.mubr.f32.mxu0 0.0
        %2791 = vmatmul.mubr.f32.gmra.mxu0 %v2592
        %v2792 = vpop.f32.mrf.mxu0
        %v2793 = vadd.f32 0.0, %v2792
        %v2794 = vpop.f32.mrf.mxu0
        %2795 = vmatprep.mubr.f32.mxu0 0.0
        %2796 = vmatmul.mubr.f32.gmra.mxu0 %v2595
        %v2797 = vpop.f32.mrf.mxu0
        %v2798 = vadd.f32 0.0, %v2797
        %v2799 = vpop.f32.mrf.mxu0
        %2800 = vmatprep.mubr.f32.mxu0 0.0
        %2801 = vmatmul.mubr.f32.gmra.mxu0 %v2598
        %v2802 = vpop.f32.mrf.mxu0
        %v2803 = vadd.f32 0.0, %v2802
        %v2804 = vpop.f32.mrf.mxu0
        %2805 = vmatprep.mubr.f32.mxu0 0.0
        %2806 = vmatmul.mubr.f32.gmra.mxu0 %v2601
        %v2807 = vpop.f32.mrf.mxu0
        %v2808 = vadd.f32 0.0, %v2807
        %v2809 = vpop.f32.mrf.mxu0
        %2810 = vmatprep.mubr.f32.mxu0 0.0
        %2811 = vmatmul.mubr.f32.gmra.mxu0 %v2604
        %v2812 = vpop.f32.mrf.mxu0
        %v2813 = vadd.f32 0.0, %v2812
        %v2814 = vpop.f32.mrf.mxu0
        %2815 = vmatprep.mubr.f32.mxu0 0.0
        %2816 = vmatmul.mubr.f32.gmra.mxu0 %v2607
        %v2817 = vpop.f32.mrf.mxu0
        %v2818 = vadd.f32 0.0, %v2817
        %v2819 = vpop.f32.mrf.mxu0
        %2820 = vmatprep.mubr.f32.mxu0 0.0
        %2821 = vmatmul.mubr.f32.gmra.mxu0 %v2610
        %v2822 = vpop.f32.mrf.mxu0
        %v2823 = vadd.f32 0.0, %v2822
        %v2824 = vpop.f32.mrf.mxu0
        %2825 = vmatprep.mubr.f32.mxu0 0.0
        %2826 = vmatmul.mubr.f32.gmra.mxu0 %v2613
        %v2827 = vpop.f32.mrf.mxu0
        %v2828 = vadd.f32 0.0, %v2827
        %v2829 = vpop.f32.mrf.mxu0
        %2830 = vmatprep.mubr.f32.mxu0 0.0
        %2831 = vmatmul.mubr.f32.gmra.mxu0 %v2616
        %v2832 = vpop.f32.mrf.mxu0
        %v2833 = vadd.f32 0.0, %v2832
        %v2834 = vpop.f32.mrf.mxu0
        %2835 = vmatprep.mubr.f32.mxu0 0.0
        %2836 = vmatmul.mubr.f32.gmra.mxu0 %v2619
        %v2837 = vpop.f32.mrf.mxu0
        %v2838 = vadd.f32 0.0, %v2837
        %v2839 = vpop.f32.mrf.mxu0
        %2840 = vmatprep.mubr.f32.mxu0 0.0
        %2841 = vmatmul.mubr.f32.gmra.mxu0 %v2622
        %v2842 = vpop.f32.mrf.mxu0
        %v2843 = vadd.f32 0.0, %v2842
        %v2844 = vpop.f32.mrf.mxu0
        %2845 = vmatprep.mubr.f32.mxu0 0.0
        %2846 = vmatmul.mubr.f32.gmra.mxu0 %v2625
        %v2847 = vpop.f32.mrf.mxu0
        %v2848 = vadd.f32 0.0, %v2847
        %v2849 = vpop.f32.mrf.mxu0
        %2850 = vmatprep.mubr.f32.mxu0 0.0
        %2851 = vmatmul.mubr.f32.gmra.mxu0 %v2628
        %v2852 = vpop.f32.mrf.mxu0
        %v2853 = vadd.f32 0.0, %v2852
        %v2854 = vpop.f32.mrf.mxu0
        %2855 = vmatprep.mubr.f32.mxu0 0.0
        %2856 = vmatmul.mubr.f32.gmra.mxu0 %v2631
        %v2857 = vpop.f32.mrf.mxu0
        %v2858 = vadd.f32 0.0, %v2857
        %v2859 = vpop.f32.mrf.mxu0
        %2860 = vdwg.mxu0
        %v2861 = vadd.f32 %v2502, %v2703
        %v2862 = vadd.f32 %v2503, %v2708
        %v2863 = vadd.f32 %v2504, %v2713
        %v2864 = vadd.f32 %v2505, %v2718
        %v2865 = vadd.f32 %v2506, %v2723
        %v2866 = vadd.f32 %v2507, %v2728
        %v2867 = vadd.f32 %v2508, %v2733
        %v2868 = vadd.f32 %v2509, %v2738
        %v2869 = vadd.f32 %v2510, %v2743
        %v2870 = vadd.f32 %v2511, %v2748
        %v2871 = vadd.f32 %v2512, %v2753
        %v2872 = vadd.f32 %v2513, %v2758
        %v2873 = vadd.f32 %v2514, %v2763
        %v2874 = vadd.f32 %v2515, %v2768
        %v2875 = vadd.f32 %v2516, %v2773
        %v2876 = vadd.f32 %v2517, %v2778
        %v2877 = vadd.f32 %v2518, %v2783
        %v2878 = vadd.f32 %v2519, %v2788
        %v2879 = vadd.f32 %v2520, %v2793
        %v2880 = vadd.f32 %v2521, %v2798
        %v2881 = vadd.f32 %v2522, %v2803
        %v2882 = vadd.f32 %v2523, %v2808
        %v2883 = vadd.f32 %v2524, %v2813
        %v2884 = vadd.f32 %v2525, %v2818
        %v2885 = vadd.f32 %v2526, %v2823
        %v2886 = vadd.f32 %v2527, %v2828
        %v2887 = vadd.f32 %v2528, %v2833
        %v2888 = vadd.f32 %v2529, %v2838
        %v2889 = vadd.f32 %v2530, %v2843
        %v2890 = vadd.f32 %v2531, %v2848
        %v2891 = vadd.f32 %v2532, %v2853
        %v2892 = vadd.f32 %v2533, %v2858
        %2893 = vst.msk [vmem:[#allocation7] sm:$0xff] %vm584, %v2861
        %2894 = vst.msk [vmem:[#allocation7 + $0x8] sm:$0xff] %vm584, %v2862
        %2895 = vst.msk [vmem:[#allocation7 + $0x10] sm:$0xff] %vm584, %v2863
        %2896 = vst.msk [vmem:[#allocation7 + $0x18] sm:$0xff] %vm584, %v2864
        %2897 = vst.msk [vmem:[#allocation7 + $0x20] sm:$0xff] %vm584, %v2865
        %2898 = vst.msk [vmem:[#allocation7 + $0x28] sm:$0xff] %vm584, %v2866
        %2899 = vst.msk [vmem:[#allocation7 + $0x30] sm:$0xff] %vm584, %v2867
        %2900 = vst.msk [vmem:[#allocation7 + $0x38] sm:$0xff] %vm584, %v2868
        %2901 = vst.msk [vmem:[#allocation7 + $0x40] sm:$0xff] %vm584, %v2869
        %2902 = vst.msk [vmem:[#allocation7 + $0x48] sm:$0xff] %vm584, %v2870
        %2903 = vst.msk [vmem:[#allocation7 + $0x50] sm:$0xff] %vm584, %v2871
        %2904 = vst.msk [vmem:[#allocation7 + $0x58] sm:$0xff] %vm584, %v2872
        %2905 = vst.msk [vmem:[#allocation7 + $0x60] sm:$0xff] %vm584, %v2873
        %2906 = vst.msk [vmem:[#allocation7 + $0x68] sm:$0xff] %vm584, %v2874
        %2907 = vst.msk [vmem:[#allocation7 + $0x70] sm:$0xff] %vm584, %v2875
        %2908 = vst.msk [vmem:[#allocation7 + $0x78] sm:$0xff] %vm584, %v2876
        %2909 = vst.msk [vmem:[#allocation7 + $0x80] sm:$0xff] %vm584, %v2877
        %2910 = vst.msk [vmem:[#allocation7 + $0x88] sm:$0xff] %vm584, %v2878
        %2911 = vst.msk [vmem:[#allocation7 + $0x90] sm:$0xff] %vm584, %v2879
        %2912 = vst.msk [vmem:[#allocation7 + $0x98] sm:$0xff] %vm584, %v2880
        %2913 = vst.msk [vmem:[#allocation7 + $0xa0] sm:$0xff] %vm584, %v2881
        %2914 = vst.msk [vmem:[#allocation7 + $0xa8] sm:$0xff] %vm584, %v2882
        %2915 = vst.msk [vmem:[#allocation7 + $0xb0] sm:$0xff] %vm584, %v2883
        %2916 = vst.msk [vmem:[#allocation7 + $0xb8] sm:$0xff] %vm584, %v2884
        %2917 = vst.msk [vmem:[#allocation7 + $0xc0] sm:$0xff] %vm584, %v2885
        %2918 = vst.msk [vmem:[#allocation7 + $0xc8] sm:$0xff] %vm584, %v2886
        %2919 = vst.msk [vmem:[#allocation7 + $0xd0] sm:$0xff] %vm584, %v2887
        %2920 = vst.msk [vmem:[#allocation7 + $0xd8] sm:$0xff] %vm584, %v2888
        %2921 = vst.msk [vmem:[#allocation7 + $0xe0] sm:$0xff] %vm584, %v2889
        %2922 = vst.msk [vmem:[#allocation7 + $0xe8] sm:$0xff] %vm584, %v2890
        %2923 = vst.msk [vmem:[#allocation7 + $0xf0] sm:$0xff] %vm584, %v2891
        %2924 = vst.msk [vmem:[#allocation7 + $0xf8] sm:$0xff] %vm584, %v2892
        %s2925 = scalar_lea.vmem [#allocation6], 32
        %v2926 = vld [vmem:[%s2925] sm:$0xff]
        %v2927 = vld [vmem:[%s2925 + $0x8] sm:$0xff]
        %v2928 = vld [vmem:[%s2925 + $0x10] sm:$0xff]
        %v2929 = vld [vmem:[%s2925 + $0x18] sm:$0xff]
        %v2930 = vld [vmem:[%s2925 + $0x20] sm:$0xff]
        %v2931 = vld [vmem:[%s2925 + $0x28] sm:$0xff]
        %v2932 = vld [vmem:[%s2925 + $0x30] sm:$0xff]
        %v2933 = vld [vmem:[%s2925 + $0x38] sm:$0xff]
        %v2934 = vld [vmem:[%s2925 + $0x40] sm:$0xff]
        %v2935 = vld [vmem:[%s2925 + $0x48] sm:$0xff]
        %v2936 = vld [vmem:[%s2925 + $0x50] sm:$0xff]
        %v2937 = vld [vmem:[%s2925 + $0x58] sm:$0xff]
        %v2938 = vld [vmem:[%s2925 + $0x60] sm:$0xff]
        %v2939 = vld [vmem:[%s2925 + $0x68] sm:$0xff]
        %v2940 = vld [vmem:[%s2925 + $0x70] sm:$0xff]
        %v2941 = vld [vmem:[%s2925 + $0x78] sm:$0xff]
        %v2942 = vld [vmem:[%s2925 + $0x80] sm:$0xff]
        %v2943 = vld [vmem:[%s2925 + $0x88] sm:$0xff]
        %v2944 = vld [vmem:[%s2925 + $0x90] sm:$0xff]
        %v2945 = vld [vmem:[%s2925 + $0x98] sm:$0xff]
        %v2946 = vld [vmem:[%s2925 + $0xa0] sm:$0xff]
        %v2947 = vld [vmem:[%s2925 + $0xa8] sm:$0xff]
        %v2948 = vld [vmem:[%s2925 + $0xb0] sm:$0xff]
        %v2949 = vld [vmem:[%s2925 + $0xb8] sm:$0xff]
        %v2950 = vld [vmem:[%s2925 + $0xc0] sm:$0xff]
        %v2951 = vld [vmem:[%s2925 + $0xc8] sm:$0xff]
        %v2952 = vld [vmem:[%s2925 + $0xd0] sm:$0xff]
        %v2953 = vld [vmem:[%s2925 + $0xd8] sm:$0xff]
        %v2954 = vld [vmem:[%s2925 + $0xe0] sm:$0xff]
        %v2955 = vld [vmem:[%s2925 + $0xe8] sm:$0xff]
        %v2956 = vld [vmem:[%s2925 + $0xf0] sm:$0xff]
        %v2957 = vld [vmem:[%s2925 + $0xf8] sm:$0xff]
        %v2958 = vld [vmem:[#allocation7] sm:$0xff]
        %v2959 = vld [vmem:[#allocation7 + $0x8] sm:$0xff]
        %v2960 = vld [vmem:[#allocation7 + $0x10] sm:$0xff]
        %v2961 = vld [vmem:[#allocation7 + $0x18] sm:$0xff]
        %v2962 = vld [vmem:[#allocation7 + $0x20] sm:$0xff]
        %v2963 = vld [vmem:[#allocation7 + $0x28] sm:$0xff]
        %v2964 = vld [vmem:[#allocation7 + $0x30] sm:$0xff]
        %v2965 = vld [vmem:[#allocation7 + $0x38] sm:$0xff]
        %v2966 = vld [vmem:[#allocation7 + $0x40] sm:$0xff]
        %v2967 = vld [vmem:[#allocation7 + $0x48] sm:$0xff]
        %v2968 = vld [vmem:[#allocation7 + $0x50] sm:$0xff]
        %v2969 = vld [vmem:[#allocation7 + $0x58] sm:$0xff]
        %v2970 = vld [vmem:[#allocation7 + $0x60] sm:$0xff]
        %v2971 = vld [vmem:[#allocation7 + $0x68] sm:$0xff]
        %v2972 = vld [vmem:[#allocation7 + $0x70] sm:$0xff]
        %v2973 = vld [vmem:[#allocation7 + $0x78] sm:$0xff]
        %v2974 = vld [vmem:[#allocation7 + $0x80] sm:$0xff]
        %v2975 = vld [vmem:[#allocation7 + $0x88] sm:$0xff]
        %v2976 = vld [vmem:[#allocation7 + $0x90] sm:$0xff]
        %v2977 = vld [vmem:[#allocation7 + $0x98] sm:$0xff]
        %v2978 = vld [vmem:[#allocation7 + $0xa0] sm:$0xff]
        %v2979 = vld [vmem:[#allocation7 + $0xa8] sm:$0xff]
        %v2980 = vld [vmem:[#allocation7 + $0xb0] sm:$0xff]
        %v2981 = vld [vmem:[#allocation7 + $0xb8] sm:$0xff]
        %v2982 = vld [vmem:[#allocation7 + $0xc0] sm:$0xff]
        %v2983 = vld [vmem:[#allocation7 + $0xc8] sm:$0xff]
        %v2984 = vld [vmem:[#allocation7 + $0xd0] sm:$0xff]
        %v2985 = vld [vmem:[#allocation7 + $0xd8] sm:$0xff]
        %v2986 = vld [vmem:[#allocation7 + $0xe0] sm:$0xff]
        %v2987 = vld [vmem:[#allocation7 + $0xe8] sm:$0xff]
        %v2988 = vld [vmem:[#allocation7 + $0xf0] sm:$0xff]
        %v2989 = vld [vmem:[#allocation7 + $0xf8] sm:$0xff]
        %s2990 = scalar_lea.vmem %s9, 32
        %v2991 = vld [vmem:[%s2990] sm:$0xff]
        %v2992 = vld [vmem:[%s2990 + $0x8] sm:$0xf]
        %v2994 = vsel %vm1620, %v2926, 0
        %v2997 = vsel %vm1620, %v2927, 0
        %v3000 = vsel %vm1620, %v2928, 0
        %v3003 = vsel %vm1620, %v2929, 0
        %v3006 = vsel %vm1620, %v2930, 0
        %v3009 = vsel %vm1620, %v2931, 0
        %v3012 = vsel %vm1620, %v2932, 0
        %v3015 = vsel %vm1620, %v2933, 0
        %v3018 = vsel %vm1620, %v2934, 0
        %v3021 = vsel %vm1620, %v2935, 0
        %v3024 = vsel %vm1620, %v2936, 0
        %v3027 = vsel %vm1620, %v2937, 0
        %v3030 = vsel %vm1620, %v2938, 0
        %v3033 = vsel %vm1620, %v2939, 0
        %v3036 = vsel %vm1620, %v2940, 0
        %v3039 = vsel %vm1620, %v2941, 0
        %v3042 = vsel %vm1620, %v2942, 0
        %v3045 = vsel %vm1620, %v2943, 0
        %v3048 = vsel %vm1620, %v2944, 0
        %v3051 = vsel %vm1620, %v2945, 0
        %v3054 = vsel %vm1620, %v2946, 0
        %v3057 = vsel %vm1620, %v2947, 0
        %v3060 = vsel %vm1620, %v2948, 0
        %v3063 = vsel %vm1620, %v2949, 0
        %v3066 = vsel %vm1620, %v2950, 0
        %v3069 = vsel %vm1620, %v2951, 0
        %v3072 = vsel %vm1620, %v2952, 0
        %v3075 = vsel %vm1620, %v2953, 0
        %v3078 = vsel %vm1620, %v2954, 0
        %v3081 = vsel %vm1620, %v2955, 0
        %v3084 = vsel %vm1620, %v2956, 0
        %v3087 = vsel %vm1620, %v2957, 0
        %v3090 = vsel %vm2177, %v2992, 0
        %3092 = vmatprep.subr.mxu0 0.0
        %3093 = vmatpush1.msra.mxu0 0.0
        %3094 = vmatprep.subr.mxu0 0.0
        %3095 = vmatpush1.msra.mxu0 0.0
        %3096 = vmatprep.subr.mxu0 0.0
        %3097 = vmatpush1.msra.mxu0 0.0
        %3098 = vmatprep.subr.mxu0 0.0
        %3099 = vmatpush1.msra.mxu0 0.0
        %3100 = vmatprep.subr.mxu0 0.0
        %3101 = vmatpush1.msra.mxu0 0.0
        %3102 = vmatprep.subr.mxu0 0.0
        %3103 = vmatpush1.msra.mxu0 0.0
        %3104 = vmatprep.subr.mxu0 0.0
        %3105 = vmatpush1.msra.mxu0 0.0
        %3106 = vmatprep.subr.mxu0 0.0
        %3107 = vmatpush1.msra.mxu0 0.0
        %3108 = vmatprep.subr.mxu0 0.0
        %3109 = vmatpush1.msra.mxu0 0.0
        %3110 = vmatprep.subr.mxu0 0.0
        %3111 = vmatpush1.msra.mxu0 0.0
        %3112 = vmatprep.subr.mxu0 0.0
        %3113 = vmatpush1.msra.mxu0 0.0
        %3114 = vmatprep.subr.mxu0 0.0
        %3115 = vmatpush1.msra.mxu0 0.0
        %3116 = vmatprep.subr.mxu0 0.0
        %3117 = vmatpush1.msra.mxu0 0.0
        %3118 = vmatprep.subr.mxu0 0.0
        %3119 = vmatpush1.msra.mxu0 0.0
        %3120 = vmatprep.subr.mxu0 0.0
        %3121 = vmatpush1.msra.mxu0 %v3090
        %3122 = vmatprep.subr.mxu0 0.0
        %3123 = vmatpush1.msra.mxu0 %v2991
        %3124 = vmatprep.subr.mxu0 0.0
        %3125 = vmatpush2.msra.mxu0 0.0
        %3126 = vmatprep.subr.mxu0 0.0
        %3127 = vmatpush2.msra.mxu0 0.0
        %3128 = vmatprep.subr.mxu0 0.0
        %3129 = vmatpush2.msra.mxu0 0.0
        %3130 = vmatprep.subr.mxu0 0.0
        %3131 = vmatpush2.msra.mxu0 0.0
        %3132 = vmatprep.subr.mxu0 0.0
        %3133 = vmatpush2.msra.mxu0 0.0
        %3134 = vmatprep.subr.mxu0 0.0
        %3135 = vmatpush2.msra.mxu0 0.0
        %3136 = vmatprep.subr.mxu0 0.0
        %3137 = vmatpush2.msra.mxu0 0.0
        %3138 = vmatprep.subr.mxu0 0.0
        %3139 = vmatpush2.msra.mxu0 0.0
        %3140 = vmatprep.subr.mxu0 0.0
        %3141 = vmatpush2.msra.mxu0 0.0
        %3142 = vmatprep.subr.mxu0 0.0
        %3143 = vmatpush2.msra.mxu0 0.0
        %3144 = vmatprep.subr.mxu0 0.0
        %3145 = vmatpush2.msra.mxu0 0.0
        %3146 = vmatprep.subr.mxu0 0.0
        %3147 = vmatpush2.msra.mxu0 0.0
        %3148 = vmatprep.subr.mxu0 0.0
        %3149 = vmatpush2.msra.mxu0 0.0
        %3150 = vmatprep.subr.mxu0 0.0
        %3151 = vmatpush2.msra.mxu0 0.0
        %3152 = vmatprep.subr.mxu0 0.0
        %3153 = vmatpush2.msra.mxu0 0.0
        %3154 = vmatprep.subr.mxu0 0.0
        %3155 = vmatpush2.msra.mxu0 0.0
        %3156 = vmatprep.mubr.f32.mxu0 0.0
        %3157 = vmatmul.mubr.f32.gmra.mxu0 %v2994
        %v3158 = vpop.f32.mrf.mxu0
        %v3159 = vadd.f32 0.0, %v3158
        %v3160 = vpop.f32.mrf.mxu0
        %3161 = vmatprep.mubr.f32.mxu0 0.0
        %3162 = vmatmul.mubr.f32.gmra.mxu0 %v2997
        %v3163 = vpop.f32.mrf.mxu0
        %v3164 = vadd.f32 0.0, %v3163
        %v3165 = vpop.f32.mrf.mxu0
        %3166 = vmatprep.mubr.f32.mxu0 0.0
        %3167 = vmatmul.mubr.f32.gmra.mxu0 %v3000
        %v3168 = vpop.f32.mrf.mxu0
        %v3169 = vadd.f32 0.0, %v3168
        %v3170 = vpop.f32.mrf.mxu0
        %3171 = vmatprep.mubr.f32.mxu0 0.0
        %3172 = vmatmul.mubr.f32.gmra.mxu0 %v3003
        %v3173 = vpop.f32.mrf.mxu0
        %v3174 = vadd.f32 0.0, %v3173
        %v3175 = vpop.f32.mrf.mxu0
        %3176 = vmatprep.mubr.f32.mxu0 0.0
        %3177 = vmatmul.mubr.f32.gmra.mxu0 %v3006
        %v3178 = vpop.f32.mrf.mxu0
        %v3179 = vadd.f32 0.0, %v3178
        %v3180 = vpop.f32.mrf.mxu0
        %3181 = vmatprep.mubr.f32.mxu0 0.0
        %3182 = vmatmul.mubr.f32.gmra.mxu0 %v3009
        %v3183 = vpop.f32.mrf.mxu0
        %v3184 = vadd.f32 0.0, %v3183
        %v3185 = vpop.f32.mrf.mxu0
        %3186 = vmatprep.mubr.f32.mxu0 0.0
        %3187 = vmatmul.mubr.f32.gmra.mxu0 %v3012
        %v3188 = vpop.f32.mrf.mxu0
        %v3189 = vadd.f32 0.0, %v3188
        %v3190 = vpop.f32.mrf.mxu0
        %3191 = vmatprep.mubr.f32.mxu0 0.0
        %3192 = vmatmul.mubr.f32.gmra.mxu0 %v3015
        %v3193 = vpop.f32.mrf.mxu0
        %v3194 = vadd.f32 0.0, %v3193
        %v3195 = vpop.f32.mrf.mxu0
        %3196 = vmatprep.mubr.f32.mxu0 0.0
        %3197 = vmatmul.mubr.f32.gmra.mxu0 %v3018
        %v3198 = vpop.f32.mrf.mxu0
        %v3199 = vadd.f32 0.0, %v3198
        %v3200 = vpop.f32.mrf.mxu0
        %3201 = vmatprep.mubr.f32.mxu0 0.0
        %3202 = vmatmul.mubr.f32.gmra.mxu0 %v3021
        %v3203 = vpop.f32.mrf.mxu0
        %v3204 = vadd.f32 0.0, %v3203
        %v3205 = vpop.f32.mrf.mxu0
        %3206 = vmatprep.mubr.f32.mxu0 0.0
        %3207 = vmatmul.mubr.f32.gmra.mxu0 %v3024
        %v3208 = vpop.f32.mrf.mxu0
        %v3209 = vadd.f32 0.0, %v3208
        %v3210 = vpop.f32.mrf.mxu0
        %3211 = vmatprep.mubr.f32.mxu0 0.0
        %3212 = vmatmul.mubr.f32.gmra.mxu0 %v3027
        %v3213 = vpop.f32.mrf.mxu0
        %v3214 = vadd.f32 0.0, %v3213
        %v3215 = vpop.f32.mrf.mxu0
        %3216 = vmatprep.mubr.f32.mxu0 0.0
        %3217 = vmatmul.mubr.f32.gmra.mxu0 %v3030
        %v3218 = vpop.f32.mrf.mxu0
        %v3219 = vadd.f32 0.0, %v3218
        %v3220 = vpop.f32.mrf.mxu0
        %3221 = vmatprep.mubr.f32.mxu0 0.0
        %3222 = vmatmul.mubr.f32.gmra.mxu0 %v3033
        %v3223 = vpop.f32.mrf.mxu0
        %v3224 = vadd.f32 0.0, %v3223
        %v3225 = vpop.f32.mrf.mxu0
        %3226 = vmatprep.mubr.f32.mxu0 0.0
        %3227 = vmatmul.mubr.f32.gmra.mxu0 %v3036
        %v3228 = vpop.f32.mrf.mxu0
        %v3229 = vadd.f32 0.0, %v3228
        %v3230 = vpop.f32.mrf.mxu0
        %3231 = vmatprep.mubr.f32.mxu0 0.0
        %3232 = vmatmul.mubr.f32.gmra.mxu0 %v3039
        %v3233 = vpop.f32.mrf.mxu0
        %v3234 = vadd.f32 0.0, %v3233
        %v3235 = vpop.f32.mrf.mxu0
        %3236 = vmatprep.mubr.f32.mxu0 0.0
        %3237 = vmatmul.mubr.f32.gmra.mxu0 %v3042
        %v3238 = vpop.f32.mrf.mxu0
        %v3239 = vadd.f32 0.0, %v3238
        %v3240 = vpop.f32.mrf.mxu0
        %3241 = vmatprep.mubr.f32.mxu0 0.0
        %3242 = vmatmul.mubr.f32.gmra.mxu0 %v3045
        %v3243 = vpop.f32.mrf.mxu0
        %v3244 = vadd.f32 0.0, %v3243
        %v3245 = vpop.f32.mrf.mxu0
        %3246 = vmatprep.mubr.f32.mxu0 0.0
        %3247 = vmatmul.mubr.f32.gmra.mxu0 %v3048
        %v3248 = vpop.f32.mrf.mxu0
        %v3249 = vadd.f32 0.0, %v3248
        %v3250 = vpop.f32.mrf.mxu0
        %3251 = vmatprep.mubr.f32.mxu0 0.0
        %3252 = vmatmul.mubr.f32.gmra.mxu0 %v3051
        %v3253 = vpop.f32.mrf.mxu0
        %v3254 = vadd.f32 0.0, %v3253
        %v3255 = vpop.f32.mrf.mxu0
        %3256 = vmatprep.mubr.f32.mxu0 0.0
        %3257 = vmatmul.mubr.f32.gmra.mxu0 %v3054
        %v3258 = vpop.f32.mrf.mxu0
        %v3259 = vadd.f32 0.0, %v3258
        %v3260 = vpop.f32.mrf.mxu0
        %3261 = vmatprep.mubr.f32.mxu0 0.0
        %3262 = vmatmul.mubr.f32.gmra.mxu0 %v3057
        %v3263 = vpop.f32.mrf.mxu0
        %v3264 = vadd.f32 0.0, %v3263
        %v3265 = vpop.f32.mrf.mxu0
        %3266 = vmatprep.mubr.f32.mxu0 0.0
        %3267 = vmatmul.mubr.f32.gmra.mxu0 %v3060
        %v3268 = vpop.f32.mrf.mxu0
        %v3269 = vadd.f32 0.0, %v3268
        %v3270 = vpop.f32.mrf.mxu0
        %3271 = vmatprep.mubr.f32.mxu0 0.0
        %3272 = vmatmul.mubr.f32.gmra.mxu0 %v3063
        %v3273 = vpop.f32.mrf.mxu0
        %v3274 = vadd.f32 0.0, %v3273
        %v3275 = vpop.f32.mrf.mxu0
        %3276 = vmatprep.mubr.f32.mxu0 0.0
        %3277 = vmatmul.mubr.f32.gmra.mxu0 %v3066
        %v3278 = vpop.f32.mrf.mxu0
        %v3279 = vadd.f32 0.0, %v3278
        %v3280 = vpop.f32.mrf.mxu0
        %3281 = vmatprep.mubr.f32.mxu0 0.0
        %3282 = vmatmul.mubr.f32.gmra.mxu0 %v3069
        %v3283 = vpop.f32.mrf.mxu0
        %v3284 = vadd.f32 0.0, %v3283
        %v3285 = vpop.f32.mrf.mxu0
        %3286 = vmatprep.mubr.f32.mxu0 0.0
        %3287 = vmatmul.mubr.f32.gmra.mxu0 %v3072
        %v3288 = vpop.f32.mrf.mxu0
        %v3289 = vadd.f32 0.0, %v3288
        %v3290 = vpop.f32.mrf.mxu0
        %3291 = vmatprep.mubr.f32.mxu0 0.0
        %3292 = vmatmul.mubr.f32.gmra.mxu0 %v3075
        %v3293 = vpop.f32.mrf.mxu0
        %v3294 = vadd.f32 0.0, %v3293
        %v3295 = vpop.f32.mrf.mxu0
        %3296 = vmatprep.mubr.f32.mxu0 0.0
        %3297 = vmatmul.mubr.f32.gmra.mxu0 %v3078
        %v3298 = vpop.f32.mrf.mxu0
        %v3299 = vadd.f32 0.0, %v3298
        %v3300 = vpop.f32.mrf.mxu0
        %3301 = vmatprep.mubr.f32.mxu0 0.0
        %3302 = vmatmul.mubr.f32.gmra.mxu0 %v3081
        %v3303 = vpop.f32.mrf.mxu0
        %v3304 = vadd.f32 0.0, %v3303
        %v3305 = vpop.f32.mrf.mxu0
        %3306 = vmatprep.mubr.f32.mxu0 0.0
        %3307 = vmatmul.mubr.f32.gmra.mxu0 %v3084
        %v3308 = vpop.f32.mrf.mxu0
        %v3309 = vadd.f32 0.0, %v3308
        %v3310 = vpop.f32.mrf.mxu0
        %3311 = vmatprep.mubr.f32.mxu0 0.0
        %3312 = vmatmul.mubr.f32.gmra.mxu0 %v3087
        %v3313 = vpop.f32.mrf.mxu0
        %v3314 = vadd.f32 0.0, %v3313
        %v3315 = vpop.f32.mrf.mxu0
        %3316 = vdwg.mxu0
        %v3317 = vadd.f32 %v2958, %v3159
        %v3318 = vadd.f32 %v2959, %v3164
        %v3319 = vadd.f32 %v2960, %v3169
        %v3320 = vadd.f32 %v2961, %v3174
        %v3321 = vadd.f32 %v2962, %v3179
        %v3322 = vadd.f32 %v2963, %v3184
        %v3323 = vadd.f32 %v2964, %v3189
        %v3324 = vadd.f32 %v2965, %v3194
        %v3325 = vadd.f32 %v2966, %v3199
        %v3326 = vadd.f32 %v2967, %v3204
        %v3327 = vadd.f32 %v2968, %v3209
        %v3328 = vadd.f32 %v2969, %v3214
        %v3329 = vadd.f32 %v2970, %v3219
        %v3330 = vadd.f32 %v2971, %v3224
        %v3331 = vadd.f32 %v2972, %v3229
        %v3332 = vadd.f32 %v2973, %v3234
        %v3333 = vadd.f32 %v2974, %v3239
        %v3334 = vadd.f32 %v2975, %v3244
        %v3335 = vadd.f32 %v2976, %v3249
        %v3336 = vadd.f32 %v2977, %v3254
        %v3337 = vadd.f32 %v2978, %v3259
        %v3338 = vadd.f32 %v2979, %v3264
        %v3339 = vadd.f32 %v2980, %v3269
        %v3340 = vadd.f32 %v2981, %v3274
        %v3341 = vadd.f32 %v2982, %v3279
        %v3342 = vadd.f32 %v2983, %v3284
        %v3343 = vadd.f32 %v2984, %v3289
        %v3344 = vadd.f32 %v2985, %v3294
        %v3345 = vadd.f32 %v2986, %v3299
        %v3346 = vadd.f32 %v2987, %v3304
        %v3347 = vadd.f32 %v2988, %v3309
        %v3348 = vadd.f32 %v2989, %v3314
        %3349 = vst.msk [vmem:[#allocation7] sm:$0xff] %vm584, %v3317
        %3350 = vst.msk [vmem:[#allocation7 + $0x8] sm:$0xff] %vm584, %v3318
        %3351 = vst.msk [vmem:[#allocation7 + $0x10] sm:$0xff] %vm584, %v3319
        %3352 = vst.msk [vmem:[#allocation7 + $0x18] sm:$0xff] %vm584, %v3320
        %3353 = vst.msk [vmem:[#allocation7 + $0x20] sm:$0xff] %vm584, %v3321
        %3354 = vst.msk [vmem:[#allocation7 + $0x28] sm:$0xff] %vm584, %v3322
        %3355 = vst.msk [vmem:[#allocation7 + $0x30] sm:$0xff] %vm584, %v3323
        %3356 = vst.msk [vmem:[#allocation7 + $0x38] sm:$0xff] %vm584, %v3324
        %3357 = vst.msk [vmem:[#allocation7 + $0x40] sm:$0xff] %vm584, %v3325
        %3358 = vst.msk [vmem:[#allocation7 + $0x48] sm:$0xff] %vm584, %v3326
        %3359 = vst.msk [vmem:[#allocation7 + $0x50] sm:$0xff] %vm584, %v3327
        %3360 = vst.msk [vmem:[#allocation7 + $0x58] sm:$0xff] %vm584, %v3328
        %3361 = vst.msk [vmem:[#allocation7 + $0x60] sm:$0xff] %vm584, %v3329
        %3362 = vst.msk [vmem:[#allocation7 + $0x68] sm:$0xff] %vm584, %v3330
        %3363 = vst.msk [vmem:[#allocation7 + $0x70] sm:$0xff] %vm584, %v3331
        %3364 = vst.msk [vmem:[#allocation7 + $0x78] sm:$0xff] %vm584, %v3332
        %3365 = vst.msk [vmem:[#allocation7 + $0x80] sm:$0xff] %vm584, %v3333
        %3366 = vst.msk [vmem:[#allocation7 + $0x88] sm:$0xff] %vm584, %v3334
        %3367 = vst.msk [vmem:[#allocation7 + $0x90] sm:$0xff] %vm584, %v3335
        %3368 = vst.msk [vmem:[#allocation7 + $0x98] sm:$0xff] %vm584, %v3336
        %3369 = vst.msk [vmem:[#allocation7 + $0xa0] sm:$0xff] %vm584, %v3337
        %3370 = vst.msk [vmem:[#allocation7 + $0xa8] sm:$0xff] %vm584, %v3338
        %3371 = vst.msk [vmem:[#allocation7 + $0xb0] sm:$0xff] %vm584, %v3339
        %3372 = vst.msk [vmem:[#allocation7 + $0xb8] sm:$0xff] %vm584, %v3340
        %3373 = vst.msk [vmem:[#allocation7 + $0xc0] sm:$0xff] %vm584, %v3341
        %3374 = vst.msk [vmem:[#allocation7 + $0xc8] sm:$0xff] %vm584, %v3342
        %3375 = vst.msk [vmem:[#allocation7 + $0xd0] sm:$0xff] %vm584, %v3343
        %3376 = vst.msk [vmem:[#allocation7 + $0xd8] sm:$0xff] %vm584, %v3344
        %3377 = vst.msk [vmem:[#allocation7 + $0xe0] sm:$0xff] %vm584, %v3345
        %3378 = vst.msk [vmem:[#allocation7 + $0xe8] sm:$0xff] %vm584, %v3346
        %3379 = vst.msk [vmem:[#allocation7 + $0xf0] sm:$0xff] %vm584, %v3347
        %3380 = vst.msk [vmem:[#allocation7 + $0xf8] sm:$0xff] %vm584, %v3348
        %v3381 = vld [vmem:[#allocation7] sm:$0xff]
        %v3382 = vld [vmem:[#allocation7 + $0x8] sm:$0xff]
        %v3383 = vld [vmem:[#allocation7 + $0x10] sm:$0xff]
        %v3384 = vld [vmem:[#allocation7 + $0x18] sm:$0xff]
        %v3385 = vld [vmem:[#allocation7 + $0x20] sm:$0xff]
        %v3386 = vld [vmem:[#allocation7 + $0x28] sm:$0xff]
        %v3387 = vld [vmem:[#allocation7 + $0x30] sm:$0xff]
        %v3388 = vld [vmem:[#allocation7 + $0x38] sm:$0xff]
        %v3389 = vld [vmem:[#allocation7 + $0x40] sm:$0xff]
        %v3390 = vld [vmem:[#allocation7 + $0x48] sm:$0xff]
        %v3391 = vld [vmem:[#allocation7 + $0x50] sm:$0xff]
        %v3392 = vld [vmem:[#allocation7 + $0x58] sm:$0xff]
        %v3393 = vld [vmem:[#allocation7 + $0x60] sm:$0xff]
        %v3394 = vld [vmem:[#allocation7 + $0x68] sm:$0xff]
        %v3395 = vld [vmem:[#allocation7 + $0x70] sm:$0xff]
        %v3396 = vld [vmem:[#allocation7 + $0x78] sm:$0xff]
        %v3397 = vld [vmem:[#allocation7 + $0x80] sm:$0xff]
        %v3398 = vld [vmem:[#allocation7 + $0x88] sm:$0xff]
        %v3399 = vld [vmem:[#allocation7 + $0x90] sm:$0xff]
        %v3400 = vld [vmem:[#allocation7 + $0x98] sm:$0xff]
        %v3401 = vld [vmem:[#allocation7 + $0xa0] sm:$0xff]
        %v3402 = vld [vmem:[#allocation7 + $0xa8] sm:$0xff]
        %v3403 = vld [vmem:[#allocation7 + $0xb0] sm:$0xff]
        %v3404 = vld [vmem:[#allocation7 + $0xb8] sm:$0xff]
        %v3405 = vld [vmem:[#allocation7 + $0xc0] sm:$0xff]
        %v3406 = vld [vmem:[#allocation7 + $0xc8] sm:$0xff]
        %v3407 = vld [vmem:[#allocation7 + $0xd0] sm:$0xff]
        %v3408 = vld [vmem:[#allocation7 + $0xd8] sm:$0xff]
        %v3409 = vld [vmem:[#allocation7 + $0xe0] sm:$0xff]
        %v3410 = vld [vmem:[#allocation7 + $0xe8] sm:$0xff]
        %v3411 = vld [vmem:[#allocation7 + $0xf0] sm:$0xff]
        %v3412 = vld [vmem:[#allocation7 + $0xf8] sm:$0xff]
        %v3413 = vld [vmem:[%s10] sm:$0x1]
        %v3415 = vlaneseq
        %v3416 = vshrl.u32 %v3415, 7
        %v3417 = vsub.s32 0, %v3416
        %v3418 = vrot.slane %v3413, %v3417
        %v3420 = vmul.f32 %v3381, %v3418
        %v3421 = vmul.f32 %v3382, %v3418
        %v3422 = vmul.f32 %v3383, %v3418
        %v3423 = vmul.f32 %v3384, %v3418
        %v3424 = vmul.f32 %v3385, %v3418
        %v3425 = vmul.f32 %v3386, %v3418
        %v3426 = vmul.f32 %v3387, %v3418
        %v3427 = vmul.f32 %v3388, %v3418
        %v3428 = vmul.f32 %v3389, %v3418
        %v3429 = vmul.f32 %v3390, %v3418
        %v3430 = vmul.f32 %v3391, %v3418
        %v3431 = vmul.f32 %v3392, %v3418
        %v3432 = vmul.f32 %v3393, %v3418
        %v3433 = vmul.f32 %v3394, %v3418
        %v3434 = vmul.f32 %v3395, %v3418
        %v3435 = vmul.f32 %v3396, %v3418
        %v3436 = vmul.f32 %v3397, %v3418
        %v3437 = vmul.f32 %v3398, %v3418
        %v3438 = vmul.f32 %v3399, %v3418
        %v3439 = vmul.f32 %v3400, %v3418
        %v3440 = vmul.f32 %v3401, %v3418
        %v3441 = vmul.f32 %v3402, %v3418
        %v3442 = vmul.f32 %v3403, %v3418
        %v3443 = vmul.f32 %v3404, %v3418
        %v3444 = vmul.f32 %v3405, %v3418
        %v3445 = vmul.f32 %v3406, %v3418
        %v3446 = vmul.f32 %v3407, %v3418
        %v3447 = vmul.f32 %v3408, %v3418
        %v3448 = vmul.f32 %v3409, %v3418
        %v3449 = vmul.f32 %v3410, %v3418
        %v3450 = vmul.f32 %v3411, %v3418
        %v3451 = vmul.f32 %v3412, %v3418
        %v3452 = vld [vmem:[%s11] sm:$0x1]
        %v3454 = vlaneseq
        %v3455 = vshrl.u32 %v3454, 7
        %v3456 = vsub.s32 0, %v3455
        %v3457 = vrot.slane %v3452, %v3456
        %v3459 = vadd.f32 %v3420, %v3457
        %v3460 = vadd.f32 %v3421, %v3457
        %v3461 = vadd.f32 %v3422, %v3457
        %v3462 = vadd.f32 %v3423, %v3457
        %v3463 = vadd.f32 %v3424, %v3457
        %v3464 = vadd.f32 %v3425, %v3457
        %v3465 = vadd.f32 %v3426, %v3457
        %v3466 = vadd.f32 %v3427, %v3457
        %v3467 = vadd.f32 %v3428, %v3457
        %v3468 = vadd.f32 %v3429, %v3457
        %v3469 = vadd.f32 %v3430, %v3457
        %v3470 = vadd.f32 %v3431, %v3457
        %v3471 = vadd.f32 %v3432, %v3457
        %v3472 = vadd.f32 %v3433, %v3457
        %v3473 = vadd.f32 %v3434, %v3457
        %v3474 = vadd.f32 %v3435, %v3457
        %v3475 = vadd.f32 %v3436, %v3457
        %v3476 = vadd.f32 %v3437, %v3457
        %v3477 = vadd.f32 %v3438, %v3457
        %v3478 = vadd.f32 %v3439, %v3457
        %v3479 = vadd.f32 %v3440, %v3457
        %v3480 = vadd.f32 %v3441, %v3457
        %v3481 = vadd.f32 %v3442, %v3457
        %v3482 = vadd.f32 %v3443, %v3457
        %v3483 = vadd.f32 %v3444, %v3457
        %v3484 = vadd.f32 %v3445, %v3457
        %v3485 = vadd.f32 %v3446, %v3457
        %v3486 = vadd.f32 %v3447, %v3457
        %v3487 = vadd.f32 %v3448, %v3457
        %v3488 = vadd.f32 %v3449, %v3457
        %v3489 = vadd.f32 %v3450, %v3457
        %v3490 = vadd.f32 %v3451, %v3457
        %v3491 = vmax.f32 %v3459, 0.0
        %v3492 = vmax.f32 %v3460, 0.0
        %v3493 = vmax.f32 %v3461, 0.0
        %v3494 = vmax.f32 %v3462, 0.0
        %v3495 = vmax.f32 %v3463, 0.0
        %v3496 = vmax.f32 %v3464, 0.0
        %v3497 = vmax.f32 %v3465, 0.0
        %v3498 = vmax.f32 %v3466, 0.0
        %v3499 = vmax.f32 %v3467, 0.0
        %v3500 = vmax.f32 %v3468, 0.0
        %v3501 = vmax.f32 %v3469, 0.0
        %v3502 = vmax.f32 %v3470, 0.0
        %v3503 = vmax.f32 %v3471, 0.0
        %v3504 = vmax.f32 %v3472, 0.0
        %v3505 = vmax.f32 %v3473, 0.0
        %v3506 = vmax.f32 %v3474, 0.0
        %v3507 = vmax.f32 %v3475, 0.0
        %v3508 = vmax.f32 %v3476, 0.0
        %v3509 = vmax.f32 %v3477, 0.0
        %v3510 = vmax.f32 %v3478, 0.0
        %v3511 = vmax.f32 %v3479, 0.0
        %v3512 = vmax.f32 %v3480, 0.0
        %v3513 = vmax.f32 %v3481, 0.0
        %v3514 = vmax.f32 %v3482, 0.0
        %v3515 = vmax.f32 %v3483, 0.0
        %v3516 = vmax.f32 %v3484, 0.0
        %v3517 = vmax.f32 %v3485, 0.0
        %v3518 = vmax.f32 %v3486, 0.0
        %v3519 = vmax.f32 %v3487, 0.0
        %v3520 = vmax.f32 %v3488, 0.0
        %v3521 = vmax.f32 %v3489, 0.0
        %v3522 = vmax.f32 %v3490, 0.0
        %3523 = vst.msk [vmem:[%s528] sm:$0xff] %vm584, %v3491
        %3524 = vst.msk [vmem:[%s528 + $0x8] sm:$0xff] %vm584, %v3492
        %3525 = vst.msk [vmem:[%s528 + $0x10] sm:$0xff] %vm584, %v3493
        %3526 = vst.msk [vmem:[%s528 + $0x18] sm:$0xff] %vm584, %v3494
        %3527 = vst.msk [vmem:[%s528 + $0x20] sm:$0xff] %vm584, %v3495
        %3528 = vst.msk [vmem:[%s528 + $0x28] sm:$0xff] %vm584, %v3496
        %3529 = vst.msk [vmem:[%s528 + $0x30] sm:$0xff] %vm584, %v3497
        %3530 = vst.msk [vmem:[%s528 + $0x38] sm:$0xff] %vm584, %v3498
        %3531 = vst.msk [vmem:[%s528 + $0x40] sm:$0xff] %vm584, %v3499
        %3532 = vst.msk [vmem:[%s528 + $0x48] sm:$0xff] %vm584, %v3500
        %3533 = vst.msk [vmem:[%s528 + $0x50] sm:$0xff] %vm584, %v3501
        %3534 = vst.msk [vmem:[%s528 + $0x58] sm:$0xff] %vm584, %v3502
        %3535 = vst.msk [vmem:[%s528 + $0x60] sm:$0xff] %vm584, %v3503
        %3536 = vst.msk [vmem:[%s528 + $0x68] sm:$0xff] %vm584, %v3504
        %3537 = vst.msk [vmem:[%s528 + $0x70] sm:$0xff] %vm584, %v3505
        %3538 = vst.msk [vmem:[%s528 + $0x78] sm:$0xff] %vm584, %v3506
        %3539 = vst.msk [vmem:[%s528 + $0x80] sm:$0xff] %vm584, %v3507
        %3540 = vst.msk [vmem:[%s528 + $0x88] sm:$0xff] %vm584, %v3508
        %3541 = vst.msk [vmem:[%s528 + $0x90] sm:$0xff] %vm584, %v3509
        %3542 = vst.msk [vmem:[%s528 + $0x98] sm:$0xff] %vm584, %v3510
        %3543 = vst.msk [vmem:[%s528 + $0xa0] sm:$0xff] %vm584, %v3511
        %3544 = vst.msk [vmem:[%s528 + $0xa8] sm:$0xff] %vm584, %v3512
        %3545 = vst.msk [vmem:[%s528 + $0xb0] sm:$0xff] %vm584, %v3513
        %3546 = vst.msk [vmem:[%s528 + $0xb8] sm:$0xff] %vm584, %v3514
        %3547 = vst.msk [vmem:[%s528 + $0xc0] sm:$0xff] %vm584, %v3515
        %3548 = vst.msk [vmem:[%s528 + $0xc8] sm:$0xff] %vm584, %v3516
        %3549 = vst.msk [vmem:[%s528 + $0xd0] sm:$0xff] %vm584, %v3517
        %3550 = vst.msk [vmem:[%s528 + $0xd8] sm:$0xff] %vm584, %v3518
        %3551 = vst.msk [vmem:[%s528 + $0xe0] sm:$0xff] %vm584, %v3519
        %3552 = vst.msk [vmem:[%s528 + $0xe8] sm:$0xff] %vm584, %v3520
        %3553 = vst.msk [vmem:[%s528 + $0xf0] sm:$0xff] %vm584, %v3521
        %3554 = vst.msk [vmem:[%s528 + $0xf8] sm:$0xff] %vm584, %v3522
        %s3555 = sand.u32 %s307, 1
        %s3556 = scalar_lea.sflag [#allocation9], %s3555
        %s3557 = sand.u32 %s307, 1
        %s3558 = smul.addr %s3557, 16
        %s3559 = scalar_lea.vmem [#allocation8], %s3558
        %s3560 = sand.u32 %s333, 1
        %s3561 = scalar_lea.sflag [#allocation11], %s3560
        %s3562 = sand.u32 %s333, 1
        %s3563 = smul.addr %s3562, 64
        %s3564 = scalar_lea.vmem [#allocation10], %s3563
        %p3565 = scmp.lt.s32.totalorder %s32, 1
        %s3566 = scalar_select %p3565, %s32, 1
        %s3567 = smul.addr %s3566, 32
        %s3568 = smul.addr %s3567, 8
        %s3569 = scalar_lea.vmem %s14, %s3568
        // Predicated region
        $region69: #{tpu_custom_call.1} parent=67 // pred_check
          %p3570 = pneg %p317
        $region70: #{tpu_custom_call.1} parent=67 // pred_check_branch
          %3572 = sbr.rel (%p3570) target = $region72
        $region71: #{tpu_custom_call.1} parent=67 // pred_region
          %s3574 = ssub.s32 256, 256
          %3575 = vsyncadd %s3556, %s3574
          %s3576 = smul.addr %s32, 4
          %s3577 = smul.addr %s3576, 64
          %s3578 = scalar_lea.hbm %s12, %s3577
          %s3579 = sshll.u32 %s3559, 4
          %s3580 = int_to_ptr.vmem [resolvable:$true] %s3579
          %3585 = dma.vmem_to_hbm [thread:$0]  %s3580, 256, %s3578, %s3556, 64, 64, 4
        $region72: #{tpu_custom_call.1} parent=67 // pred_fallthru
          _
        // Predicated region
        $region73: #{tpu_custom_call.1} parent=67 // pred_check
          %p3586 = pneg %p343
        $region74: #{tpu_custom_call.1} parent=67 // pred_check_branch
          %3588 = sbr.rel (%p3586) target = $region76
        $region75: #{tpu_custom_call.1} parent=67 // pred_region
          %s3590 = ssub.s32 1024, 1024
          %3591 = vsyncadd %s3561, %s3590
          %s3592 = smul.addr %s32, 8
          %s3593 = smul.addr %s3592, 128
          %s3594 = scalar_lea.hbm %s13, %s3593
          %s3595 = sshll.u32 %s3564, 4
          %s3596 = int_to_ptr.vmem [resolvable:$true] %s3595
          %3601 = dma.vmem_to_hbm [thread:$0]  %s3596, 1024, %s3594, %s3561, 128, 128, 8
        $region76: #{tpu_custom_call.1} parent=67 // pred_fallthru
          _
        // Predicated region
        $region77: #{tpu_custom_call.1} parent=67 // pred_check
          %p3602 = pneg %p369
        $region78: #{tpu_custom_call.1} parent=67 // pred_check_branch
          %3604 = sbr.rel (%p3602) target = $region80
        $region79: #{tpu_custom_call.1} parent=67 // pred_region
          _
        $region80: #{tpu_custom_call.1} parent=67 // pred_fallthru
          _
      $region68: #{tpu_custom_call.1} parent=5 // pred_fallthru
        _
      %p3605 = scmp.le.s32.totalorder 2, %s27
      // Predicated region
      $region81: #{tpu_custom_call.1} parent=5 // pred_check
        %p3606 = pneg %p3605
      $region82: #{tpu_custom_call.1} parent=5 // pred_check_branch
        %3608 = sbr.rel (%p3606) target = $region84
      $region83: #{tpu_custom_call.1} parent=5 // pred_region
        %s3609 = ssub.s32 %s27, 2
        // Predicated region
        $region85: #{tpu_custom_call.1} parent=83 // pred_check
          %p3610 = pneg %p323
        $region86: #{tpu_custom_call.1} parent=83 // pred_check_branch
          %3612 = sbr.rel (%p3610) target = $region88
        $region87: #{tpu_custom_call.1} parent=83 // pred_region
          %s3613 = sand.u32 %s308, 1
          %s3614 = scalar_lea.sflag [#allocation9], %s3613
          %s3615 = sand.u32 %s308, 1
          %s3616 = smul.addr %s3615, 16
          %s3617 = scalar_lea.vmem [#allocation8], %s3616
          %3618 = dma.done %s3614, 256
        $region88: #{tpu_custom_call.1} parent=83 // pred_fallthru
          _
        // Predicated region
        $region89: #{tpu_custom_call.1} parent=83 // pred_check
          %p3619 = pneg %p349
        $region90: #{tpu_custom_call.1} parent=83 // pred_check_branch
          %3621 = sbr.rel (%p3619) target = $region92
        $region91: #{tpu_custom_call.1} parent=83 // pred_region
          %s3622 = sand.u32 %s334, 1
          %s3623 = scalar_lea.sflag [#allocation11], %s3622
          %s3624 = sand.u32 %s334, 1
          %s3625 = smul.addr %s3624, 64
          %s3626 = scalar_lea.vmem [#allocation10], %s3625
          %3627 = dma.done %s3623, 1024
        $region92: #{tpu_custom_call.1} parent=83 // pred_fallthru
          _
        // Predicated region
        $region93: #{tpu_custom_call.1} parent=83 // pred_check
          %p3628 = pneg %p375
        $region94: #{tpu_custom_call.1} parent=83 // pred_check_branch
          %3630 = sbr.rel (%p3628) target = $region96
        $region95: #{tpu_custom_call.1} parent=83 // pred_region
          %p3631 = scmp.lt.s32.totalorder %s33, 1
          %s3632 = scalar_select %p3631, %s33, 1
          %s3633 = smul.addr %s3632, 32
          %s3634 = smul.addr %s3633, 8
          %s3635 = scalar_lea.vmem %s14, %s3634
        $region96: #{tpu_custom_call.1} parent=83 // pred_fallthru
          _
      $region84: #{tpu_custom_call.1} parent=5 // pred_fallthru
        _
    $region6: #{tpu_custom_call.1} parent=1 // loop_footer
      %s31 = sadd.s32 1, %s27
    $region7: #{tpu_custom_call.1} parent=1 // loop_footer_branch
      %26 = sbr.rel target = $region3
    $region8: #{tpu_custom_call.1} parent=1 // loop_exit
      _
    %3636 = vsyncpa [#allocation9], 1
    %s3637 = scalar_lea.sflag [#allocation9], 1
    %3638 = vsyncpa %s3637, 1
    %3639 = vsyncpa [#allocation11], 1
    %s3640 = scalar_lea.sflag [#allocation11], 1
    %3641 = vsyncpa %s3640, 1

</llo_original>
